<compile_context>
chip_gen: v5e
topology: v5e:2x2
jax: 0.10.0
libtpu: 0.0.40
codegen_flags: <defaults>
</compile_context>

<pallas_src>
import functools

import jax
import jax.numpy as jnp
import numpy as np
from jax.experimental import pallas as pl
from jax.experimental.pallas import tpu as pltpu


def _elu(v):
    # ELU(alpha=1): x if x > 0 else exp(x) - 1.  exp lands on the EUP slot.
    return jnp.where(v > 0.0, v, jnp.exp(v) - 1.0)


def dfr_kernel(x_ref, w1_ref, b1_ref, w2_ref, b2_ref, w3_ref, b3_ref,
               out_ref, h_acc):
    # x_ref  : (B, block_k)       K-tile of the flattened input
    # w1_ref : (block_k, H)       matching K-tile of W1 (already transposed)
    # b1_ref : (1, H)
    # w2_ref : (H, H)             fully resident (constant index_map)
    # b2_ref : (1, H)
    # w3_ref : (H, Np)            output dim padded to a multiple of 128
    # b3_ref : (1, Np)
    # out_ref: (B, Np)
    # h_acc  : (B, H) f32 scratch accumulator for layer 1
    k = pl.program_id(0)

    @pl.when(k == 0)
    def _():
        h_acc[...] = jnp.zeros_like(h_acc)

    # Layer-1 partial contraction for this K tile (MXU, f32 accumulate).
    h_acc[...] += jnp.dot(x_ref[...], w1_ref[...],
                          preferred_element_type=jnp.float32)

    @pl.when(k == pl.num_programs(0) - 1)
    def _():
        # Epilogue: finish L1 (bias + ELU), then L2 + ELU, then L3 + bias.
        h1 = _elu(h_acc[...] + b1_ref[...])
        h2 = _elu(jnp.dot(h1, w2_ref[...],
                          preferred_element_type=jnp.float32) + b2_ref[...])
        out = jnp.dot(h2, w3_ref[...],
                      preferred_element_type=jnp.float32) + b3_ref[...]
        out_ref[...] = out.astype(out_ref.dtype)


@functools.partial(jax.jit, static_argnames=("block_k",))
def dfr_forward(x, w1, b1, w2, b2, w3, b3, *, block_k=512):
    """x: (B, 18, 512) (or any (B, ...) flattening to 9216).
    w1: (H, K), w2: (H, H), w3: (Dout, H) in torch (out, in) layout."""
    B = x.shape[0]
    xf = x.reshape(B, -1).astype(jnp.float32)
    K = xf.shape[1]
    H = w1.shape[0]
    Dout = w3.shape[0]
    Np = ((Dout + 127) // 128) * 128          # lane-dense padded output width

    assert K % block_k == 0, "flattened input size must divide block_k"
    assert H % 128 == 0, "hidden size must be lane-dense"

    # Glue in plain JAX: transpose to (in, out) and zero-pad the last layer.
    w1t = jnp.transpose(w1)                                   # (K, H)
    w2t = jnp.transpose(w2)                                   # (H, H)
    w3t = jnp.pad(jnp.transpose(w3), ((0, 0), (0, Np - Dout)))  # (H, Np)
    b3p = jnp.pad(b3, (0, Np - Dout))

    out_padded = pl.pallas_call(
        dfr_kernel,
        out_shape=jax.ShapeDtypeStruct((B, Np), jnp.float32),
        grid_spec=pltpu.PrefetchScalarGridSpec(
            num_scalar_prefetch=0,
            grid=(K // block_k,),
            in_specs=[
                pl.BlockSpec((B, block_k), lambda k: (0, k)),   # x K-tiles
                pl.BlockSpec((block_k, H), lambda k: (k, 0)),   # W1 K-tiles
                pl.BlockSpec((1, H), lambda k: (0, 0)),         # b1 (resident)
                pl.BlockSpec((H, H), lambda k: (0, 0)),         # W2 (resident)
                pl.BlockSpec((1, H), lambda k: (0, 0)),         # b2 (resident)
                pl.BlockSpec((H, Np), lambda k: (0, 0)),        # W3 (resident)
                pl.BlockSpec((1, Np), lambda k: (0, 0)),        # b3 (resident)
            ],
            out_specs=pl.BlockSpec((B, Np), lambda k: (0, 0)),
            scratch_shapes=[pltpu.VMEM((B, H), jnp.float32)],
        ),
        compiler_params=pltpu.CompilerParams(
            dimension_semantics=("arbitrary",),
            vmem_limit_bytes=32 * 1024 * 1024,
        ),
    )(xf, w1t, b1.reshape(1, H), w2t, b2.reshape(1, H), w3t,
      b3p.reshape(1, Np))

    return out_padded[:, :Dout]


def dfr_reference(x, w1, b1, w2, b2, w3, b3):
    """Pure-JAX reference mirroring the PyTorch forward."""
    hp = jax.lax.Precision.HIGHEST
    xf = x.reshape(x.shape[0], -1)
    h = jax.nn.elu(jnp.dot(xf, w1.T, precision=hp) + b1)
    h = jax.nn.elu(jnp.dot(h, w2.T, precision=hp) + b2)
    return jnp.dot(h, w3.T, precision=hp) + b3


if __name__ == "__main__":
    # Shapes implied by DFRModel: input (B, 18, 512) -> 9216, hidden 1024,
    # output 257.  Small batch for the demo.
    B, SEQ, FEAT = 8, 18, 512
    HID, OUT = 1024, 257
    K_IN = SEQ * FEAT

    key = jax.random.PRNGKey(0)
    kx, k1, kb1, k2, kb2, k3, kb3 = jax.random.split(key, 7)

    def uinit(k, shape, fan_in):
        bound = 1.0 / np.sqrt(fan_in)
        return jax.random.uniform(k, shape, jnp.float32, -bound, bound)

    x = jax.random.normal(kx, (B, SEQ, FEAT), jnp.float32)
    w1 = uinit(k1, (HID, K_IN), K_IN)
    b1 = uinit(kb1, (HID,), K_IN)
    w2 = uinit(k2, (HID, HID), HID)
    b2 = uinit(kb2, (HID,), HID)
    w3 = uinit(k3, (OUT, HID), HID)
    b3 = uinit(kb3, (OUT,), HID)

    out = dfr_forward(x, w1, b1, w2, b2, w3, b3)
    jax.block_until_ready(out)

    ref = dfr_reference(x, w1, b1, w2, b2, w3, b3)
    np.testing.assert_allclose(np.asarray(out), np.asarray(ref),
                               rtol=1e-3, atol=1e-3)
    print("KERNEL_OK")
</pallas_src>

<mosaic_0001>
module attributes {stable_mosaic.version = 11 : i64} {
  func.func @dfr_kernel(%arg0: i32, %arg1: memref<8x512xf32, #tpu.memory_space<vmem>>, %arg2: memref<512x1024xf32, #tpu.memory_space<vmem>>, %arg3: memref<1x1024xf32, #tpu.memory_space<vmem>>, %arg4: memref<1024x1024xf32, #tpu.memory_space<vmem>>, %arg5: memref<1x1024xf32, #tpu.memory_space<vmem>>, %arg6: memref<1024x384xf32, #tpu.memory_space<vmem>>, %arg7: memref<1x384xf32, #tpu.memory_space<vmem>>, %arg8: memref<8x384xf32, #tpu.memory_space<vmem>>, %arg9: memref<8x1024xf32, #tpu.memory_space<vmem>>) attributes {dimension_semantics = [#tpu.dimension_semantics<arbitrary>], iteration_bounds = array<i64: 18>, scalar_prefetch = 0 : i64, scratch_operands = 1 : i64, tpu.core_type = #tpu.core_type<tc>, window_params = [{transform_indices = @transform_0, window_bounds = array<i64: 8, 512>}, {transform_indices = @transform_1, window_bounds = array<i64: 512, 1024>}, {pipeline_mode = #tpu.pipeline_mode<synchronous>, transform_indices = @transform_2, window_bounds = array<i64: 1, 1024>}, {pipeline_mode = #tpu.pipeline_mode<synchronous>, transform_indices = @transform_3, window_bounds = array<i64: 1024, 1024>}, {pipeline_mode = #tpu.pipeline_mode<synchronous>, transform_indices = @transform_4, window_bounds = array<i64: 1, 1024>}, {pipeline_mode = #tpu.pipeline_mode<synchronous>, transform_indices = @transform_5, window_bounds = array<i64: 1024, 384>}, {pipeline_mode = #tpu.pipeline_mode<synchronous>, transform_indices = @transform_6, window_bounds = array<i64: 1, 384>}, {pipeline_mode = #tpu.pipeline_mode<synchronous>, transform_indices = @transform_7, window_bounds = array<i64: 8, 384>}]} {
    %c0_i32 = arith.constant 0 : i32
    %0 = arith.cmpi eq, %arg0, %c0_i32 : i32
    %1 = arith.extui %0 : i1 to i32
    %c0_i32_0 = arith.constant 0 : i32
    %2 = arith.cmpi ne, %1, %c0_i32_0 : i32
    scf.if %2 {
      %cst_9 = arith.constant 0.000000e+00 : f32
      %12 = vector.broadcast %cst_9 : f32 to vector<8x1024xf32>
      %c0_10 = arith.constant 0 : index
      %c0_11 = arith.constant 0 : index
      %13 = vector.load %arg9[%c0_10, %c0_11] : memref<8x1024xf32, #tpu.memory_space<vmem>>, vector<8x1024xf32>
      tpu.vector_store %arg9[%c0_10, %c0_11], %12 {strides = array<i32>} : memref<8x1024xf32, #tpu.memory_space<vmem>>, vector<8x1024xf32>,
    } else {
    }
    %c0 = arith.constant 0 : index
    %c0_1 = arith.constant 0 : index
    %3 = vector.load %arg9[%c0, %c0_1] : memref<8x1024xf32, #tpu.memory_space<vmem>>, vector<8x1024xf32>
    %c0_2 = arith.constant 0 : index
    %c0_3 = arith.constant 0 : index
    %4 = vector.load %arg1[%c0_2, %c0_3] : memref<8x512xf32, #tpu.memory_space<vmem>>, vector<8x512xf32>
    %c0_4 = arith.constant 0 : index
    %c0_5 = arith.constant 0 : index
    %5 = vector.load %arg2[%c0_4, %c0_5] : memref<512x1024xf32, #tpu.memory_space<vmem>>, vector<512x1024xf32>
    %cst = arith.constant dense<0.000000e+00> : vector<8x1024xf32>
    %6 = tpu.matmul %4, %5, %cst {dimension_numbers = #tpu.dot_dimension_numbers<[1], [0], [0], [1], [0, 0, 1, 1], [], []>} : vector<8x512xf32>, vector<512x1024xf32>, vector<8x1024xf32> -> vector<8x1024xf32>
    %7 = arith.addf %3, %6 : vector<8x1024xf32>
    %c0_6 = arith.constant 0 : index
    %c0_7 = arith.constant 0 : index
    %8 = vector.load %arg9[%c0_6, %c0_7] : memref<8x1024xf32, #tpu.memory_space<vmem>>, vector<8x1024xf32>
    tpu.vector_store %arg9[%c0_6, %c0_7], %7 {strides = array<i32>} : memref<8x1024xf32, #tpu.memory_space<vmem>>, vector<8x1024xf32>,
    %c17_i32 = arith.constant 17 : i32
    %9 = arith.cmpi eq, %arg0, %c17_i32 : i32
    %10 = arith.extui %9 : i1 to i32
    %c0_i32_8 = arith.constant 0 : i32
    %11 = arith.cmpi ne, %10, %c0_i32_8 : i32
    scf.if %11 {
      %c0_9 = arith.constant 0 : index
      %c0_10 = arith.constant 0 : index
      %12 = vector.load %arg9[%c0_9, %c0_10] : memref<8x1024xf32, #tpu.memory_space<vmem>>, vector<8x1024xf32>
      %c0_11 = arith.constant 0 : index
      %c0_12 = arith.constant 0 : index
      %13 = vector.load %arg3[%c0_11, %c0_12] : memref<1x1024xf32, #tpu.memory_space<vmem>>, vector<1x1024xf32>
      %14 = vector.broadcast %13 : vector<1x1024xf32> to vector<8x1024xf32>
      %15 = arith.addf %12, %14 : vector<8x1024xf32>
      %cst_13 = arith.constant 0.000000e+00 : f32
      %16 = vector.broadcast %cst_13 : f32 to vector<8x1024xf32>
      %17 = arith.cmpf ogt, %15, %16 : vector<8x1024xf32>
      %18 = math.exp %15 : vector<8x1024xf32>
      %cst_14 = arith.constant 1.000000e+00 : f32
      %19 = vector.broadcast %cst_14 : f32 to vector<8x1024xf32>
      %20 = arith.subf %18, %19 : vector<8x1024xf32>
      %21 = arith.select %17, %15, %20 : vector<8x1024xi1>, vector<8x1024xf32>
      %c0_15 = arith.constant 0 : index
      %c0_16 = arith.constant 0 : index
      %22 = vector.load %arg4[%c0_15, %c0_16] : memref<1024x1024xf32, #tpu.memory_space<vmem>>, vector<1024x1024xf32>
      %cst_17 = arith.constant dense<0.000000e+00> : vector<8x1024xf32>
      %23 = tpu.matmul %21, %22, %cst_17 {dimension_numbers = #tpu.dot_dimension_numbers<[1], [0], [0], [1], [0, 0, 1, 1], [], []>} : vector<8x1024xf32>, vector<1024x1024xf32>, vector<8x1024xf32> -> vector<8x1024xf32>
      %c0_18 = arith.constant 0 : index
      %c0_19 = arith.constant 0 : index
      %24 = vector.load %arg5[%c0_18, %c0_19] : memref<1x1024xf32, #tpu.memory_space<vmem>>, vector<1x1024xf32>
      %25 = vector.broadcast %24 : vector<1x1024xf32> to vector<8x1024xf32>
      %26 = arith.addf %23, %25 : vector<8x1024xf32>
      %cst_20 = arith.constant 0.000000e+00 : f32
      %27 = vector.broadcast %cst_20 : f32 to vector<8x1024xf32>
      %28 = arith.cmpf ogt, %26, %27 : vector<8x1024xf32>
      %29 = math.exp %26 : vector<8x1024xf32>
      %cst_21 = arith.constant 1.000000e+00 : f32
      %30 = vector.broadcast %cst_21 : f32 to vector<8x1024xf32>
      %31 = arith.subf %29, %30 : vector<8x1024xf32>
      %32 = arith.select %28, %26, %31 : vector<8x1024xi1>, vector<8x1024xf32>
      %c0_22 = arith.constant 0 : index
      %c0_23 = arith.constant 0 : index
      %33 = vector.load %arg6[%c0_22, %c0_23] : memref<1024x384xf32, #tpu.memory_space<vmem>>, vector<1024x384xf32>
      %cst_24 = arith.constant dense<0.000000e+00> : vector<8x384xf32>
      %34 = tpu.matmul %32, %33, %cst_24 {dimension_numbers = #tpu.dot_dimension_numbers<[1], [0], [0], [1], [0, 0, 1, 1], [], []>} : vector<8x1024xf32>, vector<1024x384xf32>, vector<8x384xf32> -> vector<8x384xf32>
      %c0_25 = arith.constant 0 : index
      %c0_26 = arith.constant 0 : index
      %35 = vector.load %arg7[%c0_25, %c0_26] : memref<1x384xf32, #tpu.memory_space<vmem>>, vector<1x384xf32>
      %36 = vector.broadcast %35 : vector<1x384xf32> to vector<8x384xf32>
      %37 = arith.addf %34, %36 : vector<8x384xf32>
      %c0_27 = arith.constant 0 : index
      %c0_28 = arith.constant 0 : index
      %38 = vector.load %arg8[%c0_27, %c0_28] : memref<8x384xf32, #tpu.memory_space<vmem>>, vector<8x384xf32>
      tpu.vector_store %arg8[%c0_27, %c0_28], %37 {strides = array<i32>} : memref<8x384xf32, #tpu.memory_space<vmem>>, vector<8x384xf32>,
    } else {
    }
    return
  }
  func.func @transform_0(%arg0: i32) -> (i32, i32) {
    %c0_i32 = arith.constant 0 : i32
    %c0_i32_0 = arith.constant 0 : i32
    return %c0_i32, %arg0 : i32, i32
  }
  func.func @transform_1(%arg0: i32) -> (i32, i32) {
    %c0_i32 = arith.constant 0 : i32
    %c0_i32_0 = arith.constant 0 : i32
    return %arg0, %c0_i32 : i32, i32
  }
  func.func @transform_2(%arg0: i32) -> (i32, i32) {
    %c0_i32 = arith.constant 0 : i32
    %c0_i32_0 = arith.constant 0 : i32
    %c0_i32_1 = arith.constant 0 : i32
    return %c0_i32, %c0_i32_0 : i32, i32
  }
  func.func @transform_3(%arg0: i32) -> (i32, i32) {
    %c0_i32 = arith.constant 0 : i32
    %c0_i32_0 = arith.constant 0 : i32
    %c0_i32_1 = arith.constant 0 : i32
    return %c0_i32, %c0_i32_0 : i32, i32
  }
  func.func @transform_4(%arg0: i32) -> (i32, i32) {
    %c0_i32 = arith.constant 0 : i32
    %c0_i32_0 = arith.constant 0 : i32
    %c0_i32_1 = arith.constant 0 : i32
    return %c0_i32, %c0_i32_0 : i32, i32
  }
  func.func @transform_5(%arg0: i32) -> (i32, i32) {
    %c0_i32 = arith.constant 0 : i32
    %c0_i32_0 = arith.constant 0 : i32
    %c0_i32_1 = arith.constant 0 : i32
    return %c0_i32, %c0_i32_0 : i32, i32
  }
  func.func @transform_6(%arg0: i32) -> (i32, i32) {
    %c0_i32 = arith.constant 0 : i32
    %c0_i32_0 = arith.constant 0 : i32
    %c0_i32_1 = arith.constant 0 : i32
    return %c0_i32, %c0_i32_0 : i32, i32
  }
  func.func @transform_7(%arg0: i32) -> (i32, i32) {
    %c0_i32 = arith.constant 0 : i32
    %c0_i32_0 = arith.constant 0 : i32
    %c0_i32_1 = arith.constant 0 : i32
    return %c0_i32, %c0_i32_0 : i32, i32
  }
}

</mosaic_0001>

<llo_original>
// kernel: dfr_forward.1
$region0: #{dfr_forward.1}
  #allocation0 [shape = 'u32[]', space=smem, size = 0x4, offset = 0x4, fixed_abs, tag = 'smem constant byte address 0x4 - core index']
  #allocation1 [shape = 'u32[72,128]{1,0:T(1,128)}', space=vmem, size = 0x9000, scoped, tag = 'internal scratch']
  #allocation2 [shape = 'f32[8,1024]{1,0:T(8,128)}', space=vmem, size = 0x8000, scoped, tag = 'scratch operand']
  %s0 = inlined_call_operand.vmem [shape: f32[8,9216], index: 0, kind: input, shape index: {}]
  %s1 = inlined_call_operand.vmem [shape: f32[9216,1024], index: 1, kind: input, shape index: {}]
  %s2 = inlined_call_operand.vmem [shape: f32[1,1024], index: 2, kind: input, shape index: {}]
  %s3 = inlined_call_operand.vmem [shape: f32[1024,1024], index: 3, kind: input, shape index: {}]
  %s4 = inlined_call_operand.vmem [shape: f32[1,1024], index: 4, kind: input, shape index: {}]
  %s5 = inlined_call_operand.vmem [shape: f32[1024,384], index: 5, kind: input, shape index: {}]
  %s6 = inlined_call_operand.vmem [shape: f32[1,384], index: 6, kind: input, shape index: {}]
  %s7 = inlined_call_operand.hbm [shape: f32[8,384], index: 7, kind: output, shape index: {}]
  %s8 = sld [smem:[#allocation0]]
  $region69: #{dfr_forward.1} parent=0
    _
  %s10 = ssub.s32 1, %s8
  %s11 = scalar_select 0, %s10, %s8
  $region1: #{dfr_forward.1} parent=0
    #allocation3 [shape = 'u8[12288]{0}', space=vmem, size = 0x3000, scoped, tag = 'output window, operand 0, single buffered']
    #allocation4 [shape = 's32[2]{0}', space=sflag, size = 0x8, scoped, tag = 'scoped memory for dfr_forward.1']
    %12 = vsyncpa [#allocation4], 0
    loop: start=0, step=1, limit=20
    $region2: #{dfr_forward.1} parent=1 // loop_pre_header
      _
    $region3: #{dfr_forward.1} parent=1 // loop_header
      %s14 = sphi 0, %s18
      %p15 = scmp.ge.s32.totalorder %s14, 20
      %s24 = sphi 0, %s26
      %s27 = sphi 0, %s24
      %s28 = sphi 0, %s27
      %s44 = sphi 0, %s28
      %s50 = sphi 0, %s52
      %s53 = sphi 0, %s50
      %s54 = sphi 0, %s53
      %s70 = sphi 0, %s54
      %s74 = sphi 0, %s74
      %s76 = sphi 0, %s74
      %s77 = sphi 0, %s76
      %s91 = sphi 0, %s77
      %s95 = sphi 0, %s95
      %s97 = sphi 0, %s95
      %s98 = sphi 0, %s97
      %s112 = sphi 0, %s98
      %s116 = sphi 0, %s116
      %s118 = sphi 0, %s116
      %s119 = sphi 0, %s118
      %s133 = sphi 0, %s119
      %s137 = sphi 0, %s137
      %s139 = sphi 0, %s137
      %s140 = sphi 0, %s139
      %s154 = sphi 0, %s140
      %s158 = sphi 0, %s158
      %s160 = sphi 0, %s158
      %s161 = sphi 0, %s160
      %s175 = sphi 0, %s161
      %s179 = sphi 0, %s179
      %s181 = sphi 0, %s179
      %s182 = sphi 0, %s181
      %s196 = sphi 0, %s182
    $region4: #{dfr_forward.1} parent=1 // loop_header_branch
      %17 = sbr.rel (%p15) target = $region8
    $region5: #{dfr_forward.1} parent=1 // loop_body
      %s19 = ssub.s32 %s14, 1
      %s20 = ssub.s32 %s14, 2
      %s21 = sadd.s32 %s14, 1
      %s22 = ssub.s32 %s14, %s21
      %p23 = scmp.eq.s32.totalorder %s22, 0
      %s25 = sadd.s32 %s24, 1
      %s26 = scalar_select %p23, %s24, %s25
      %p29 = pneg %p23
      %p30 = scmp.eq.s32.totalorder %s14, 17
      %p31 = por %p29, %p30
      %p32 = scmp.ne.s32.totalorder %s24, %s27
      %p33 = scmp.eq.s32.totalorder %s14, 0
      %p34 = por %p32, %p33
      %p35 = scmp.ne.s32.totalorder %s24, %s27
      %p36 = scmp.eq.s32.totalorder %s19, 17
      %p37 = por %p35, %p36
      %p38 = scmp.ne.s32.totalorder %s27, %s28
      %p39 = scmp.eq.s32.totalorder %s19, 0
      %p40 = por %p38, %p39
      %p41 = scmp.ne.s32.totalorder %s27, %s28
      %p42 = scmp.eq.s32.totalorder %s20, 17
      %p43 = por %p41, %p42
      %p45 = scmp.ne.s32.totalorder %s28, %s44
      %p46 = scmp.eq.s32.totalorder %s20, 0
      %p47 = por %p45, %p46
      %s48 = ssub.s32 %s14, %s21
      %p49 = scmp.eq.s32.totalorder %s48, 0
      %s51 = sadd.s32 %s50, 1
      %s52 = scalar_select %p49, %s50, %s51
      %p55 = pneg %p49
      %p56 = scmp.eq.s32.totalorder %s14, 17
      %p57 = por %p55, %p56
      %p58 = scmp.ne.s32.totalorder %s50, %s53
      %p59 = scmp.eq.s32.totalorder %s14, 0
      %p60 = por %p58, %p59
      %p61 = scmp.ne.s32.totalorder %s50, %s53
      %p62 = scmp.eq.s32.totalorder %s19, 17
      %p63 = por %p61, %p62
      %p64 = scmp.ne.s32.totalorder %s53, %s54
      %p65 = scmp.eq.s32.totalorder %s19, 0
      %p66 = por %p64, %p65
      %p67 = scmp.ne.s32.totalorder %s53, %s54
      %p68 = scmp.eq.s32.totalorder %s20, 17
      %p69 = por %p67, %p68
      %p71 = scmp.ne.s32.totalorder %s54, %s70
      %p72 = scmp.eq.s32.totalorder %s20, 0
      %p73 = por %p71, %p72
      %s75 = sadd.s32 %s74, 1
      %p78 = scmp.eq.s32.totalorder %s14, 17
      %p79 = scmp.ne.s32.totalorder %s74, %s76
      %p80 = scmp.eq.s32.totalorder %s14, 0
      %p81 = por %p79, %p80
      %p82 = scmp.ne.s32.totalorder %s74, %s76
      %p83 = scmp.eq.s32.totalorder %s19, 17
      %p84 = por %p82, %p83
      %p85 = scmp.ne.s32.totalorder %s76, %s77
      %p86 = scmp.eq.s32.totalorder %s19, 0
      %p87 = por %p85, %p86
      %p88 = scmp.ne.s32.totalorder %s76, %s77
      %p89 = scmp.eq.s32.totalorder %s20, 17
      %p90 = por %p88, %p89
      %p92 = scmp.ne.s32.totalorder %s77, %s91
      %p93 = scmp.eq.s32.totalorder %s20, 0
      %p94 = por %p92, %p93
      %s96 = sadd.s32 %s95, 1
      %p99 = scmp.eq.s32.totalorder %s14, 17
      %p100 = scmp.ne.s32.totalorder %s95, %s97
      %p101 = scmp.eq.s32.totalorder %s14, 0
      %p102 = por %p100, %p101
      %p103 = scmp.ne.s32.totalorder %s95, %s97
      %p104 = scmp.eq.s32.totalorder %s19, 17
      %p105 = por %p103, %p104
      %p106 = scmp.ne.s32.totalorder %s97, %s98
      %p107 = scmp.eq.s32.totalorder %s19, 0
      %p108 = por %p106, %p107
      %p109 = scmp.ne.s32.totalorder %s97, %s98
      %p110 = scmp.eq.s32.totalorder %s20, 17
      %p111 = por %p109, %p110
      %p113 = scmp.ne.s32.totalorder %s98, %s112
      %p114 = scmp.eq.s32.totalorder %s20, 0
      %p115 = por %p113, %p114
      %s117 = sadd.s32 %s116, 1
      %p120 = scmp.eq.s32.totalorder %s14, 17
      %p121 = scmp.ne.s32.totalorder %s116, %s118
      %p122 = scmp.eq.s32.totalorder %s14, 0
      %p123 = por %p121, %p122
      %p124 = scmp.ne.s32.totalorder %s116, %s118
      %p125 = scmp.eq.s32.totalorder %s19, 17
      %p126 = por %p124, %p125
      %p127 = scmp.ne.s32.totalorder %s118, %s119
      %p128 = scmp.eq.s32.totalorder %s19, 0
      %p129 = por %p127, %p128
      %p130 = scmp.ne.s32.totalorder %s118, %s119
      %p131 = scmp.eq.s32.totalorder %s20, 17
      %p132 = por %p130, %p131
      %p134 = scmp.ne.s32.totalorder %s119, %s133
      %p135 = scmp.eq.s32.totalorder %s20, 0
      %p136 = por %p134, %p135
      %s138 = sadd.s32 %s137, 1
      %p141 = scmp.eq.s32.totalorder %s14, 17
      %p142 = scmp.ne.s32.totalorder %s137, %s139
      %p143 = scmp.eq.s32.totalorder %s14, 0
      %p144 = por %p142, %p143
      %p145 = scmp.ne.s32.totalorder %s137, %s139
      %p146 = scmp.eq.s32.totalorder %s19, 17
      %p147 = por %p145, %p146
      %p148 = scmp.ne.s32.totalorder %s139, %s140
      %p149 = scmp.eq.s32.totalorder %s19, 0
      %p150 = por %p148, %p149
      %p151 = scmp.ne.s32.totalorder %s139, %s140
      %p152 = scmp.eq.s32.totalorder %s20, 17
      %p153 = por %p151, %p152
      %p155 = scmp.ne.s32.totalorder %s140, %s154
      %p156 = scmp.eq.s32.totalorder %s20, 0
      %p157 = por %p155, %p156
      %s159 = sadd.s32 %s158, 1
      %p162 = scmp.eq.s32.totalorder %s14, 17
      %p163 = scmp.ne.s32.totalorder %s158, %s160
      %p164 = scmp.eq.s32.totalorder %s14, 0
      %p165 = por %p163, %p164
      %p166 = scmp.ne.s32.totalorder %s158, %s160
      %p167 = scmp.eq.s32.totalorder %s19, 17
      %p168 = por %p166, %p167
      %p169 = scmp.ne.s32.totalorder %s160, %s161
      %p170 = scmp.eq.s32.totalorder %s19, 0
      %p171 = por %p169, %p170
      %p172 = scmp.ne.s32.totalorder %s160, %s161
      %p173 = scmp.eq.s32.totalorder %s20, 17
      %p174 = por %p172, %p173
      %p176 = scmp.ne.s32.totalorder %s161, %s175
      %p177 = scmp.eq.s32.totalorder %s20, 0
      %p178 = por %p176, %p177
      %s180 = sadd.s32 %s179, 1
      %p183 = scmp.eq.s32.totalorder %s14, 17
      %p184 = scmp.ne.s32.totalorder %s179, %s181
      %p185 = scmp.eq.s32.totalorder %s14, 0
      %p186 = por %p184, %p185
      %p187 = scmp.ne.s32.totalorder %s179, %s181
      %p188 = scmp.eq.s32.totalorder %s19, 17
      %p189 = por %p187, %p188
      %p190 = scmp.ne.s32.totalorder %s181, %s182
      %p191 = scmp.eq.s32.totalorder %s19, 0
      %p192 = por %p190, %p191
      %p193 = scmp.ne.s32.totalorder %s181, %s182
      %p194 = scmp.eq.s32.totalorder %s20, 17
      %p195 = por %p193, %p194
      %p197 = scmp.ne.s32.totalorder %s182, %s196
      %p198 = scmp.eq.s32.totalorder %s20, 0
      %p199 = por %p197, %p198
      %p200 = scmp.le.s32.totalorder 1, %s14
      %p201 = scmp.lt.s32.totalorder %s14, 19
      %p202 = pnand %p200, %p201
      %p203 = pneg %p202
      // Predicated region
      $region9: #{dfr_forward.1} parent=5 // pred_check
        _
      $region10: #{dfr_forward.1} parent=5 // pred_check_branch
        %205 = sbr.rel (%p202) target = $region12
      $region11: #{dfr_forward.1} parent=5 // pred_region
        %s206 = ssub.s32 %s14, 1
        // Predicated region
        $region13: #{dfr_forward.1} parent=11 // pred_check
          %p207 = pneg %p87
        $region14: #{dfr_forward.1} parent=11 // pred_check_branch
          %209 = sbr.rel (%p207) target = $region16
        $region15: #{dfr_forward.1} parent=11 // pred_region
          _
        $region16: #{dfr_forward.1} parent=11 // pred_fallthru
          _
        // Predicated region
        $region17: #{dfr_forward.1} parent=11 // pred_check
          %p210 = pneg %p108
        $region18: #{dfr_forward.1} parent=11 // pred_check_branch
          %212 = sbr.rel (%p210) target = $region20
        $region19: #{dfr_forward.1} parent=11 // pred_region
          _
        $region20: #{dfr_forward.1} parent=11 // pred_fallthru
          _
        // Predicated region
        $region21: #{dfr_forward.1} parent=11 // pred_check
          %p213 = pneg %p129
        $region22: #{dfr_forward.1} parent=11 // pred_check_branch
          %215 = sbr.rel (%p213) target = $region24
        $region23: #{dfr_forward.1} parent=11 // pred_region
          _
        $region24: #{dfr_forward.1} parent=11 // pred_fallthru
          _
        // Predicated region
        $region25: #{dfr_forward.1} parent=11 // pred_check
          %p216 = pneg %p150
        $region26: #{dfr_forward.1} parent=11 // pred_check_branch
          %218 = sbr.rel (%p216) target = $region28
        $region27: #{dfr_forward.1} parent=11 // pred_region
          _
        $region28: #{dfr_forward.1} parent=11 // pred_fallthru
          _
        // Predicated region
        $region29: #{dfr_forward.1} parent=11 // pred_check
          %p219 = pneg %p171
        $region30: #{dfr_forward.1} parent=11 // pred_check_branch
          %221 = sbr.rel (%p219) target = $region32
        $region31: #{dfr_forward.1} parent=11 // pred_region
          _
        $region32: #{dfr_forward.1} parent=11 // pred_fallthru
          _
      $region12: #{dfr_forward.1} parent=5 // pred_fallthru
        _
      %p222 = scmp.lt.s32.totalorder %s14, 18
      // Predicated region
      $region33: #{dfr_forward.1} parent=5 // pred_check
        %p223 = pneg %p222
      $region34: #{dfr_forward.1} parent=5 // pred_check_branch
        %225 = sbr.rel (%p223) target = $region36
      $region35: #{dfr_forward.1} parent=5 // pred_region
        // Predicated region
        $region37: #{dfr_forward.1} parent=35 // pred_check
          %p226 = pneg %p34
        $region38: #{dfr_forward.1} parent=35 // pred_check_branch
          %228 = sbr.rel (%p226) target = $region40
        $region39: #{dfr_forward.1} parent=35 // pred_region
          %s229 = smul.u32 4, %s14
          %p230 = scmp.lt.s32.totalorder %s229, 71
          %s231 = scalar_select %p230, %s229, 71
          %s232 = smul.addr %s231, 8
          %s233 = scalar_lea.vmem %s0, %s232
          %s234 = smul.u32 4, %s14
        $region40: #{dfr_forward.1} parent=35 // pred_fallthru
          _
        // Predicated region
        $region41: #{dfr_forward.1} parent=35 // pred_check
          %p235 = pneg %p60
        $region42: #{dfr_forward.1} parent=35 // pred_check_branch
          %237 = sbr.rel (%p235) target = $region44
        $region43: #{dfr_forward.1} parent=35 // pred_region
          %s238 = smul.u32 64, %s14
          %p239 = scmp.lt.s32.totalorder %s238, 1151
          %s240 = scalar_select %p239, %s238, 1151
          %s241 = smul.addr %s240, 8
          %s242 = smul.addr %s241, 8
          %s243 = scalar_lea.vmem %s1, %s242
          %s244 = smul.u32 64, %s14
        $region44: #{dfr_forward.1} parent=35 // pred_fallthru
          _
      $region36: #{dfr_forward.1} parent=5 // pred_fallthru
        _
      %p245 = scmp.le.s32.totalorder 1, %s14
      %p246 = scmp.lt.s32.totalorder %s14, 19
      %p247 = pnand %p245, %p246
      %p248 = pneg %p247
      // Predicated region
      $region45: #{dfr_forward.1} parent=5 // pred_check
        _
      $region46: #{dfr_forward.1} parent=5 // pred_check_branch
        %250 = sbr.rel (%p247) target = $region48
      $region47: #{dfr_forward.1} parent=5 // pred_region
        %s251 = ssub.s32 %s14, 1
        %s252 = smul.u32 4, %s19
        %p253 = scmp.lt.s32.totalorder %s252, 71
        %s254 = scalar_select %p253, %s252, 71
        %s255 = smul.addr %s254, 8
        %s256 = scalar_lea.vmem %s0, %s255
        %p257 = pneg %p40
        %p258 = pneg %p37
        %s259 = smul.u32 64, %s19
        %p260 = scmp.lt.s32.totalorder %s259, 1151
        %s261 = scalar_select %p260, %s259, 1151
        %s262 = smul.addr %s261, 8
        %s263 = smul.addr %s262, 8
        %s264 = scalar_lea.vmem %s1, %s263
        %p265 = pneg %p66
        %p266 = pneg %p63
        %p267 = pneg %p87
        %p268 = pneg %p84
        %p269 = pneg %p108
        %p270 = pneg %p105
        %p271 = pneg %p129
        %p272 = pneg %p126
        %p273 = pneg %p150
        %p274 = pneg %p147
        %p275 = pneg %p171
        %p276 = pneg %p168
        %p277 = pneg %p192
        %p278 = pneg %p189
        %s279 = smul.u32 4, %s19
        %p280 = scmp.lt.s32.totalorder %s279, 71
        %s281 = scalar_select %p280, %s279, 71
        %s282 = smul.addr %s281, 8
        %s283 = scalar_lea.vmem %s0, %s282
        %s284 = smul.u32 4, %s19
        %s285 = smul.u32 64, %s19
        %p286 = scmp.lt.s32.totalorder %s285, 1151
        %s287 = scalar_select %p286, %s285, 1151
        %s288 = smul.addr %s287, 8
        %s289 = smul.addr %s288, 8
        %s290 = scalar_lea.vmem %s1, %s289
        %s291 = smul.u32 64, %s19
        %p292 = scmp.eq.s32.totalorder %s19, 0
        // Predicated region
        $region49: #{dfr_forward.1} parent=47 // pred_check
          %p293 = pneg %p292
        $region50: #{dfr_forward.1} parent=47 // pred_check_branch
          %295 = sbr.rel (%p293) target = $region52
        $region51: #{dfr_forward.1} parent=47 // pred_region
          %296 = vst [vmem:[#allocation2] sm:$0xff] 0.0
          %297 = vst [vmem:[#allocation2 + $0x8] sm:$0xff] 0.0
          %298 = vst [vmem:[#allocation2 + $0x10] sm:$0xff] 0.0
          %299 = vst [vmem:[#allocation2 + $0x18] sm:$0xff] 0.0
          %300 = vst [vmem:[#allocation2 + $0x20] sm:$0xff] 0.0
          %301 = vst [vmem:[#allocation2 + $0x28] sm:$0xff] 0.0
          %302 = vst [vmem:[#allocation2 + $0x30] sm:$0xff] 0.0
          %303 = vst [vmem:[#allocation2 + $0x38] sm:$0xff] 0.0
        $region52: #{dfr_forward.1} parent=47 // pred_fallthru
          _
        %v304 = vld [vmem:[#allocation2] sm:$0xff]
        %v305 = vld [vmem:[#allocation2 + $0x8] sm:$0xff]
        %v306 = vld [vmem:[#allocation2 + $0x10] sm:$0xff]
        %v307 = vld [vmem:[#allocation2 + $0x18] sm:$0xff]
        %v308 = vld [vmem:[#allocation2 + $0x20] sm:$0xff]
        %v309 = vld [vmem:[#allocation2 + $0x28] sm:$0xff]
        %v310 = vld [vmem:[#allocation2 + $0x30] sm:$0xff]
        %v311 = vld [vmem:[#allocation2 + $0x38] sm:$0xff]
        %v312 = vld [vmem:[%s283] sm:$0xff]
        %v313 = vld [vmem:[%s283 + $0x8] sm:$0xff]
        %v314 = vld [vmem:[%s283 + $0x10] sm:$0xff]
        %v315 = vld [vmem:[%s283 + $0x18] sm:$0xff]
        %v316 = vld [vmem:[%s290] sm:$0xff]
        %v317 = vld [vmem:[%s290 + $0x8] sm:$0xff]
        %v318 = vld [vmem:[%s290 + $0x10] sm:$0xff]
        %v319 = vld [vmem:[%s290 + $0x18] sm:$0xff]
        %v320 = vld [vmem:[%s290 + $0x20] sm:$0xff]
        %v321 = vld [vmem:[%s290 + $0x28] sm:$0xff]
        %v322 = vld [vmem:[%s290 + $0x30] sm:$0xff]
        %v323 = vld [vmem:[%s290 + $0x38] sm:$0xff]
        %v324 = vld [vmem:[%s290 + $0x40] sm:$0xff]
        %v325 = vld [vmem:[%s290 + $0x48] sm:$0xff]
        %v326 = vld [vmem:[%s290 + $0x50] sm:$0xff]
        %v327 = vld [vmem:[%s290 + $0x58] sm:$0xff]
        %v328 = vld [vmem:[%s290 + $0x60] sm:$0xff]
        %v329 = vld [vmem:[%s290 + $0x68] sm:$0xff]
        %v330 = vld [vmem:[%s290 + $0x70] sm:$0xff]
        %v331 = vld [vmem:[%s290 + $0x78] sm:$0xff]
        %v332 = vld [vmem:[%s290 + $0x80] sm:$0xff]
        %v333 = vld [vmem:[%s290 + $0x88] sm:$0xff]
        %v334 = vld [vmem:[%s290 + $0x90] sm:$0xff]
        %v335 = vld [vmem:[%s290 + $0x98] sm:$0xff]
        %v336 = vld [vmem:[%s290 + $0xa0] sm:$0xff]
        %v337 = vld [vmem:[%s290 + $0xa8] sm:$0xff]
        %v338 = vld [vmem:[%s290 + $0xb0] sm:$0xff]
        %v339 = vld [vmem:[%s290 + $0xb8] sm:$0xff]
        %v340 = vld [vmem:[%s290 + $0xc0] sm:$0xff]
        %v341 = vld [vmem:[%s290 + $0xc8] sm:$0xff]
        %v342 = vld [vmem:[%s290 + $0xd0] sm:$0xff]
        %v343 = vld [vmem:[%s290 + $0xd8] sm:$0xff]
        %v344 = vld [vmem:[%s290 + $0xe0] sm:$0xff]
        %v345 = vld [vmem:[%s290 + $0xe8] sm:$0xff]
        %v346 = vld [vmem:[%s290 + $0xf0] sm:$0xff]
        %v347 = vld [vmem:[%s290 + $0xf8] sm:$0xff]
        %v348 = vld [vmem:[%s290 + $0x100] sm:$0xff]
        %v349 = vld [vmem:[%s290 + $0x108] sm:$0xff]
        %v350 = vld [vmem:[%s290 + $0x110] sm:$0xff]
        %v351 = vld [vmem:[%s290 + $0x118] sm:$0xff]
        %v352 = vld [vmem:[%s290 + $0x120] sm:$0xff]
        %v353 = vld [vmem:[%s290 + $0x128] sm:$0xff]
        %v354 = vld [vmem:[%s290 + $0x130] sm:$0xff]
        %v355 = vld [vmem:[%s290 + $0x138] sm:$0xff]
        %v356 = vld [vmem:[%s290 + $0x140] sm:$0xff]
        %v357 = vld [vmem:[%s290 + $0x148] sm:$0xff]
        %v358 = vld [vmem:[%s290 + $0x150] sm:$0xff]
        %v359 = vld [vmem:[%s290 + $0x158] sm:$0xff]
        %v360 = vld [vmem:[%s290 + $0x160] sm:$0xff]
        %v361 = vld [vmem:[%s290 + $0x168] sm:$0xff]
        %v362 = vld [vmem:[%s290 + $0x170] sm:$0xff]
        %v363 = vld [vmem:[%s290 + $0x178] sm:$0xff]
        %v364 = vld [vmem:[%s290 + $0x180] sm:$0xff]
        %v365 = vld [vmem:[%s290 + $0x188] sm:$0xff]
        %v366 = vld [vmem:[%s290 + $0x190] sm:$0xff]
        %v367 = vld [vmem:[%s290 + $0x198] sm:$0xff]
        %v368 = vld [vmem:[%s290 + $0x1a0] sm:$0xff]
        %v369 = vld [vmem:[%s290 + $0x1a8] sm:$0xff]
        %v370 = vld [vmem:[%s290 + $0x1b0] sm:$0xff]
        %v371 = vld [vmem:[%s290 + $0x1b8] sm:$0xff]
        %v372 = vld [vmem:[%s290 + $0x1c0] sm:$0xff]
        %v373 = vld [vmem:[%s290 + $0x1c8] sm:$0xff]
        %v374 = vld [vmem:[%s290 + $0x1d0] sm:$0xff]
        %v375 = vld [vmem:[%s290 + $0x1d8] sm:$0xff]
        %v376 = vld [vmem:[%s290 + $0x1e0] sm:$0xff]
        %v377 = vld [vmem:[%s290 + $0x1e8] sm:$0xff]
        %v378 = vld [vmem:[%s290 + $0x1f0] sm:$0xff]
        %v379 = vld [vmem:[%s290 + $0x1f8] sm:$0xff]
        %v380 = vld [vmem:[%s290 + $0x200] sm:$0xff]
        %v381 = vld [vmem:[%s290 + $0x208] sm:$0xff]
        %v382 = vld [vmem:[%s290 + $0x210] sm:$0xff]
        %v383 = vld [vmem:[%s290 + $0x218] sm:$0xff]
        %v384 = vld [vmem:[%s290 + $0x220] sm:$0xff]
        %v385 = vld [vmem:[%s290 + $0x228] sm:$0xff]
        %v386 = vld [vmem:[%s290 + $0x230] sm:$0xff]
        %v387 = vld [vmem:[%s290 + $0x238] sm:$0xff]
        %v388 = vld [vmem:[%s290 + $0x240] sm:$0xff]
        %v389 = vld [vmem:[%s290 + $0x248] sm:$0xff]
        %v390 = vld [vmem:[%s290 + $0x250] sm:$0xff]
        %v391 = vld [vmem:[%s290 + $0x258] sm:$0xff]
        %v392 = vld [vmem:[%s290 + $0x260] sm:$0xff]
        %v393 = vld [vmem:[%s290 + $0x268] sm:$0xff]
        %v394 = vld [vmem:[%s290 + $0x270] sm:$0xff]
        %v395 = vld [vmem:[%s290 + $0x278] sm:$0xff]
        %v396 = vld [vmem:[%s290 + $0x280] sm:$0xff]
        %v397 = vld [vmem:[%s290 + $0x288] sm:$0xff]
        %v398 = vld [vmem:[%s290 + $0x290] sm:$0xff]
        %v399 = vld [vmem:[%s290 + $0x298] sm:$0xff]
        %v400 = vld [vmem:[%s290 + $0x2a0] sm:$0xff]
        %v401 = vld [vmem:[%s290 + $0x2a8] sm:$0xff]
        %v402 = vld [vmem:[%s290 + $0x2b0] sm:$0xff]
        %v403 = vld [vmem:[%s290 + $0x2b8] sm:$0xff]
        %v404 = vld [vmem:[%s290 + $0x2c0] sm:$0xff]
        %v405 = vld [vmem:[%s290 + $0x2c8] sm:$0xff]
        %v406 = vld [vmem:[%s290 + $0x2d0] sm:$0xff]
        %v407 = vld [vmem:[%s290 + $0x2d8] sm:$0xff]
        %v408 = vld [vmem:[%s290 + $0x2e0] sm:$0xff]
        %v409 = vld [vmem:[%s290 + $0x2e8] sm:$0xff]
        %v410 = vld [vmem:[%s290 + $0x2f0] sm:$0xff]
        %v411 = vld [vmem:[%s290 + $0x2f8] sm:$0xff]
        %v412 = vld [vmem:[%s290 + $0x300] sm:$0xff]
        %v413 = vld [vmem:[%s290 + $0x308] sm:$0xff]
        %v414 = vld [vmem:[%s290 + $0x310] sm:$0xff]
        %v415 = vld [vmem:[%s290 + $0x318] sm:$0xff]
        %v416 = vld [vmem:[%s290 + $0x320] sm:$0xff]
        %v417 = vld [vmem:[%s290 + $0x328] sm:$0xff]
        %v418 = vld [vmem:[%s290 + $0x330] sm:$0xff]
        %v419 = vld [vmem:[%s290 + $0x338] sm:$0xff]
        %v420 = vld [vmem:[%s290 + $0x340] sm:$0xff]
        %v421 = vld [vmem:[%s290 + $0x348] sm:$0xff]
        %v422 = vld [vmem:[%s290 + $0x350] sm:$0xff]
        %v423 = vld [vmem:[%s290 + $0x358] sm:$0xff]
        %v424 = vld [vmem:[%s290 + $0x360] sm:$0xff]
        %v425 = vld [vmem:[%s290 + $0x368] sm:$0xff]
        %v426 = vld [vmem:[%s290 + $0x370] sm:$0xff]
        %v427 = vld [vmem:[%s290 + $0x378] sm:$0xff]
        %v428 = vld [vmem:[%s290 + $0x380] sm:$0xff]
        %v429 = vld [vmem:[%s290 + $0x388] sm:$0xff]
        %v430 = vld [vmem:[%s290 + $0x390] sm:$0xff]
        %v431 = vld [vmem:[%s290 + $0x398] sm:$0xff]
        %v432 = vld [vmem:[%s290 + $0x3a0] sm:$0xff]
        %v433 = vld [vmem:[%s290 + $0x3a8] sm:$0xff]
        %v434 = vld [vmem:[%s290 + $0x3b0] sm:$0xff]
        %v435 = vld [vmem:[%s290 + $0x3b8] sm:$0xff]
        %v436 = vld [vmem:[%s290 + $0x3c0] sm:$0xff]
        %v437 = vld [vmem:[%s290 + $0x3c8] sm:$0xff]
        %v438 = vld [vmem:[%s290 + $0x3d0] sm:$0xff]
        %v439 = vld [vmem:[%s290 + $0x3d8] sm:$0xff]
        %v440 = vld [vmem:[%s290 + $0x3e0] sm:$0xff]
        %v441 = vld [vmem:[%s290 + $0x3e8] sm:$0xff]
        %v442 = vld [vmem:[%s290 + $0x3f0] sm:$0xff]
        %v443 = vld [vmem:[%s290 + $0x3f8] sm:$0xff]
        %v444 = vld [vmem:[%s290 + $0x400] sm:$0xff]
        %v445 = vld [vmem:[%s290 + $0x408] sm:$0xff]
        %v446 = vld [vmem:[%s290 + $0x410] sm:$0xff]
        %v447 = vld [vmem:[%s290 + $0x418] sm:$0xff]
        %v448 = vld [vmem:[%s290 + $0x420] sm:$0xff]
        %v449 = vld [vmem:[%s290 + $0x428] sm:$0xff]
        %v450 = vld [vmem:[%s290 + $0x430] sm:$0xff]
        %v451 = vld [vmem:[%s290 + $0x438] sm:$0xff]
        %v452 = vld [vmem:[%s290 + $0x440] sm:$0xff]
        %v453 = vld [vmem:[%s290 + $0x448] sm:$0xff]
        %v454 = vld [vmem:[%s290 + $0x450] sm:$0xff]
        %v455 = vld [vmem:[%s290 + $0x458] sm:$0xff]
        %v456 = vld [vmem:[%s290 + $0x460] sm:$0xff]
        %v457 = vld [vmem:[%s290 + $0x468] sm:$0xff]
        %v458 = vld [vmem:[%s290 + $0x470] sm:$0xff]
        %v459 = vld [vmem:[%s290 + $0x478] sm:$0xff]
        %v460 = vld [vmem:[%s290 + $0x480] sm:$0xff]
        %v461 = vld [vmem:[%s290 + $0x488] sm:$0xff]
        %v462 = vld [vmem:[%s290 + $0x490] sm:$0xff]
        %v463 = vld [vmem:[%s290 + $0x498] sm:$0xff]
        %v464 = vld [vmem:[%s290 + $0x4a0] sm:$0xff]
        %v465 = vld [vmem:[%s290 + $0x4a8] sm:$0xff]
        %v466 = vld [vmem:[%s290 + $0x4b0] sm:$0xff]
        %v467 = vld [vmem:[%s290 + $0x4b8] sm:$0xff]
        %v468 = vld [vmem:[%s290 + $0x4c0] sm:$0xff]
        %v469 = vld [vmem:[%s290 + $0x4c8] sm:$0xff]
        %v470 = vld [vmem:[%s290 + $0x4d0] sm:$0xff]
        %v471 = vld [vmem:[%s290 + $0x4d8] sm:$0xff]
        %v472 = vld [vmem:[%s290 + $0x4e0] sm:$0xff]
        %v473 = vld [vmem:[%s290 + $0x4e8] sm:$0xff]
        %v474 = vld [vmem:[%s290 + $0x4f0] sm:$0xff]
        %v475 = vld [vmem:[%s290 + $0x4f8] sm:$0xff]
        %v476 = vld [vmem:[%s290 + $0x500] sm:$0xff]
        %v477 = vld [vmem:[%s290 + $0x508] sm:$0xff]
        %v478 = vld [vmem:[%s290 + $0x510] sm:$0xff]
        %v479 = vld [vmem:[%s290 + $0x518] sm:$0xff]
        %v480 = vld [vmem:[%s290 + $0x520] sm:$0xff]
        %v481 = vld [vmem:[%s290 + $0x528] sm:$0xff]
        %v482 = vld [vmem:[%s290 + $0x530] sm:$0xff]
        %v483 = vld [vmem:[%s290 + $0x538] sm:$0xff]
        %v484 = vld [vmem:[%s290 + $0x540] sm:$0xff]
        %v485 = vld [vmem:[%s290 + $0x548] sm:$0xff]
        %v486 = vld [vmem:[%s290 + $0x550] sm:$0xff]
        %v487 = vld [vmem:[%s290 + $0x558] sm:$0xff]
        %v488 = vld [vmem:[%s290 + $0x560] sm:$0xff]
        %v489 = vld [vmem:[%s290 + $0x568] sm:$0xff]
        %v490 = vld [vmem:[%s290 + $0x570] sm:$0xff]
        %v491 = vld [vmem:[%s290 + $0x578] sm:$0xff]
        %v492 = vld [vmem:[%s290 + $0x580] sm:$0xff]
        %v493 = vld [vmem:[%s290 + $0x588] sm:$0xff]
        %v494 = vld [vmem:[%s290 + $0x590] sm:$0xff]
        %v495 = vld [vmem:[%s290 + $0x598] sm:$0xff]
        %v496 = vld [vmem:[%s290 + $0x5a0] sm:$0xff]
        %v497 = vld [vmem:[%s290 + $0x5a8] sm:$0xff]
        %v498 = vld [vmem:[%s290 + $0x5b0] sm:$0xff]
        %v499 = vld [vmem:[%s290 + $0x5b8] sm:$0xff]
        %v500 = vld [vmem:[%s290 + $0x5c0] sm:$0xff]
        %v501 = vld [vmem:[%s290 + $0x5c8] sm:$0xff]
        %v502 = vld [vmem:[%s290 + $0x5d0] sm:$0xff]
        %v503 = vld [vmem:[%s290 + $0x5d8] sm:$0xff]
        %v504 = vld [vmem:[%s290 + $0x5e0] sm:$0xff]
        %v505 = vld [vmem:[%s290 + $0x5e8] sm:$0xff]
        %v506 = vld [vmem:[%s290 + $0x5f0] sm:$0xff]
        %v507 = vld [vmem:[%s290 + $0x5f8] sm:$0xff]
        %v508 = vld [vmem:[%s290 + $0x600] sm:$0xff]
        %v509 = vld [vmem:[%s290 + $0x608] sm:$0xff]
        %v510 = vld [vmem:[%s290 + $0x610] sm:$0xff]
        %v511 = vld [vmem:[%s290 + $0x618] sm:$0xff]
        %v512 = vld [vmem:[%s290 + $0x620] sm:$0xff]
        %v513 = vld [vmem:[%s290 + $0x628] sm:$0xff]
        %v514 = vld [vmem:[%s290 + $0x630] sm:$0xff]
        %v515 = vld [vmem:[%s290 + $0x638] sm:$0xff]
        %v516 = vld [vmem:[%s290 + $0x640] sm:$0xff]
        %v517 = vld [vmem:[%s290 + $0x648] sm:$0xff]
        %v518 = vld [vmem:[%s290 + $0x650] sm:$0xff]
        %v519 = vld [vmem:[%s290 + $0x658] sm:$0xff]
        %v520 = vld [vmem:[%s290 + $0x660] sm:$0xff]
        %v521 = vld [vmem:[%s290 + $0x668] sm:$0xff]
        %v522 = vld [vmem:[%s290 + $0x670] sm:$0xff]
        %v523 = vld [vmem:[%s290 + $0x678] sm:$0xff]
        %v524 = vld [vmem:[%s290 + $0x680] sm:$0xff]
        %v525 = vld [vmem:[%s290 + $0x688] sm:$0xff]
        %v526 = vld [vmem:[%s290 + $0x690] sm:$0xff]
        %v527 = vld [vmem:[%s290 + $0x698] sm:$0xff]
        %v528 = vld [vmem:[%s290 + $0x6a0] sm:$0xff]
        %v529 = vld [vmem:[%s290 + $0x6a8] sm:$0xff]
        %v530 = vld [vmem:[%s290 + $0x6b0] sm:$0xff]
        %v531 = vld [vmem:[%s290 + $0x6b8] sm:$0xff]
        %v532 = vld [vmem:[%s290 + $0x6c0] sm:$0xff]
        %v533 = vld [vmem:[%s290 + $0x6c8] sm:$0xff]
        %v534 = vld [vmem:[%s290 + $0x6d0] sm:$0xff]
        %v535 = vld [vmem:[%s290 + $0x6d8] sm:$0xff]
        %v536 = vld [vmem:[%s290 + $0x6e0] sm:$0xff]
        %v537 = vld [vmem:[%s290 + $0x6e8] sm:$0xff]
        %v538 = vld [vmem:[%s290 + $0x6f0] sm:$0xff]
        %v539 = vld [vmem:[%s290 + $0x6f8] sm:$0xff]
        %v540 = vld [vmem:[%s290 + $0x700] sm:$0xff]
        %v541 = vld [vmem:[%s290 + $0x708] sm:$0xff]
        %v542 = vld [vmem:[%s290 + $0x710] sm:$0xff]
        %v543 = vld [vmem:[%s290 + $0x718] sm:$0xff]
        %v544 = vld [vmem:[%s290 + $0x720] sm:$0xff]
        %v545 = vld [vmem:[%s290 + $0x728] sm:$0xff]
        %v546 = vld [vmem:[%s290 + $0x730] sm:$0xff]
        %v547 = vld [vmem:[%s290 + $0x738] sm:$0xff]
        %v548 = vld [vmem:[%s290 + $0x740] sm:$0xff]
        %v549 = vld [vmem:[%s290 + $0x748] sm:$0xff]
        %v550 = vld [vmem:[%s290 + $0x750] sm:$0xff]
        %v551 = vld [vmem:[%s290 + $0x758] sm:$0xff]
        %v552 = vld [vmem:[%s290 + $0x760] sm:$0xff]
        %v553 = vld [vmem:[%s290 + $0x768] sm:$0xff]
        %v554 = vld [vmem:[%s290 + $0x770] sm:$0xff]
        %v555 = vld [vmem:[%s290 + $0x778] sm:$0xff]
        %v556 = vld [vmem:[%s290 + $0x780] sm:$0xff]
        %v557 = vld [vmem:[%s290 + $0x788] sm:$0xff]
        %v558 = vld [vmem:[%s290 + $0x790] sm:$0xff]
        %v559 = vld [vmem:[%s290 + $0x798] sm:$0xff]
        %v560 = vld [vmem:[%s290 + $0x7a0] sm:$0xff]
        %v561 = vld [vmem:[%s290 + $0x7a8] sm:$0xff]
        %v562 = vld [vmem:[%s290 + $0x7b0] sm:$0xff]
        %v563 = vld [vmem:[%s290 + $0x7b8] sm:$0xff]
        %v564 = vld [vmem:[%s290 + $0x7c0] sm:$0xff]
        %v565 = vld [vmem:[%s290 + $0x7c8] sm:$0xff]
        %v566 = vld [vmem:[%s290 + $0x7d0] sm:$0xff]
        %v567 = vld [vmem:[%s290 + $0x7d8] sm:$0xff]
        %v568 = vld [vmem:[%s290 + $0x7e0] sm:$0xff]
        %v569 = vld [vmem:[%s290 + $0x7e8] sm:$0xff]
        %v570 = vld [vmem:[%s290 + $0x7f0] sm:$0xff]
        %v571 = vld [vmem:[%s290 + $0x7f8] sm:$0xff]
        %v572 = vld [vmem:[%s290 + $0x800] sm:$0xff]
        %v573 = vld [vmem:[%s290 + $0x808] sm:$0xff]
        %v574 = vld [vmem:[%s290 + $0x810] sm:$0xff]
        %v575 = vld [vmem:[%s290 + $0x818] sm:$0xff]
        %v576 = vld [vmem:[%s290 + $0x820] sm:$0xff]
        %v577 = vld [vmem:[%s290 + $0x828] sm:$0xff]
        %v578 = vld [vmem:[%s290 + $0x830] sm:$0xff]
        %v579 = vld [vmem:[%s290 + $0x838] sm:$0xff]
        %v580 = vld [vmem:[%s290 + $0x840] sm:$0xff]
        %v581 = vld [vmem:[%s290 + $0x848] sm:$0xff]
        %v582 = vld [vmem:[%s290 + $0x850] sm:$0xff]
        %v583 = vld [vmem:[%s290 + $0x858] sm:$0xff]
        %v584 = vld [vmem:[%s290 + $0x860] sm:$0xff]
        %v585 = vld [vmem:[%s290 + $0x868] sm:$0xff]
        %v586 = vld [vmem:[%s290 + $0x870] sm:$0xff]
        %v587 = vld [vmem:[%s290 + $0x878] sm:$0xff]
        %v588 = vld [vmem:[%s290 + $0x880] sm:$0xff]
        %v589 = vld [vmem:[%s290 + $0x888] sm:$0xff]
        %v590 = vld [vmem:[%s290 + $0x890] sm:$0xff]
        %v591 = vld [vmem:[%s290 + $0x898] sm:$0xff]
        %v592 = vld [vmem:[%s290 + $0x8a0] sm:$0xff]
        %v593 = vld [vmem:[%s290 + $0x8a8] sm:$0xff]
        %v594 = vld [vmem:[%s290 + $0x8b0] sm:$0xff]
        %v595 = vld [vmem:[%s290 + $0x8b8] sm:$0xff]
        %v596 = vld [vmem:[%s290 + $0x8c0] sm:$0xff]
        %v597 = vld [vmem:[%s290 + $0x8c8] sm:$0xff]
        %v598 = vld [vmem:[%s290 + $0x8d0] sm:$0xff]
        %v599 = vld [vmem:[%s290 + $0x8d8] sm:$0xff]
        %v600 = vld [vmem:[%s290 + $0x8e0] sm:$0xff]
        %v601 = vld [vmem:[%s290 + $0x8e8] sm:$0xff]
        %v602 = vld [vmem:[%s290 + $0x8f0] sm:$0xff]
        %v603 = vld [vmem:[%s290 + $0x8f8] sm:$0xff]
        %v604 = vld [vmem:[%s290 + $0x900] sm:$0xff]
        %v605 = vld [vmem:[%s290 + $0x908] sm:$0xff]
        %v606 = vld [vmem:[%s290 + $0x910] sm:$0xff]
        %v607 = vld [vmem:[%s290 + $0x918] sm:$0xff]
        %v608 = vld [vmem:[%s290 + $0x920] sm:$0xff]
        %v609 = vld [vmem:[%s290 + $0x928] sm:$0xff]
        %v610 = vld [vmem:[%s290 + $0x930] sm:$0xff]
        %v611 = vld [vmem:[%s290 + $0x938] sm:$0xff]
        %v612 = vld [vmem:[%s290 + $0x940] sm:$0xff]
        %v613 = vld [vmem:[%s290 + $0x948] sm:$0xff]
        %v614 = vld [vmem:[%s290 + $0x950] sm:$0xff]
        %v615 = vld [vmem:[%s290 + $0x958] sm:$0xff]
        %v616 = vld [vmem:[%s290 + $0x960] sm:$0xff]
        %v617 = vld [vmem:[%s290 + $0x968] sm:$0xff]
        %v618 = vld [vmem:[%s290 + $0x970] sm:$0xff]
        %v619 = vld [vmem:[%s290 + $0x978] sm:$0xff]
        %v620 = vld [vmem:[%s290 + $0x980] sm:$0xff]
        %v621 = vld [vmem:[%s290 + $0x988] sm:$0xff]
        %v622 = vld [vmem:[%s290 + $0x990] sm:$0xff]
        %v623 = vld [vmem:[%s290 + $0x998] sm:$0xff]
        %v624 = vld [vmem:[%s290 + $0x9a0] sm:$0xff]
        %v625 = vld [vmem:[%s290 + $0x9a8] sm:$0xff]
        %v626 = vld [vmem:[%s290 + $0x9b0] sm:$0xff]
        %v627 = vld [vmem:[%s290 + $0x9b8] sm:$0xff]
        %v628 = vld [vmem:[%s290 + $0x9c0] sm:$0xff]
        %v629 = vld [vmem:[%s290 + $0x9c8] sm:$0xff]
        %v630 = vld [vmem:[%s290 + $0x9d0] sm:$0xff]
        %v631 = vld [vmem:[%s290 + $0x9d8] sm:$0xff]
        %v632 = vld [vmem:[%s290 + $0x9e0] sm:$0xff]
        %v633 = vld [vmem:[%s290 + $0x9e8] sm:$0xff]
        %v634 = vld [vmem:[%s290 + $0x9f0] sm:$0xff]
        %v635 = vld [vmem:[%s290 + $0x9f8] sm:$0xff]
        %v636 = vld [vmem:[%s290 + $0xa00] sm:$0xff]
        %v637 = vld [vmem:[%s290 + $0xa08] sm:$0xff]
        %v638 = vld [vmem:[%s290 + $0xa10] sm:$0xff]
        %v639 = vld [vmem:[%s290 + $0xa18] sm:$0xff]
        %v640 = vld [vmem:[%s290 + $0xa20] sm:$0xff]
        %v641 = vld [vmem:[%s290 + $0xa28] sm:$0xff]
        %v642 = vld [vmem:[%s290 + $0xa30] sm:$0xff]
        %v643 = vld [vmem:[%s290 + $0xa38] sm:$0xff]
        %v644 = vld [vmem:[%s290 + $0xa40] sm:$0xff]
        %v645 = vld [vmem:[%s290 + $0xa48] sm:$0xff]
        %v646 = vld [vmem:[%s290 + $0xa50] sm:$0xff]
        %v647 = vld [vmem:[%s290 + $0xa58] sm:$0xff]
        %v648 = vld [vmem:[%s290 + $0xa60] sm:$0xff]
        %v649 = vld [vmem:[%s290 + $0xa68] sm:$0xff]
        %v650 = vld [vmem:[%s290 + $0xa70] sm:$0xff]
        %v651 = vld [vmem:[%s290 + $0xa78] sm:$0xff]
        %v652 = vld [vmem:[%s290 + $0xa80] sm:$0xff]
        %v653 = vld [vmem:[%s290 + $0xa88] sm:$0xff]
        %v654 = vld [vmem:[%s290 + $0xa90] sm:$0xff]
        %v655 = vld [vmem:[%s290 + $0xa98] sm:$0xff]
        %v656 = vld [vmem:[%s290 + $0xaa0] sm:$0xff]
        %v657 = vld [vmem:[%s290 + $0xaa8] sm:$0xff]
        %v658 = vld [vmem:[%s290 + $0xab0] sm:$0xff]
        %v659 = vld [vmem:[%s290 + $0xab8] sm:$0xff]
        %v660 = vld [vmem:[%s290 + $0xac0] sm:$0xff]
        %v661 = vld [vmem:[%s290 + $0xac8] sm:$0xff]
        %v662 = vld [vmem:[%s290 + $0xad0] sm:$0xff]
        %v663 = vld [vmem:[%s290 + $0xad8] sm:$0xff]
        %v664 = vld [vmem:[%s290 + $0xae0] sm:$0xff]
        %v665 = vld [vmem:[%s290 + $0xae8] sm:$0xff]
        %v666 = vld [vmem:[%s290 + $0xaf0] sm:$0xff]
        %v667 = vld [vmem:[%s290 + $0xaf8] sm:$0xff]
        %v668 = vld [vmem:[%s290 + $0xb00] sm:$0xff]
        %v669 = vld [vmem:[%s290 + $0xb08] sm:$0xff]
        %v670 = vld [vmem:[%s290 + $0xb10] sm:$0xff]
        %v671 = vld [vmem:[%s290 + $0xb18] sm:$0xff]
        %v672 = vld [vmem:[%s290 + $0xb20] sm:$0xff]
        %v673 = vld [vmem:[%s290 + $0xb28] sm:$0xff]
        %v674 = vld [vmem:[%s290 + $0xb30] sm:$0xff]
        %v675 = vld [vmem:[%s290 + $0xb38] sm:$0xff]
        %v676 = vld [vmem:[%s290 + $0xb40] sm:$0xff]
        %v677 = vld [vmem:[%s290 + $0xb48] sm:$0xff]
        %v678 = vld [vmem:[%s290 + $0xb50] sm:$0xff]
        %v679 = vld [vmem:[%s290 + $0xb58] sm:$0xff]
        %v680 = vld [vmem:[%s290 + $0xb60] sm:$0xff]
        %v681 = vld [vmem:[%s290 + $0xb68] sm:$0xff]
        %v682 = vld [vmem:[%s290 + $0xb70] sm:$0xff]
        %v683 = vld [vmem:[%s290 + $0xb78] sm:$0xff]
        %v684 = vld [vmem:[%s290 + $0xb80] sm:$0xff]
        %v685 = vld [vmem:[%s290 + $0xb88] sm:$0xff]
        %v686 = vld [vmem:[%s290 + $0xb90] sm:$0xff]
        %v687 = vld [vmem:[%s290 + $0xb98] sm:$0xff]
        %v688 = vld [vmem:[%s290 + $0xba0] sm:$0xff]
        %v689 = vld [vmem:[%s290 + $0xba8] sm:$0xff]
        %v690 = vld [vmem:[%s290 + $0xbb0] sm:$0xff]
        %v691 = vld [vmem:[%s290 + $0xbb8] sm:$0xff]
        %v692 = vld [vmem:[%s290 + $0xbc0] sm:$0xff]
        %v693 = vld [vmem:[%s290 + $0xbc8] sm:$0xff]
        %v694 = vld [vmem:[%s290 + $0xbd0] sm:$0xff]
        %v695 = vld [vmem:[%s290 + $0xbd8] sm:$0xff]
        %v696 = vld [vmem:[%s290 + $0xbe0] sm:$0xff]
        %v697 = vld [vmem:[%s290 + $0xbe8] sm:$0xff]
        %v698 = vld [vmem:[%s290 + $0xbf0] sm:$0xff]
        %v699 = vld [vmem:[%s290 + $0xbf8] sm:$0xff]
        %v700 = vld [vmem:[%s290 + $0xc00] sm:$0xff]
        %v701 = vld [vmem:[%s290 + $0xc08] sm:$0xff]
        %v702 = vld [vmem:[%s290 + $0xc10] sm:$0xff]
        %v703 = vld [vmem:[%s290 + $0xc18] sm:$0xff]
        %v704 = vld [vmem:[%s290 + $0xc20] sm:$0xff]
        %v705 = vld [vmem:[%s290 + $0xc28] sm:$0xff]
        %v706 = vld [vmem:[%s290 + $0xc30] sm:$0xff]
        %v707 = vld [vmem:[%s290 + $0xc38] sm:$0xff]
        %v708 = vld [vmem:[%s290 + $0xc40] sm:$0xff]
        %v709 = vld [vmem:[%s290 + $0xc48] sm:$0xff]
        %v710 = vld [vmem:[%s290 + $0xc50] sm:$0xff]
        %v711 = vld [vmem:[%s290 + $0xc58] sm:$0xff]
        %v712 = vld [vmem:[%s290 + $0xc60] sm:$0xff]
        %v713 = vld [vmem:[%s290 + $0xc68] sm:$0xff]
        %v714 = vld [vmem:[%s290 + $0xc70] sm:$0xff]
        %v715 = vld [vmem:[%s290 + $0xc78] sm:$0xff]
        %v716 = vld [vmem:[%s290 + $0xc80] sm:$0xff]
        %v717 = vld [vmem:[%s290 + $0xc88] sm:$0xff]
        %v718 = vld [vmem:[%s290 + $0xc90] sm:$0xff]
        %v719 = vld [vmem:[%s290 + $0xc98] sm:$0xff]
        %v720 = vld [vmem:[%s290 + $0xca0] sm:$0xff]
        %v721 = vld [vmem:[%s290 + $0xca8] sm:$0xff]
        %v722 = vld [vmem:[%s290 + $0xcb0] sm:$0xff]
        %v723 = vld [vmem:[%s290 + $0xcb8] sm:$0xff]
        %v724 = vld [vmem:[%s290 + $0xcc0] sm:$0xff]
        %v725 = vld [vmem:[%s290 + $0xcc8] sm:$0xff]
        %v726 = vld [vmem:[%s290 + $0xcd0] sm:$0xff]
        %v727 = vld [vmem:[%s290 + $0xcd8] sm:$0xff]
        %v728 = vld [vmem:[%s290 + $0xce0] sm:$0xff]
        %v729 = vld [vmem:[%s290 + $0xce8] sm:$0xff]
        %v730 = vld [vmem:[%s290 + $0xcf0] sm:$0xff]
        %v731 = vld [vmem:[%s290 + $0xcf8] sm:$0xff]
        %v732 = vld [vmem:[%s290 + $0xd00] sm:$0xff]
        %v733 = vld [vmem:[%s290 + $0xd08] sm:$0xff]
        %v734 = vld [vmem:[%s290 + $0xd10] sm:$0xff]
        %v735 = vld [vmem:[%s290 + $0xd18] sm:$0xff]
        %v736 = vld [vmem:[%s290 + $0xd20] sm:$0xff]
        %v737 = vld [vmem:[%s290 + $0xd28] sm:$0xff]
        %v738 = vld [vmem:[%s290 + $0xd30] sm:$0xff]
        %v739 = vld [vmem:[%s290 + $0xd38] sm:$0xff]
        %v740 = vld [vmem:[%s290 + $0xd40] sm:$0xff]
        %v741 = vld [vmem:[%s290 + $0xd48] sm:$0xff]
        %v742 = vld [vmem:[%s290 + $0xd50] sm:$0xff]
        %v743 = vld [vmem:[%s290 + $0xd58] sm:$0xff]
        %v744 = vld [vmem:[%s290 + $0xd60] sm:$0xff]
        %v745 = vld [vmem:[%s290 + $0xd68] sm:$0xff]
        %v746 = vld [vmem:[%s290 + $0xd70] sm:$0xff]
        %v747 = vld [vmem:[%s290 + $0xd78] sm:$0xff]
        %v748 = vld [vmem:[%s290 + $0xd80] sm:$0xff]
        %v749 = vld [vmem:[%s290 + $0xd88] sm:$0xff]
        %v750 = vld [vmem:[%s290 + $0xd90] sm:$0xff]
        %v751 = vld [vmem:[%s290 + $0xd98] sm:$0xff]
        %v752 = vld [vmem:[%s290 + $0xda0] sm:$0xff]
        %v753 = vld [vmem:[%s290 + $0xda8] sm:$0xff]
        %v754 = vld [vmem:[%s290 + $0xdb0] sm:$0xff]
        %v755 = vld [vmem:[%s290 + $0xdb8] sm:$0xff]
        %v756 = vld [vmem:[%s290 + $0xdc0] sm:$0xff]
        %v757 = vld [vmem:[%s290 + $0xdc8] sm:$0xff]
        %v758 = vld [vmem:[%s290 + $0xdd0] sm:$0xff]
        %v759 = vld [vmem:[%s290 + $0xdd8] sm:$0xff]
        %v760 = vld [vmem:[%s290 + $0xde0] sm:$0xff]
        %v761 = vld [vmem:[%s290 + $0xde8] sm:$0xff]
        %v762 = vld [vmem:[%s290 + $0xdf0] sm:$0xff]
        %v763 = vld [vmem:[%s290 + $0xdf8] sm:$0xff]
        %v764 = vld [vmem:[%s290 + $0xe00] sm:$0xff]
        %v765 = vld [vmem:[%s290 + $0xe08] sm:$0xff]
        %v766 = vld [vmem:[%s290 + $0xe10] sm:$0xff]
        %v767 = vld [vmem:[%s290 + $0xe18] sm:$0xff]
        %v768 = vld [vmem:[%s290 + $0xe20] sm:$0xff]
        %v769 = vld [vmem:[%s290 + $0xe28] sm:$0xff]
        %v770 = vld [vmem:[%s290 + $0xe30] sm:$0xff]
        %v771 = vld [vmem:[%s290 + $0xe38] sm:$0xff]
        %v772 = vld [vmem:[%s290 + $0xe40] sm:$0xff]
        %v773 = vld [vmem:[%s290 + $0xe48] sm:$0xff]
        %v774 = vld [vmem:[%s290 + $0xe50] sm:$0xff]
        %v775 = vld [vmem:[%s290 + $0xe58] sm:$0xff]
        %v776 = vld [vmem:[%s290 + $0xe60] sm:$0xff]
        %v777 = vld [vmem:[%s290 + $0xe68] sm:$0xff]
        %v778 = vld [vmem:[%s290 + $0xe70] sm:$0xff]
        %v779 = vld [vmem:[%s290 + $0xe78] sm:$0xff]
        %v780 = vld [vmem:[%s290 + $0xe80] sm:$0xff]
        %v781 = vld [vmem:[%s290 + $0xe88] sm:$0xff]
        %v782 = vld [vmem:[%s290 + $0xe90] sm:$0xff]
        %v783 = vld [vmem:[%s290 + $0xe98] sm:$0xff]
        %v784 = vld [vmem:[%s290 + $0xea0] sm:$0xff]
        %v785 = vld [vmem:[%s290 + $0xea8] sm:$0xff]
        %v786 = vld [vmem:[%s290 + $0xeb0] sm:$0xff]
        %v787 = vld [vmem:[%s290 + $0xeb8] sm:$0xff]
        %v788 = vld [vmem:[%s290 + $0xec0] sm:$0xff]
        %v789 = vld [vmem:[%s290 + $0xec8] sm:$0xff]
        %v790 = vld [vmem:[%s290 + $0xed0] sm:$0xff]
        %v791 = vld [vmem:[%s290 + $0xed8] sm:$0xff]
        %v792 = vld [vmem:[%s290 + $0xee0] sm:$0xff]
        %v793 = vld [vmem:[%s290 + $0xee8] sm:$0xff]
        %v794 = vld [vmem:[%s290 + $0xef0] sm:$0xff]
        %v795 = vld [vmem:[%s290 + $0xef8] sm:$0xff]
        %v796 = vld [vmem:[%s290 + $0xf00] sm:$0xff]
        %v797 = vld [vmem:[%s290 + $0xf08] sm:$0xff]
        %v798 = vld [vmem:[%s290 + $0xf10] sm:$0xff]
        %v799 = vld [vmem:[%s290 + $0xf18] sm:$0xff]
        %v800 = vld [vmem:[%s290 + $0xf20] sm:$0xff]
        %v801 = vld [vmem:[%s290 + $0xf28] sm:$0xff]
        %v802 = vld [vmem:[%s290 + $0xf30] sm:$0xff]
        %v803 = vld [vmem:[%s290 + $0xf38] sm:$0xff]
        %v804 = vld [vmem:[%s290 + $0xf40] sm:$0xff]
        %v805 = vld [vmem:[%s290 + $0xf48] sm:$0xff]
        %v806 = vld [vmem:[%s290 + $0xf50] sm:$0xff]
        %v807 = vld [vmem:[%s290 + $0xf58] sm:$0xff]
        %v808 = vld [vmem:[%s290 + $0xf60] sm:$0xff]
        %v809 = vld [vmem:[%s290 + $0xf68] sm:$0xff]
        %v810 = vld [vmem:[%s290 + $0xf70] sm:$0xff]
        %v811 = vld [vmem:[%s290 + $0xf78] sm:$0xff]
        %v812 = vld [vmem:[%s290 + $0xf80] sm:$0xff]
        %v813 = vld [vmem:[%s290 + $0xf88] sm:$0xff]
        %v814 = vld [vmem:[%s290 + $0xf90] sm:$0xff]
        %v815 = vld [vmem:[%s290 + $0xf98] sm:$0xff]
        %v816 = vld [vmem:[%s290 + $0xfa0] sm:$0xff]
        %v817 = vld [vmem:[%s290 + $0xfa8] sm:$0xff]
        %v818 = vld [vmem:[%s290 + $0xfb0] sm:$0xff]
        %v819 = vld [vmem:[%s290 + $0xfb8] sm:$0xff]
        %v820 = vld [vmem:[%s290 + $0xfc0] sm:$0xff]
        %v821 = vld [vmem:[%s290 + $0xfc8] sm:$0xff]
        %v822 = vld [vmem:[%s290 + $0xfd0] sm:$0xff]
        %v823 = vld [vmem:[%s290 + $0xfd8] sm:$0xff]
        %v824 = vld [vmem:[%s290 + $0xfe0] sm:$0xff]
        %v825 = vld [vmem:[%s290 + $0xfe8] sm:$0xff]
        %v826 = vld [vmem:[%s290 + $0xff0] sm:$0xff]
        %v827 = vld [vmem:[%s290 + $0xff8] sm:$0xff]
        %828 = vmatpush.msra.mxu0 %v436
        %829 = vmatpush.msra.mxu0 %v428
        %830 = vmatpush.msra.mxu0 %v420
        %831 = vmatpush.msra.mxu0 %v412
        %832 = vmatpush.msra.mxu0 %v404
        %833 = vmatpush.msra.mxu0 %v396
        %834 = vmatpush.msra.mxu0 %v388
        %835 = vmatpush.msra.mxu0 %v380
        %836 = vmatpush.msra.mxu0 %v372
        %837 = vmatpush.msra.mxu0 %v364
        %838 = vmatpush.msra.mxu0 %v356
        %839 = vmatpush.msra.mxu0 %v348
        %840 = vmatpush.msra.mxu0 %v340
        %841 = vmatpush.msra.mxu0 %v332
        %842 = vmatpush.msra.mxu0 %v324
        %843 = vmatpush.msra.mxu0 %v316
        %844 = vmatmul.f32.gmra.mxu0 %v312
        %v845 = vpop.f32.mrf.mxu0
        %v846 = vadd.f32 0.0, %v845
        %847 = vdwg.mxu0
        %848 = vmatpush.msra.mxu0 %v564
        %849 = vmatpush.msra.mxu0 %v556
        %850 = vmatpush.msra.mxu0 %v548
        %851 = vmatpush.msra.mxu0 %v540
        %852 = vmatpush.msra.mxu0 %v532
        %853 = vmatpush.msra.mxu0 %v524
        %854 = vmatpush.msra.mxu0 %v516
        %855 = vmatpush.msra.mxu0 %v508
        %856 = vmatpush.msra.mxu0 %v500
        %857 = vmatpush.msra.mxu0 %v492
        %858 = vmatpush.msra.mxu0 %v484
        %859 = vmatpush.msra.mxu0 %v476
        %860 = vmatpush.msra.mxu0 %v468
        %861 = vmatpush.msra.mxu0 %v460
        %862 = vmatpush.msra.mxu0 %v452
        %863 = vmatpush.msra.mxu0 %v444
        %864 = vmatmul.f32.gmra.mxu0 %v313
        %v865 = vpop.f32.mrf.mxu0
        %v866 = vadd.f32 %v846, %v865
        %867 = vdwg.mxu0
        %868 = vmatpush.msra.mxu0 %v692
        %869 = vmatpush.msra.mxu0 %v684
        %870 = vmatpush.msra.mxu0 %v676
        %871 = vmatpush.msra.mxu0 %v668
        %872 = vmatpush.msra.mxu0 %v660
        %873 = vmatpush.msra.mxu0 %v652
        %874 = vmatpush.msra.mxu0 %v644
        %875 = vmatpush.msra.mxu0 %v636
        %876 = vmatpush.msra.mxu0 %v628
        %877 = vmatpush.msra.mxu0 %v620
        %878 = vmatpush.msra.mxu0 %v612
        %879 = vmatpush.msra.mxu0 %v604
        %880 = vmatpush.msra.mxu0 %v596
        %881 = vmatpush.msra.mxu0 %v588
        %882 = vmatpush.msra.mxu0 %v580
        %883 = vmatpush.msra.mxu0 %v572
        %884 = vmatmul.f32.gmra.mxu0 %v314
        %v885 = vpop.f32.mrf.mxu0
        %v886 = vadd.f32 %v866, %v885
        %887 = vdwg.mxu0
        %888 = vmatpush.msra.mxu0 %v820
        %889 = vmatpush.msra.mxu0 %v812
        %890 = vmatpush.msra.mxu0 %v804
        %891 = vmatpush.msra.mxu0 %v796
        %892 = vmatpush.msra.mxu0 %v788
        %893 = vmatpush.msra.mxu0 %v780
        %894 = vmatpush.msra.mxu0 %v772
        %895 = vmatpush.msra.mxu0 %v764
        %896 = vmatpush.msra.mxu0 %v756
        %897 = vmatpush.msra.mxu0 %v748
        %898 = vmatpush.msra.mxu0 %v740
        %899 = vmatpush.msra.mxu0 %v732
        %900 = vmatpush.msra.mxu0 %v724
        %901 = vmatpush.msra.mxu0 %v716
        %902 = vmatpush.msra.mxu0 %v708
        %903 = vmatpush.msra.mxu0 %v700
        %904 = vmatmul.f32.gmra.mxu0 %v315
        %v905 = vpop.f32.mrf.mxu0
        %v906 = vadd.f32 %v886, %v905
        %907 = vdwg.mxu0
        %908 = vmatpush.msra.mxu0 %v437
        %909 = vmatpush.msra.mxu0 %v429
        %910 = vmatpush.msra.mxu0 %v421
        %911 = vmatpush.msra.mxu0 %v413
        %912 = vmatpush.msra.mxu0 %v405
        %913 = vmatpush.msra.mxu0 %v397
        %914 = vmatpush.msra.mxu0 %v389
        %915 = vmatpush.msra.mxu0 %v381
        %916 = vmatpush.msra.mxu0 %v373
        %917 = vmatpush.msra.mxu0 %v365
        %918 = vmatpush.msra.mxu0 %v357
        %919 = vmatpush.msra.mxu0 %v349
        %920 = vmatpush.msra.mxu0 %v341
        %921 = vmatpush.msra.mxu0 %v333
        %922 = vmatpush.msra.mxu0 %v325
        %923 = vmatpush.msra.mxu0 %v317
        %924 = vmatmul.f32.gmra.mxu0 %v312
        %v925 = vpop.f32.mrf.mxu0
        %v926 = vadd.f32 0.0, %v925
        %927 = vdwg.mxu0
        %928 = vmatpush.msra.mxu0 %v565
        %929 = vmatpush.msra.mxu0 %v557
        %930 = vmatpush.msra.mxu0 %v549
        %931 = vmatpush.msra.mxu0 %v541
        %932 = vmatpush.msra.mxu0 %v533
        %933 = vmatpush.msra.mxu0 %v525
        %934 = vmatpush.msra.mxu0 %v517
        %935 = vmatpush.msra.mxu0 %v509
        %936 = vmatpush.msra.mxu0 %v501
        %937 = vmatpush.msra.mxu0 %v493
        %938 = vmatpush.msra.mxu0 %v485
        %939 = vmatpush.msra.mxu0 %v477
        %940 = vmatpush.msra.mxu0 %v469
        %941 = vmatpush.msra.mxu0 %v461
        %942 = vmatpush.msra.mxu0 %v453
        %943 = vmatpush.msra.mxu0 %v445
        %944 = vmatmul.f32.gmra.mxu0 %v313
        %v945 = vpop.f32.mrf.mxu0
        %v946 = vadd.f32 %v926, %v945
        %947 = vdwg.mxu0
        %948 = vmatpush.msra.mxu0 %v693
        %949 = vmatpush.msra.mxu0 %v685
        %950 = vmatpush.msra.mxu0 %v677
        %951 = vmatpush.msra.mxu0 %v669
        %952 = vmatpush.msra.mxu0 %v661
        %953 = vmatpush.msra.mxu0 %v653
        %954 = vmatpush.msra.mxu0 %v645
        %955 = vmatpush.msra.mxu0 %v637
        %956 = vmatpush.msra.mxu0 %v629
        %957 = vmatpush.msra.mxu0 %v621
        %958 = vmatpush.msra.mxu0 %v613
        %959 = vmatpush.msra.mxu0 %v605
        %960 = vmatpush.msra.mxu0 %v597
        %961 = vmatpush.msra.mxu0 %v589
        %962 = vmatpush.msra.mxu0 %v581
        %963 = vmatpush.msra.mxu0 %v573
        %964 = vmatmul.f32.gmra.mxu0 %v314
        %v965 = vpop.f32.mrf.mxu0
        %v966 = vadd.f32 %v946, %v965
        %967 = vdwg.mxu0
        %968 = vmatpush.msra.mxu0 %v821
        %969 = vmatpush.msra.mxu0 %v813
        %970 = vmatpush.msra.mxu0 %v805
        %971 = vmatpush.msra.mxu0 %v797
        %972 = vmatpush.msra.mxu0 %v789
        %973 = vmatpush.msra.mxu0 %v781
        %974 = vmatpush.msra.mxu0 %v773
        %975 = vmatpush.msra.mxu0 %v765
        %976 = vmatpush.msra.mxu0 %v757
        %977 = vmatpush.msra.mxu0 %v749
        %978 = vmatpush.msra.mxu0 %v741
        %979 = vmatpush.msra.mxu0 %v733
        %980 = vmatpush.msra.mxu0 %v725
        %981 = vmatpush.msra.mxu0 %v717
        %982 = vmatpush.msra.mxu0 %v709
        %983 = vmatpush.msra.mxu0 %v701
        %984 = vmatmul.f32.gmra.mxu0 %v315
        %v985 = vpop.f32.mrf.mxu0
        %v986 = vadd.f32 %v966, %v985
        %987 = vdwg.mxu0
        %988 = vmatpush.msra.mxu0 %v438
        %989 = vmatpush.msra.mxu0 %v430
        %990 = vmatpush.msra.mxu0 %v422
        %991 = vmatpush.msra.mxu0 %v414
        %992 = vmatpush.msra.mxu0 %v406
        %993 = vmatpush.msra.mxu0 %v398
        %994 = vmatpush.msra.mxu0 %v390
        %995 = vmatpush.msra.mxu0 %v382
        %996 = vmatpush.msra.mxu0 %v374
        %997 = vmatpush.msra.mxu0 %v366
        %998 = vmatpush.msra.mxu0 %v358
        %999 = vmatpush.msra.mxu0 %v350
        %1000 = vmatpush.msra.mxu0 %v342
        %1001 = vmatpush.msra.mxu0 %v334
        %1002 = vmatpush.msra.mxu0 %v326
        %1003 = vmatpush.msra.mxu0 %v318
        %1004 = vmatmul.f32.gmra.mxu0 %v312
        %v1005 = vpop.f32.mrf.mxu0
        %v1006 = vadd.f32 0.0, %v1005
        %1007 = vdwg.mxu0
        %1008 = vmatpush.msra.mxu0 %v566
        %1009 = vmatpush.msra.mxu0 %v558
        %1010 = vmatpush.msra.mxu0 %v550
        %1011 = vmatpush.msra.mxu0 %v542
        %1012 = vmatpush.msra.mxu0 %v534
        %1013 = vmatpush.msra.mxu0 %v526
        %1014 = vmatpush.msra.mxu0 %v518
        %1015 = vmatpush.msra.mxu0 %v510
        %1016 = vmatpush.msra.mxu0 %v502
        %1017 = vmatpush.msra.mxu0 %v494
        %1018 = vmatpush.msra.mxu0 %v486
        %1019 = vmatpush.msra.mxu0 %v478
        %1020 = vmatpush.msra.mxu0 %v470
        %1021 = vmatpush.msra.mxu0 %v462
        %1022 = vmatpush.msra.mxu0 %v454
        %1023 = vmatpush.msra.mxu0 %v446
        %1024 = vmatmul.f32.gmra.mxu0 %v313
        %v1025 = vpop.f32.mrf.mxu0
        %v1026 = vadd.f32 %v1006, %v1025
        %1027 = vdwg.mxu0
        %1028 = vmatpush.msra.mxu0 %v694
        %1029 = vmatpush.msra.mxu0 %v686
        %1030 = vmatpush.msra.mxu0 %v678
        %1031 = vmatpush.msra.mxu0 %v670
        %1032 = vmatpush.msra.mxu0 %v662
        %1033 = vmatpush.msra.mxu0 %v654
        %1034 = vmatpush.msra.mxu0 %v646
        %1035 = vmatpush.msra.mxu0 %v638
        %1036 = vmatpush.msra.mxu0 %v630
        %1037 = vmatpush.msra.mxu0 %v622
        %1038 = vmatpush.msra.mxu0 %v614
        %1039 = vmatpush.msra.mxu0 %v606
        %1040 = vmatpush.msra.mxu0 %v598
        %1041 = vmatpush.msra.mxu0 %v590
        %1042 = vmatpush.msra.mxu0 %v582
        %1043 = vmatpush.msra.mxu0 %v574
        %1044 = vmatmul.f32.gmra.mxu0 %v314
        %v1045 = vpop.f32.mrf.mxu0
        %v1046 = vadd.f32 %v1026, %v1045
        %1047 = vdwg.mxu0
        %1048 = vmatpush.msra.mxu0 %v822
        %1049 = vmatpush.msra.mxu0 %v814
        %1050 = vmatpush.msra.mxu0 %v806
        %1051 = vmatpush.msra.mxu0 %v798
        %1052 = vmatpush.msra.mxu0 %v790
        %1053 = vmatpush.msra.mxu0 %v782
        %1054 = vmatpush.msra.mxu0 %v774
        %1055 = vmatpush.msra.mxu0 %v766
        %1056 = vmatpush.msra.mxu0 %v758
        %1057 = vmatpush.msra.mxu0 %v750
        %1058 = vmatpush.msra.mxu0 %v742
        %1059 = vmatpush.msra.mxu0 %v734
        %1060 = vmatpush.msra.mxu0 %v726
        %1061 = vmatpush.msra.mxu0 %v718
        %1062 = vmatpush.msra.mxu0 %v710
        %1063 = vmatpush.msra.mxu0 %v702
        %1064 = vmatmul.f32.gmra.mxu0 %v315
        %v1065 = vpop.f32.mrf.mxu0
        %v1066 = vadd.f32 %v1046, %v1065
        %1067 = vdwg.mxu0
        %1068 = vmatpush.msra.mxu0 %v439
        %1069 = vmatpush.msra.mxu0 %v431
        %1070 = vmatpush.msra.mxu0 %v423
        %1071 = vmatpush.msra.mxu0 %v415
        %1072 = vmatpush.msra.mxu0 %v407
        %1073 = vmatpush.msra.mxu0 %v399
        %1074 = vmatpush.msra.mxu0 %v391
        %1075 = vmatpush.msra.mxu0 %v383
        %1076 = vmatpush.msra.mxu0 %v375
        %1077 = vmatpush.msra.mxu0 %v367
        %1078 = vmatpush.msra.mxu0 %v359
        %1079 = vmatpush.msra.mxu0 %v351
        %1080 = vmatpush.msra.mxu0 %v343
        %1081 = vmatpush.msra.mxu0 %v335
        %1082 = vmatpush.msra.mxu0 %v327
        %1083 = vmatpush.msra.mxu0 %v319
        %1084 = vmatmul.f32.gmra.mxu0 %v312
        %v1085 = vpop.f32.mrf.mxu0
        %v1086 = vadd.f32 0.0, %v1085
        %1087 = vdwg.mxu0
        %1088 = vmatpush.msra.mxu0 %v567
        %1089 = vmatpush.msra.mxu0 %v559
        %1090 = vmatpush.msra.mxu0 %v551
        %1091 = vmatpush.msra.mxu0 %v543
        %1092 = vmatpush.msra.mxu0 %v535
        %1093 = vmatpush.msra.mxu0 %v527
        %1094 = vmatpush.msra.mxu0 %v519
        %1095 = vmatpush.msra.mxu0 %v511
        %1096 = vmatpush.msra.mxu0 %v503
        %1097 = vmatpush.msra.mxu0 %v495
        %1098 = vmatpush.msra.mxu0 %v487
        %1099 = vmatpush.msra.mxu0 %v479
        %1100 = vmatpush.msra.mxu0 %v471
        %1101 = vmatpush.msra.mxu0 %v463
        %1102 = vmatpush.msra.mxu0 %v455
        %1103 = vmatpush.msra.mxu0 %v447
        %1104 = vmatmul.f32.gmra.mxu0 %v313
        %v1105 = vpop.f32.mrf.mxu0
        %v1106 = vadd.f32 %v1086, %v1105
        %1107 = vdwg.mxu0
        %1108 = vmatpush.msra.mxu0 %v695
        %1109 = vmatpush.msra.mxu0 %v687
        %1110 = vmatpush.msra.mxu0 %v679
        %1111 = vmatpush.msra.mxu0 %v671
        %1112 = vmatpush.msra.mxu0 %v663
        %1113 = vmatpush.msra.mxu0 %v655
        %1114 = vmatpush.msra.mxu0 %v647
        %1115 = vmatpush.msra.mxu0 %v639
        %1116 = vmatpush.msra.mxu0 %v631
        %1117 = vmatpush.msra.mxu0 %v623
        %1118 = vmatpush.msra.mxu0 %v615
        %1119 = vmatpush.msra.mxu0 %v607
        %1120 = vmatpush.msra.mxu0 %v599
        %1121 = vmatpush.msra.mxu0 %v591
        %1122 = vmatpush.msra.mxu0 %v583
        %1123 = vmatpush.msra.mxu0 %v575
        %1124 = vmatmul.f32.gmra.mxu0 %v314
        %v1125 = vpop.f32.mrf.mxu0
        %v1126 = vadd.f32 %v1106, %v1125
        %1127 = vdwg.mxu0
        %1128 = vmatpush.msra.mxu0 %v823
        %1129 = vmatpush.msra.mxu0 %v815
        %1130 = vmatpush.msra.mxu0 %v807
        %1131 = vmatpush.msra.mxu0 %v799
        %1132 = vmatpush.msra.mxu0 %v791
        %1133 = vmatpush.msra.mxu0 %v783
        %1134 = vmatpush.msra.mxu0 %v775
        %1135 = vmatpush.msra.mxu0 %v767
        %1136 = vmatpush.msra.mxu0 %v759
        %1137 = vmatpush.msra.mxu0 %v751
        %1138 = vmatpush.msra.mxu0 %v743
        %1139 = vmatpush.msra.mxu0 %v735
        %1140 = vmatpush.msra.mxu0 %v727
        %1141 = vmatpush.msra.mxu0 %v719
        %1142 = vmatpush.msra.mxu0 %v711
        %1143 = vmatpush.msra.mxu0 %v703
        %1144 = vmatmul.f32.gmra.mxu0 %v315
        %v1145 = vpop.f32.mrf.mxu0
        %v1146 = vadd.f32 %v1126, %v1145
        %1147 = vdwg.mxu0
        %1148 = vmatpush.msra.mxu0 %v440
        %1149 = vmatpush.msra.mxu0 %v432
        %1150 = vmatpush.msra.mxu0 %v424
        %1151 = vmatpush.msra.mxu0 %v416
        %1152 = vmatpush.msra.mxu0 %v408
        %1153 = vmatpush.msra.mxu0 %v400
        %1154 = vmatpush.msra.mxu0 %v392
        %1155 = vmatpush.msra.mxu0 %v384
        %1156 = vmatpush.msra.mxu0 %v376
        %1157 = vmatpush.msra.mxu0 %v368
        %1158 = vmatpush.msra.mxu0 %v360
        %1159 = vmatpush.msra.mxu0 %v352
        %1160 = vmatpush.msra.mxu0 %v344
        %1161 = vmatpush.msra.mxu0 %v336
        %1162 = vmatpush.msra.mxu0 %v328
        %1163 = vmatpush.msra.mxu0 %v320
        %1164 = vmatmul.f32.gmra.mxu0 %v312
        %v1165 = vpop.f32.mrf.mxu0
        %v1166 = vadd.f32 0.0, %v1165
        %1167 = vdwg.mxu0
        %1168 = vmatpush.msra.mxu0 %v568
        %1169 = vmatpush.msra.mxu0 %v560
        %1170 = vmatpush.msra.mxu0 %v552
        %1171 = vmatpush.msra.mxu0 %v544
        %1172 = vmatpush.msra.mxu0 %v536
        %1173 = vmatpush.msra.mxu0 %v528
        %1174 = vmatpush.msra.mxu0 %v520
        %1175 = vmatpush.msra.mxu0 %v512
        %1176 = vmatpush.msra.mxu0 %v504
        %1177 = vmatpush.msra.mxu0 %v496
        %1178 = vmatpush.msra.mxu0 %v488
        %1179 = vmatpush.msra.mxu0 %v480
        %1180 = vmatpush.msra.mxu0 %v472
        %1181 = vmatpush.msra.mxu0 %v464
        %1182 = vmatpush.msra.mxu0 %v456
        %1183 = vmatpush.msra.mxu0 %v448
        %1184 = vmatmul.f32.gmra.mxu0 %v313
        %v1185 = vpop.f32.mrf.mxu0
        %v1186 = vadd.f32 %v1166, %v1185
        %1187 = vdwg.mxu0
        %1188 = vmatpush.msra.mxu0 %v696
        %1189 = vmatpush.msra.mxu0 %v688
        %1190 = vmatpush.msra.mxu0 %v680
        %1191 = vmatpush.msra.mxu0 %v672
        %1192 = vmatpush.msra.mxu0 %v664
        %1193 = vmatpush.msra.mxu0 %v656
        %1194 = vmatpush.msra.mxu0 %v648
        %1195 = vmatpush.msra.mxu0 %v640
        %1196 = vmatpush.msra.mxu0 %v632
        %1197 = vmatpush.msra.mxu0 %v624
        %1198 = vmatpush.msra.mxu0 %v616
        %1199 = vmatpush.msra.mxu0 %v608
        %1200 = vmatpush.msra.mxu0 %v600
        %1201 = vmatpush.msra.mxu0 %v592
        %1202 = vmatpush.msra.mxu0 %v584
        %1203 = vmatpush.msra.mxu0 %v576
        %1204 = vmatmul.f32.gmra.mxu0 %v314
        %v1205 = vpop.f32.mrf.mxu0
        %v1206 = vadd.f32 %v1186, %v1205
        %1207 = vdwg.mxu0
        %1208 = vmatpush.msra.mxu0 %v824
        %1209 = vmatpush.msra.mxu0 %v816
        %1210 = vmatpush.msra.mxu0 %v808
        %1211 = vmatpush.msra.mxu0 %v800
        %1212 = vmatpush.msra.mxu0 %v792
        %1213 = vmatpush.msra.mxu0 %v784
        %1214 = vmatpush.msra.mxu0 %v776
        %1215 = vmatpush.msra.mxu0 %v768
        %1216 = vmatpush.msra.mxu0 %v760
        %1217 = vmatpush.msra.mxu0 %v752
        %1218 = vmatpush.msra.mxu0 %v744
        %1219 = vmatpush.msra.mxu0 %v736
        %1220 = vmatpush.msra.mxu0 %v728
        %1221 = vmatpush.msra.mxu0 %v720
        %1222 = vmatpush.msra.mxu0 %v712
        %1223 = vmatpush.msra.mxu0 %v704
        %1224 = vmatmul.f32.gmra.mxu0 %v315
        %v1225 = vpop.f32.mrf.mxu0
        %v1226 = vadd.f32 %v1206, %v1225
        %1227 = vdwg.mxu0
        %1228 = vmatpush.msra.mxu0 %v441
        %1229 = vmatpush.msra.mxu0 %v433
        %1230 = vmatpush.msra.mxu0 %v425
        %1231 = vmatpush.msra.mxu0 %v417
        %1232 = vmatpush.msra.mxu0 %v409
        %1233 = vmatpush.msra.mxu0 %v401
        %1234 = vmatpush.msra.mxu0 %v393
        %1235 = vmatpush.msra.mxu0 %v385
        %1236 = vmatpush.msra.mxu0 %v377
        %1237 = vmatpush.msra.mxu0 %v369
        %1238 = vmatpush.msra.mxu0 %v361
        %1239 = vmatpush.msra.mxu0 %v353
        %1240 = vmatpush.msra.mxu0 %v345
        %1241 = vmatpush.msra.mxu0 %v337
        %1242 = vmatpush.msra.mxu0 %v329
        %1243 = vmatpush.msra.mxu0 %v321
        %1244 = vmatmul.f32.gmra.mxu0 %v312
        %v1245 = vpop.f32.mrf.mxu0
        %v1246 = vadd.f32 0.0, %v1245
        %1247 = vdwg.mxu0
        %1248 = vmatpush.msra.mxu0 %v569
        %1249 = vmatpush.msra.mxu0 %v561
        %1250 = vmatpush.msra.mxu0 %v553
        %1251 = vmatpush.msra.mxu0 %v545
        %1252 = vmatpush.msra.mxu0 %v537
        %1253 = vmatpush.msra.mxu0 %v529
        %1254 = vmatpush.msra.mxu0 %v521
        %1255 = vmatpush.msra.mxu0 %v513
        %1256 = vmatpush.msra.mxu0 %v505
        %1257 = vmatpush.msra.mxu0 %v497
        %1258 = vmatpush.msra.mxu0 %v489
        %1259 = vmatpush.msra.mxu0 %v481
        %1260 = vmatpush.msra.mxu0 %v473
        %1261 = vmatpush.msra.mxu0 %v465
        %1262 = vmatpush.msra.mxu0 %v457
        %1263 = vmatpush.msra.mxu0 %v449
        %1264 = vmatmul.f32.gmra.mxu0 %v313
        %v1265 = vpop.f32.mrf.mxu0
        %v1266 = vadd.f32 %v1246, %v1265
        %1267 = vdwg.mxu0
        %1268 = vmatpush.msra.mxu0 %v697
        %1269 = vmatpush.msra.mxu0 %v689
        %1270 = vmatpush.msra.mxu0 %v681
        %1271 = vmatpush.msra.mxu0 %v673
        %1272 = vmatpush.msra.mxu0 %v665
        %1273 = vmatpush.msra.mxu0 %v657
        %1274 = vmatpush.msra.mxu0 %v649
        %1275 = vmatpush.msra.mxu0 %v641
        %1276 = vmatpush.msra.mxu0 %v633
        %1277 = vmatpush.msra.mxu0 %v625
        %1278 = vmatpush.msra.mxu0 %v617
        %1279 = vmatpush.msra.mxu0 %v609
        %1280 = vmatpush.msra.mxu0 %v601
        %1281 = vmatpush.msra.mxu0 %v593
        %1282 = vmatpush.msra.mxu0 %v585
        %1283 = vmatpush.msra.mxu0 %v577
        %1284 = vmatmul.f32.gmra.mxu0 %v314
        %v1285 = vpop.f32.mrf.mxu0
        %v1286 = vadd.f32 %v1266, %v1285
        %1287 = vdwg.mxu0
        %1288 = vmatpush.msra.mxu0 %v825
        %1289 = vmatpush.msra.mxu0 %v817
        %1290 = vmatpush.msra.mxu0 %v809
        %1291 = vmatpush.msra.mxu0 %v801
        %1292 = vmatpush.msra.mxu0 %v793
        %1293 = vmatpush.msra.mxu0 %v785
        %1294 = vmatpush.msra.mxu0 %v777
        %1295 = vmatpush.msra.mxu0 %v769
        %1296 = vmatpush.msra.mxu0 %v761
        %1297 = vmatpush.msra.mxu0 %v753
        %1298 = vmatpush.msra.mxu0 %v745
        %1299 = vmatpush.msra.mxu0 %v737
        %1300 = vmatpush.msra.mxu0 %v729
        %1301 = vmatpush.msra.mxu0 %v721
        %1302 = vmatpush.msra.mxu0 %v713
        %1303 = vmatpush.msra.mxu0 %v705
        %1304 = vmatmul.f32.gmra.mxu0 %v315
        %v1305 = vpop.f32.mrf.mxu0
        %v1306 = vadd.f32 %v1286, %v1305
        %1307 = vdwg.mxu0
        %1308 = vmatpush.msra.mxu0 %v442
        %1309 = vmatpush.msra.mxu0 %v434
        %1310 = vmatpush.msra.mxu0 %v426
        %1311 = vmatpush.msra.mxu0 %v418
        %1312 = vmatpush.msra.mxu0 %v410
        %1313 = vmatpush.msra.mxu0 %v402
        %1314 = vmatpush.msra.mxu0 %v394
        %1315 = vmatpush.msra.mxu0 %v386
        %1316 = vmatpush.msra.mxu0 %v378
        %1317 = vmatpush.msra.mxu0 %v370
        %1318 = vmatpush.msra.mxu0 %v362
        %1319 = vmatpush.msra.mxu0 %v354
        %1320 = vmatpush.msra.mxu0 %v346
        %1321 = vmatpush.msra.mxu0 %v338
        %1322 = vmatpush.msra.mxu0 %v330
        %1323 = vmatpush.msra.mxu0 %v322
        %1324 = vmatmul.f32.gmra.mxu0 %v312
        %v1325 = vpop.f32.mrf.mxu0
        %v1326 = vadd.f32 0.0, %v1325
        %1327 = vdwg.mxu0
        %1328 = vmatpush.msra.mxu0 %v570
        %1329 = vmatpush.msra.mxu0 %v562
        %1330 = vmatpush.msra.mxu0 %v554
        %1331 = vmatpush.msra.mxu0 %v546
        %1332 = vmatpush.msra.mxu0 %v538
        %1333 = vmatpush.msra.mxu0 %v530
        %1334 = vmatpush.msra.mxu0 %v522
        %1335 = vmatpush.msra.mxu0 %v514
        %1336 = vmatpush.msra.mxu0 %v506
        %1337 = vmatpush.msra.mxu0 %v498
        %1338 = vmatpush.msra.mxu0 %v490
        %1339 = vmatpush.msra.mxu0 %v482
        %1340 = vmatpush.msra.mxu0 %v474
        %1341 = vmatpush.msra.mxu0 %v466
        %1342 = vmatpush.msra.mxu0 %v458
        %1343 = vmatpush.msra.mxu0 %v450
        %1344 = vmatmul.f32.gmra.mxu0 %v313
        %v1345 = vpop.f32.mrf.mxu0
        %v1346 = vadd.f32 %v1326, %v1345
        %1347 = vdwg.mxu0
        %1348 = vmatpush.msra.mxu0 %v698
        %1349 = vmatpush.msra.mxu0 %v690
        %1350 = vmatpush.msra.mxu0 %v682
        %1351 = vmatpush.msra.mxu0 %v674
        %1352 = vmatpush.msra.mxu0 %v666
        %1353 = vmatpush.msra.mxu0 %v658
        %1354 = vmatpush.msra.mxu0 %v650
        %1355 = vmatpush.msra.mxu0 %v642
        %1356 = vmatpush.msra.mxu0 %v634
        %1357 = vmatpush.msra.mxu0 %v626
        %1358 = vmatpush.msra.mxu0 %v618
        %1359 = vmatpush.msra.mxu0 %v610
        %1360 = vmatpush.msra.mxu0 %v602
        %1361 = vmatpush.msra.mxu0 %v594
        %1362 = vmatpush.msra.mxu0 %v586
        %1363 = vmatpush.msra.mxu0 %v578
        %1364 = vmatmul.f32.gmra.mxu0 %v314
        %v1365 = vpop.f32.mrf.mxu0
        %v1366 = vadd.f32 %v1346, %v1365
        %1367 = vdwg.mxu0
        %1368 = vmatpush.msra.mxu0 %v826
        %1369 = vmatpush.msra.mxu0 %v818
        %1370 = vmatpush.msra.mxu0 %v810
        %1371 = vmatpush.msra.mxu0 %v802
        %1372 = vmatpush.msra.mxu0 %v794
        %1373 = vmatpush.msra.mxu0 %v786
        %1374 = vmatpush.msra.mxu0 %v778
        %1375 = vmatpush.msra.mxu0 %v770
        %1376 = vmatpush.msra.mxu0 %v762
        %1377 = vmatpush.msra.mxu0 %v754
        %1378 = vmatpush.msra.mxu0 %v746
        %1379 = vmatpush.msra.mxu0 %v738
        %1380 = vmatpush.msra.mxu0 %v730
        %1381 = vmatpush.msra.mxu0 %v722
        %1382 = vmatpush.msra.mxu0 %v714
        %1383 = vmatpush.msra.mxu0 %v706
        %1384 = vmatmul.f32.gmra.mxu0 %v315
        %v1385 = vpop.f32.mrf.mxu0
        %v1386 = vadd.f32 %v1366, %v1385
        %1387 = vdwg.mxu0
        %1388 = vmatpush.msra.mxu0 %v443
        %1389 = vmatpush.msra.mxu0 %v435
        %1390 = vmatpush.msra.mxu0 %v427
        %1391 = vmatpush.msra.mxu0 %v419
        %1392 = vmatpush.msra.mxu0 %v411
        %1393 = vmatpush.msra.mxu0 %v403
        %1394 = vmatpush.msra.mxu0 %v395
        %1395 = vmatpush.msra.mxu0 %v387
        %1396 = vmatpush.msra.mxu0 %v379
        %1397 = vmatpush.msra.mxu0 %v371
        %1398 = vmatpush.msra.mxu0 %v363
        %1399 = vmatpush.msra.mxu0 %v355
        %1400 = vmatpush.msra.mxu0 %v347
        %1401 = vmatpush.msra.mxu0 %v339
        %1402 = vmatpush.msra.mxu0 %v331
        %1403 = vmatpush.msra.mxu0 %v323
        %1404 = vmatmul.f32.gmra.mxu0 %v312
        %v1405 = vpop.f32.mrf.mxu0
        %v1406 = vadd.f32 0.0, %v1405
        %1407 = vdwg.mxu0
        %1408 = vmatpush.msra.mxu0 %v571
        %1409 = vmatpush.msra.mxu0 %v563
        %1410 = vmatpush.msra.mxu0 %v555
        %1411 = vmatpush.msra.mxu0 %v547
        %1412 = vmatpush.msra.mxu0 %v539
        %1413 = vmatpush.msra.mxu0 %v531
        %1414 = vmatpush.msra.mxu0 %v523
        %1415 = vmatpush.msra.mxu0 %v515
        %1416 = vmatpush.msra.mxu0 %v507
        %1417 = vmatpush.msra.mxu0 %v499
        %1418 = vmatpush.msra.mxu0 %v491
        %1419 = vmatpush.msra.mxu0 %v483
        %1420 = vmatpush.msra.mxu0 %v475
        %1421 = vmatpush.msra.mxu0 %v467
        %1422 = vmatpush.msra.mxu0 %v459
        %1423 = vmatpush.msra.mxu0 %v451
        %1424 = vmatmul.f32.gmra.mxu0 %v313
        %v1425 = vpop.f32.mrf.mxu0
        %v1426 = vadd.f32 %v1406, %v1425
        %1427 = vdwg.mxu0
        %1428 = vmatpush.msra.mxu0 %v699
        %1429 = vmatpush.msra.mxu0 %v691
        %1430 = vmatpush.msra.mxu0 %v683
        %1431 = vmatpush.msra.mxu0 %v675
        %1432 = vmatpush.msra.mxu0 %v667
        %1433 = vmatpush.msra.mxu0 %v659
        %1434 = vmatpush.msra.mxu0 %v651
        %1435 = vmatpush.msra.mxu0 %v643
        %1436 = vmatpush.msra.mxu0 %v635
        %1437 = vmatpush.msra.mxu0 %v627
        %1438 = vmatpush.msra.mxu0 %v619
        %1439 = vmatpush.msra.mxu0 %v611
        %1440 = vmatpush.msra.mxu0 %v603
        %1441 = vmatpush.msra.mxu0 %v595
        %1442 = vmatpush.msra.mxu0 %v587
        %1443 = vmatpush.msra.mxu0 %v579
        %1444 = vmatmul.f32.gmra.mxu0 %v314
        %v1445 = vpop.f32.mrf.mxu0
        %v1446 = vadd.f32 %v1426, %v1445
        %1447 = vdwg.mxu0
        %1448 = vmatpush.msra.mxu0 %v827
        %1449 = vmatpush.msra.mxu0 %v819
        %1450 = vmatpush.msra.mxu0 %v811
        %1451 = vmatpush.msra.mxu0 %v803
        %1452 = vmatpush.msra.mxu0 %v795
        %1453 = vmatpush.msra.mxu0 %v787
        %1454 = vmatpush.msra.mxu0 %v779
        %1455 = vmatpush.msra.mxu0 %v771
        %1456 = vmatpush.msra.mxu0 %v763
        %1457 = vmatpush.msra.mxu0 %v755
        %1458 = vmatpush.msra.mxu0 %v747
        %1459 = vmatpush.msra.mxu0 %v739
        %1460 = vmatpush.msra.mxu0 %v731
        %1461 = vmatpush.msra.mxu0 %v723
        %1462 = vmatpush.msra.mxu0 %v715
        %1463 = vmatpush.msra.mxu0 %v707
        %1464 = vmatmul.f32.gmra.mxu0 %v315
        %v1465 = vpop.f32.mrf.mxu0
        %v1466 = vadd.f32 %v1446, %v1465
        %1467 = vdwg.mxu0
        %v1468 = vadd.f32 %v304, %v906
        %v1469 = vadd.f32 %v305, %v986
        %v1470 = vadd.f32 %v306, %v1066
        %v1471 = vadd.f32 %v307, %v1146
        %v1472 = vadd.f32 %v308, %v1226
        %v1473 = vadd.f32 %v309, %v1306
        %v1474 = vadd.f32 %v310, %v1386
        %v1475 = vadd.f32 %v311, %v1466
        %1476 = vst [vmem:[#allocation2] sm:$0xff] %v1468
        %1477 = vst [vmem:[#allocation2 + $0x8] sm:$0xff] %v1469
        %1478 = vst [vmem:[#allocation2 + $0x10] sm:$0xff] %v1470
        %1479 = vst [vmem:[#allocation2 + $0x18] sm:$0xff] %v1471
        %1480 = vst [vmem:[#allocation2 + $0x20] sm:$0xff] %v1472
        %1481 = vst [vmem:[#allocation2 + $0x28] sm:$0xff] %v1473
        %1482 = vst [vmem:[#allocation2 + $0x30] sm:$0xff] %v1474
        %1483 = vst [vmem:[#allocation2 + $0x38] sm:$0xff] %v1475
        %p1484 = scmp.eq.s32.totalorder %s19, 17
        // Predicated region
        $region53: #{dfr_forward.1} parent=47 // pred_check
          %p1485 = pneg %p1484
        $region54: #{dfr_forward.1} parent=47 // pred_check_branch
          %1487 = sbr.rel (%p1485) target = $region56
        $region55: #{dfr_forward.1} parent=47 // pred_region
          %v1488 = vld [vmem:[#allocation2] sm:$0xff]
          %v1489 = vld [vmem:[#allocation2 + $0x8] sm:$0xff]
          %v1490 = vld [vmem:[#allocation2 + $0x10] sm:$0xff]
          %v1491 = vld [vmem:[#allocation2 + $0x18] sm:$0xff]
          %v1492 = vld [vmem:[#allocation2 + $0x20] sm:$0xff]
          %v1493 = vld [vmem:[#allocation2 + $0x28] sm:$0xff]
          %v1494 = vld [vmem:[#allocation2 + $0x30] sm:$0xff]
          %v1495 = vld [vmem:[#allocation2 + $0x38] sm:$0xff]
          %v1496 = vld [vmem:[%s2] sm:$0xff]
          %v1498 = vperm.slane %v1496, 0
          %v1499 = vperm.slane %v1496, 1
          %v1500 = vperm.slane %v1496, 2
          %v1501 = vperm.slane %v1496, 3
          %v1502 = vperm.slane %v1496, 4
          %v1503 = vperm.slane %v1496, 5
          %v1504 = vperm.slane %v1496, 6
          %v1505 = vperm.slane %v1496, 7
          %v1514 = vadd.f32 %v1488, %v1498
          %v1515 = vadd.f32 %v1489, %v1499
          %v1516 = vadd.f32 %v1490, %v1500
          %v1517 = vadd.f32 %v1491, %v1501
          %v1518 = vadd.f32 %v1492, %v1502
          %v1519 = vadd.f32 %v1493, %v1503
          %v1520 = vadd.f32 %v1494, %v1504
          %v1521 = vadd.f32 %v1495, %v1505
          %vm1522 = vcmp.gt.f32.partialorder %v1514, 0.0
          %vm1523 = vcmp.gt.f32.partialorder %v1515, 0.0
          %vm1524 = vcmp.gt.f32.partialorder %v1516, 0.0
          %vm1525 = vcmp.gt.f32.partialorder %v1517, 0.0
          %vm1526 = vcmp.gt.f32.partialorder %v1518, 0.0
          %vm1527 = vcmp.gt.f32.partialorder %v1519, 0.0
          %vm1528 = vcmp.gt.f32.partialorder %v1520, 0.0
          %vm1529 = vcmp.gt.f32.partialorder %v1521, 0.0
          %v1530 = vmul.f32 %v1514, 1.442695
          %v1531 = vpow.pop %v1530
          %v1532 = vmul.f32 %v1515, 1.442695
          %v1533 = vpow.pop %v1532
          %v1534 = vmul.f32 %v1516, 1.442695
          %v1535 = vpow.pop %v1534
          %v1536 = vmul.f32 %v1517, 1.442695
          %v1537 = vpow.pop %v1536
          %v1538 = vmul.f32 %v1518, 1.442695
          %v1539 = vpow.pop %v1538
          %v1540 = vmul.f32 %v1519, 1.442695
          %v1541 = vpow.pop %v1540
          %v1542 = vmul.f32 %v1520, 1.442695
          %v1543 = vpow.pop %v1542
          %v1544 = vmul.f32 %v1521, 1.442695
          %v1545 = vpow.pop %v1544
          %v1546 = vsub.f32 %v1531, 1.0
          %v1547 = vsub.f32 %v1533, 1.0
          %v1548 = vsub.f32 %v1535, 1.0
          %v1549 = vsub.f32 %v1537, 1.0
          %v1550 = vsub.f32 %v1539, 1.0
          %v1551 = vsub.f32 %v1541, 1.0
          %v1552 = vsub.f32 %v1543, 1.0
          %v1553 = vsub.f32 %v1545, 1.0
          %v1554 = vsel %vm1522, %v1514, %v1546
          %v1555 = vsel %vm1523, %v1515, %v1547
          %v1556 = vsel %vm1524, %v1516, %v1548
          %v1557 = vsel %vm1525, %v1517, %v1549
          %v1558 = vsel %vm1526, %v1518, %v1550
          %v1559 = vsel %vm1527, %v1519, %v1551
          %v1560 = vsel %vm1528, %v1520, %v1552
          %v1561 = vsel %vm1529, %v1521, %v1553
          %v1562 = vld [vmem:[%s3] sm:$0xff]
          %v1563 = vld [vmem:[%s3 + $0x8] sm:$0xff]
          %v1564 = vld [vmem:[%s3 + $0x10] sm:$0xff]
          %v1565 = vld [vmem:[%s3 + $0x18] sm:$0xff]
          %v1566 = vld [vmem:[%s3 + $0x20] sm:$0xff]
          %v1567 = vld [vmem:[%s3 + $0x28] sm:$0xff]
          %v1568 = vld [vmem:[%s3 + $0x30] sm:$0xff]
          %v1569 = vld [vmem:[%s3 + $0x38] sm:$0xff]
          %v1570 = vld [vmem:[%s3 + $0x40] sm:$0xff]
          %v1571 = vld [vmem:[%s3 + $0x48] sm:$0xff]
          %v1572 = vld [vmem:[%s3 + $0x50] sm:$0xff]
          %v1573 = vld [vmem:[%s3 + $0x58] sm:$0xff]
          %v1574 = vld [vmem:[%s3 + $0x60] sm:$0xff]
          %v1575 = vld [vmem:[%s3 + $0x68] sm:$0xff]
          %v1576 = vld [vmem:[%s3 + $0x70] sm:$0xff]
          %v1577 = vld [vmem:[%s3 + $0x78] sm:$0xff]
          %v1578 = vld [vmem:[%s3 + $0x80] sm:$0xff]
          %v1579 = vld [vmem:[%s3 + $0x88] sm:$0xff]
          %v1580 = vld [vmem:[%s3 + $0x90] sm:$0xff]
          %v1581 = vld [vmem:[%s3 + $0x98] sm:$0xff]
          %v1582 = vld [vmem:[%s3 + $0xa0] sm:$0xff]
          %v1583 = vld [vmem:[%s3 + $0xa8] sm:$0xff]
          %v1584 = vld [vmem:[%s3 + $0xb0] sm:$0xff]
          %v1585 = vld [vmem:[%s3 + $0xb8] sm:$0xff]
          %v1586 = vld [vmem:[%s3 + $0xc0] sm:$0xff]
          %v1587 = vld [vmem:[%s3 + $0xc8] sm:$0xff]
          %v1588 = vld [vmem:[%s3 + $0xd0] sm:$0xff]
          %v1589 = vld [vmem:[%s3 + $0xd8] sm:$0xff]
          %v1590 = vld [vmem:[%s3 + $0xe0] sm:$0xff]
          %v1591 = vld [vmem:[%s3 + $0xe8] sm:$0xff]
          %v1592 = vld [vmem:[%s3 + $0xf0] sm:$0xff]
          %v1593 = vld [vmem:[%s3 + $0xf8] sm:$0xff]
          %v1594 = vld [vmem:[%s3 + $0x100] sm:$0xff]
          %v1595 = vld [vmem:[%s3 + $0x108] sm:$0xff]
          %v1596 = vld [vmem:[%s3 + $0x110] sm:$0xff]
          %v1597 = vld [vmem:[%s3 + $0x118] sm:$0xff]
          %v1598 = vld [vmem:[%s3 + $0x120] sm:$0xff]
          %v1599 = vld [vmem:[%s3 + $0x128] sm:$0xff]
          %v1600 = vld [vmem:[%s3 + $0x130] sm:$0xff]
          %v1601 = vld [vmem:[%s3 + $0x138] sm:$0xff]
          %v1602 = vld [vmem:[%s3 + $0x140] sm:$0xff]
          %v1603 = vld [vmem:[%s3 + $0x148] sm:$0xff]
          %v1604 = vld [vmem:[%s3 + $0x150] sm:$0xff]
          %v1605 = vld [vmem:[%s3 + $0x158] sm:$0xff]
          %v1606 = vld [vmem:[%s3 + $0x160] sm:$0xff]
          %v1607 = vld [vmem:[%s3 + $0x168] sm:$0xff]
          %v1608 = vld [vmem:[%s3 + $0x170] sm:$0xff]
          %v1609 = vld [vmem:[%s3 + $0x178] sm:$0xff]
          %v1610 = vld [vmem:[%s3 + $0x180] sm:$0xff]
          %v1611 = vld [vmem:[%s3 + $0x188] sm:$0xff]
          %v1612 = vld [vmem:[%s3 + $0x190] sm:$0xff]
          %v1613 = vld [vmem:[%s3 + $0x198] sm:$0xff]
          %v1614 = vld [vmem:[%s3 + $0x1a0] sm:$0xff]
          %v1615 = vld [vmem:[%s3 + $0x1a8] sm:$0xff]
          %v1616 = vld [vmem:[%s3 + $0x1b0] sm:$0xff]
          %v1617 = vld [vmem:[%s3 + $0x1b8] sm:$0xff]
          %v1618 = vld [vmem:[%s3 + $0x1c0] sm:$0xff]
          %v1619 = vld [vmem:[%s3 + $0x1c8] sm:$0xff]
          %v1620 = vld [vmem:[%s3 + $0x1d0] sm:$0xff]
          %v1621 = vld [vmem:[%s3 + $0x1d8] sm:$0xff]
          %v1622 = vld [vmem:[%s3 + $0x1e0] sm:$0xff]
          %v1623 = vld [vmem:[%s3 + $0x1e8] sm:$0xff]
          %v1624 = vld [vmem:[%s3 + $0x1f0] sm:$0xff]
          %v1625 = vld [vmem:[%s3 + $0x1f8] sm:$0xff]
          %v1626 = vld [vmem:[%s3 + $0x200] sm:$0xff]
          %v1627 = vld [vmem:[%s3 + $0x208] sm:$0xff]
          %v1628 = vld [vmem:[%s3 + $0x210] sm:$0xff]
          %v1629 = vld [vmem:[%s3 + $0x218] sm:$0xff]
          %v1630 = vld [vmem:[%s3 + $0x220] sm:$0xff]
          %v1631 = vld [vmem:[%s3 + $0x228] sm:$0xff]
          %v1632 = vld [vmem:[%s3 + $0x230] sm:$0xff]
          %v1633 = vld [vmem:[%s3 + $0x238] sm:$0xff]
          %v1634 = vld [vmem:[%s3 + $0x240] sm:$0xff]
          %v1635 = vld [vmem:[%s3 + $0x248] sm:$0xff]
          %v1636 = vld [vmem:[%s3 + $0x250] sm:$0xff]
          %v1637 = vld [vmem:[%s3 + $0x258] sm:$0xff]
          %v1638 = vld [vmem:[%s3 + $0x260] sm:$0xff]
          %v1639 = vld [vmem:[%s3 + $0x268] sm:$0xff]
          %v1640 = vld [vmem:[%s3 + $0x270] sm:$0xff]
          %v1641 = vld [vmem:[%s3 + $0x278] sm:$0xff]
          %v1642 = vld [vmem:[%s3 + $0x280] sm:$0xff]
          %v1643 = vld [vmem:[%s3 + $0x288] sm:$0xff]
          %v1644 = vld [vmem:[%s3 + $0x290] sm:$0xff]
          %v1645 = vld [vmem:[%s3 + $0x298] sm:$0xff]
          %v1646 = vld [vmem:[%s3 + $0x2a0] sm:$0xff]
          %v1647 = vld [vmem:[%s3 + $0x2a8] sm:$0xff]
          %v1648 = vld [vmem:[%s3 + $0x2b0] sm:$0xff]
          %v1649 = vld [vmem:[%s3 + $0x2b8] sm:$0xff]
          %v1650 = vld [vmem:[%s3 + $0x2c0] sm:$0xff]
          %v1651 = vld [vmem:[%s3 + $0x2c8] sm:$0xff]
          %v1652 = vld [vmem:[%s3 + $0x2d0] sm:$0xff]
          %v1653 = vld [vmem:[%s3 + $0x2d8] sm:$0xff]
          %v1654 = vld [vmem:[%s3 + $0x2e0] sm:$0xff]
          %v1655 = vld [vmem:[%s3 + $0x2e8] sm:$0xff]
          %v1656 = vld [vmem:[%s3 + $0x2f0] sm:$0xff]
          %v1657 = vld [vmem:[%s3 + $0x2f8] sm:$0xff]
          %v1658 = vld [vmem:[%s3 + $0x300] sm:$0xff]
          %v1659 = vld [vmem:[%s3 + $0x308] sm:$0xff]
          %v1660 = vld [vmem:[%s3 + $0x310] sm:$0xff]
          %v1661 = vld [vmem:[%s3 + $0x318] sm:$0xff]
          %v1662 = vld [vmem:[%s3 + $0x320] sm:$0xff]
          %v1663 = vld [vmem:[%s3 + $0x328] sm:$0xff]
          %v1664 = vld [vmem:[%s3 + $0x330] sm:$0xff]
          %v1665 = vld [vmem:[%s3 + $0x338] sm:$0xff]
          %v1666 = vld [vmem:[%s3 + $0x340] sm:$0xff]
          %v1667 = vld [vmem:[%s3 + $0x348] sm:$0xff]
          %v1668 = vld [vmem:[%s3 + $0x350] sm:$0xff]
          %v1669 = vld [vmem:[%s3 + $0x358] sm:$0xff]
          %v1670 = vld [vmem:[%s3 + $0x360] sm:$0xff]
          %v1671 = vld [vmem:[%s3 + $0x368] sm:$0xff]
          %v1672 = vld [vmem:[%s3 + $0x370] sm:$0xff]
          %v1673 = vld [vmem:[%s3 + $0x378] sm:$0xff]
          %v1674 = vld [vmem:[%s3 + $0x380] sm:$0xff]
          %v1675 = vld [vmem:[%s3 + $0x388] sm:$0xff]
          %v1676 = vld [vmem:[%s3 + $0x390] sm:$0xff]
          %v1677 = vld [vmem:[%s3 + $0x398] sm:$0xff]
          %v1678 = vld [vmem:[%s3 + $0x3a0] sm:$0xff]
          %v1679 = vld [vmem:[%s3 + $0x3a8] sm:$0xff]
          %v1680 = vld [vmem:[%s3 + $0x3b0] sm:$0xff]
          %v1681 = vld [vmem:[%s3 + $0x3b8] sm:$0xff]
          %v1682 = vld [vmem:[%s3 + $0x3c0] sm:$0xff]
          %v1683 = vld [vmem:[%s3 + $0x3c8] sm:$0xff]
          %v1684 = vld [vmem:[%s3 + $0x3d0] sm:$0xff]
          %v1685 = vld [vmem:[%s3 + $0x3d8] sm:$0xff]
          %v1686 = vld [vmem:[%s3 + $0x3e0] sm:$0xff]
          %v1687 = vld [vmem:[%s3 + $0x3e8] sm:$0xff]
          %v1688 = vld [vmem:[%s3 + $0x3f0] sm:$0xff]
          %v1689 = vld [vmem:[%s3 + $0x3f8] sm:$0xff]
          %v1690 = vld [vmem:[%s3 + $0x400] sm:$0xff]
          %v1691 = vld [vmem:[%s3 + $0x408] sm:$0xff]
          %v1692 = vld [vmem:[%s3 + $0x410] sm:$0xff]
          %v1693 = vld [vmem:[%s3 + $0x418] sm:$0xff]
          %v1694 = vld [vmem:[%s3 + $0x420] sm:$0xff]
          %v1695 = vld [vmem:[%s3 + $0x428] sm:$0xff]
          %v1696 = vld [vmem:[%s3 + $0x430] sm:$0xff]
          %v1697 = vld [vmem:[%s3 + $0x438] sm:$0xff]
          %v1698 = vld [vmem:[%s3 + $0x440] sm:$0xff]
          %v1699 = vld [vmem:[%s3 + $0x448] sm:$0xff]
          %v1700 = vld [vmem:[%s3 + $0x450] sm:$0xff]
          %v1701 = vld [vmem:[%s3 + $0x458] sm:$0xff]
          %v1702 = vld [vmem:[%s3 + $0x460] sm:$0xff]
          %v1703 = vld [vmem:[%s3 + $0x468] sm:$0xff]
          %v1704 = vld [vmem:[%s3 + $0x470] sm:$0xff]
          %v1705 = vld [vmem:[%s3 + $0x478] sm:$0xff]
          %v1706 = vld [vmem:[%s3 + $0x480] sm:$0xff]
          %v1707 = vld [vmem:[%s3 + $0x488] sm:$0xff]
          %v1708 = vld [vmem:[%s3 + $0x490] sm:$0xff]
          %v1709 = vld [vmem:[%s3 + $0x498] sm:$0xff]
          %v1710 = vld [vmem:[%s3 + $0x4a0] sm:$0xff]
          %v1711 = vld [vmem:[%s3 + $0x4a8] sm:$0xff]
          %v1712 = vld [vmem:[%s3 + $0x4b0] sm:$0xff]
          %v1713 = vld [vmem:[%s3 + $0x4b8] sm:$0xff]
          %v1714 = vld [vmem:[%s3 + $0x4c0] sm:$0xff]
          %v1715 = vld [vmem:[%s3 + $0x4c8] sm:$0xff]
          %v1716 = vld [vmem:[%s3 + $0x4d0] sm:$0xff]
          %v1717 = vld [vmem:[%s3 + $0x4d8] sm:$0xff]
          %v1718 = vld [vmem:[%s3 + $0x4e0] sm:$0xff]
          %v1719 = vld [vmem:[%s3 + $0x4e8] sm:$0xff]
          %v1720 = vld [vmem:[%s3 + $0x4f0] sm:$0xff]
          %v1721 = vld [vmem:[%s3 + $0x4f8] sm:$0xff]
          %v1722 = vld [vmem:[%s3 + $0x500] sm:$0xff]
          %v1723 = vld [vmem:[%s3 + $0x508] sm:$0xff]
          %v1724 = vld [vmem:[%s3 + $0x510] sm:$0xff]
          %v1725 = vld [vmem:[%s3 + $0x518] sm:$0xff]
          %v1726 = vld [vmem:[%s3 + $0x520] sm:$0xff]
          %v1727 = vld [vmem:[%s3 + $0x528] sm:$0xff]
          %v1728 = vld [vmem:[%s3 + $0x530] sm:$0xff]
          %v1729 = vld [vmem:[%s3 + $0x538] sm:$0xff]
          %v1730 = vld [vmem:[%s3 + $0x540] sm:$0xff]
          %v1731 = vld [vmem:[%s3 + $0x548] sm:$0xff]
          %v1732 = vld [vmem:[%s3 + $0x550] sm:$0xff]
          %v1733 = vld [vmem:[%s3 + $0x558] sm:$0xff]
          %v1734 = vld [vmem:[%s3 + $0x560] sm:$0xff]
          %v1735 = vld [vmem:[%s3 + $0x568] sm:$0xff]
          %v1736 = vld [vmem:[%s3 + $0x570] sm:$0xff]
          %v1737 = vld [vmem:[%s3 + $0x578] sm:$0xff]
          %v1738 = vld [vmem:[%s3 + $0x580] sm:$0xff]
          %v1739 = vld [vmem:[%s3 + $0x588] sm:$0xff]
          %v1740 = vld [vmem:[%s3 + $0x590] sm:$0xff]
          %v1741 = vld [vmem:[%s3 + $0x598] sm:$0xff]
          %v1742 = vld [vmem:[%s3 + $0x5a0] sm:$0xff]
          %v1743 = vld [vmem:[%s3 + $0x5a8] sm:$0xff]
          %v1744 = vld [vmem:[%s3 + $0x5b0] sm:$0xff]
          %v1745 = vld [vmem:[%s3 + $0x5b8] sm:$0xff]
          %v1746 = vld [vmem:[%s3 + $0x5c0] sm:$0xff]
          %v1747 = vld [vmem:[%s3 + $0x5c8] sm:$0xff]
          %v1748 = vld [vmem:[%s3 + $0x5d0] sm:$0xff]
          %v1749 = vld [vmem:[%s3 + $0x5d8] sm:$0xff]
          %v1750 = vld [vmem:[%s3 + $0x5e0] sm:$0xff]
          %v1751 = vld [vmem:[%s3 + $0x5e8] sm:$0xff]
          %v1752 = vld [vmem:[%s3 + $0x5f0] sm:$0xff]
          %v1753 = vld [vmem:[%s3 + $0x5f8] sm:$0xff]
          %v1754 = vld [vmem:[%s3 + $0x600] sm:$0xff]
          %v1755 = vld [vmem:[%s3 + $0x608] sm:$0xff]
          %v1756 = vld [vmem:[%s3 + $0x610] sm:$0xff]
          %v1757 = vld [vmem:[%s3 + $0x618] sm:$0xff]
          %v1758 = vld [vmem:[%s3 + $0x620] sm:$0xff]
          %v1759 = vld [vmem:[%s3 + $0x628] sm:$0xff]
          %v1760 = vld [vmem:[%s3 + $0x630] sm:$0xff]
          %v1761 = vld [vmem:[%s3 + $0x638] sm:$0xff]
          %v1762 = vld [vmem:[%s3 + $0x640] sm:$0xff]
          %v1763 = vld [vmem:[%s3 + $0x648] sm:$0xff]
          %v1764 = vld [vmem:[%s3 + $0x650] sm:$0xff]
          %v1765 = vld [vmem:[%s3 + $0x658] sm:$0xff]
          %v1766 = vld [vmem:[%s3 + $0x660] sm:$0xff]
          %v1767 = vld [vmem:[%s3 + $0x668] sm:$0xff]
          %v1768 = vld [vmem:[%s3 + $0x670] sm:$0xff]
          %v1769 = vld [vmem:[%s3 + $0x678] sm:$0xff]
          %v1770 = vld [vmem:[%s3 + $0x680] sm:$0xff]
          %v1771 = vld [vmem:[%s3 + $0x688] sm:$0xff]
          %v1772 = vld [vmem:[%s3 + $0x690] sm:$0xff]
          %v1773 = vld [vmem:[%s3 + $0x698] sm:$0xff]
          %v1774 = vld [vmem:[%s3 + $0x6a0] sm:$0xff]
          %v1775 = vld [vmem:[%s3 + $0x6a8] sm:$0xff]
          %v1776 = vld [vmem:[%s3 + $0x6b0] sm:$0xff]
          %v1777 = vld [vmem:[%s3 + $0x6b8] sm:$0xff]
          %v1778 = vld [vmem:[%s3 + $0x6c0] sm:$0xff]
          %v1779 = vld [vmem:[%s3 + $0x6c8] sm:$0xff]
          %v1780 = vld [vmem:[%s3 + $0x6d0] sm:$0xff]
          %v1781 = vld [vmem:[%s3 + $0x6d8] sm:$0xff]
          %v1782 = vld [vmem:[%s3 + $0x6e0] sm:$0xff]
          %v1783 = vld [vmem:[%s3 + $0x6e8] sm:$0xff]
          %v1784 = vld [vmem:[%s3 + $0x6f0] sm:$0xff]
          %v1785 = vld [vmem:[%s3 + $0x6f8] sm:$0xff]
          %v1786 = vld [vmem:[%s3 + $0x700] sm:$0xff]
          %v1787 = vld [vmem:[%s3 + $0x708] sm:$0xff]
          %v1788 = vld [vmem:[%s3 + $0x710] sm:$0xff]
          %v1789 = vld [vmem:[%s3 + $0x718] sm:$0xff]
          %v1790 = vld [vmem:[%s3 + $0x720] sm:$0xff]
          %v1791 = vld [vmem:[%s3 + $0x728] sm:$0xff]
          %v1792 = vld [vmem:[%s3 + $0x730] sm:$0xff]
          %v1793 = vld [vmem:[%s3 + $0x738] sm:$0xff]
          %v1794 = vld [vmem:[%s3 + $0x740] sm:$0xff]
          %v1795 = vld [vmem:[%s3 + $0x748] sm:$0xff]
          %v1796 = vld [vmem:[%s3 + $0x750] sm:$0xff]
          %v1797 = vld [vmem:[%s3 + $0x758] sm:$0xff]
          %v1798 = vld [vmem:[%s3 + $0x760] sm:$0xff]
          %v1799 = vld [vmem:[%s3 + $0x768] sm:$0xff]
          %v1800 = vld [vmem:[%s3 + $0x770] sm:$0xff]
          %v1801 = vld [vmem:[%s3 + $0x778] sm:$0xff]
          %v1802 = vld [vmem:[%s3 + $0x780] sm:$0xff]
          %v1803 = vld [vmem:[%s3 + $0x788] sm:$0xff]
          %v1804 = vld [vmem:[%s3 + $0x790] sm:$0xff]
          %v1805 = vld [vmem:[%s3 + $0x798] sm:$0xff]
          %v1806 = vld [vmem:[%s3 + $0x7a0] sm:$0xff]
          %v1807 = vld [vmem:[%s3 + $0x7a8] sm:$0xff]
          %v1808 = vld [vmem:[%s3 + $0x7b0] sm:$0xff]
          %v1809 = vld [vmem:[%s3 + $0x7b8] sm:$0xff]
          %v1810 = vld [vmem:[%s3 + $0x7c0] sm:$0xff]
          %v1811 = vld [vmem:[%s3 + $0x7c8] sm:$0xff]
          %v1812 = vld [vmem:[%s3 + $0x7d0] sm:$0xff]
          %v1813 = vld [vmem:[%s3 + $0x7d8] sm:$0xff]
          %v1814 = vld [vmem:[%s3 + $0x7e0] sm:$0xff]
          %v1815 = vld [vmem:[%s3 + $0x7e8] sm:$0xff]
          %v1816 = vld [vmem:[%s3 + $0x7f0] sm:$0xff]
          %v1817 = vld [vmem:[%s3 + $0x7f8] sm:$0xff]
          %v1818 = vld [vmem:[%s3 + $0x800] sm:$0xff]
          %v1819 = vld [vmem:[%s3 + $0x808] sm:$0xff]
          %v1820 = vld [vmem:[%s3 + $0x810] sm:$0xff]
          %v1821 = vld [vmem:[%s3 + $0x818] sm:$0xff]
          %v1822 = vld [vmem:[%s3 + $0x820] sm:$0xff]
          %v1823 = vld [vmem:[%s3 + $0x828] sm:$0xff]
          %v1824 = vld [vmem:[%s3 + $0x830] sm:$0xff]
          %v1825 = vld [vmem:[%s3 + $0x838] sm:$0xff]
          %v1826 = vld [vmem:[%s3 + $0x840] sm:$0xff]
          %v1827 = vld [vmem:[%s3 + $0x848] sm:$0xff]
          %v1828 = vld [vmem:[%s3 + $0x850] sm:$0xff]
          %v1829 = vld [vmem:[%s3 + $0x858] sm:$0xff]
          %v1830 = vld [vmem:[%s3 + $0x860] sm:$0xff]
          %v1831 = vld [vmem:[%s3 + $0x868] sm:$0xff]
          %v1832 = vld [vmem:[%s3 + $0x870] sm:$0xff]
          %v1833 = vld [vmem:[%s3 + $0x878] sm:$0xff]
          %v1834 = vld [vmem:[%s3 + $0x880] sm:$0xff]
          %v1835 = vld [vmem:[%s3 + $0x888] sm:$0xff]
          %v1836 = vld [vmem:[%s3 + $0x890] sm:$0xff]
          %v1837 = vld [vmem:[%s3 + $0x898] sm:$0xff]
          %v1838 = vld [vmem:[%s3 + $0x8a0] sm:$0xff]
          %v1839 = vld [vmem:[%s3 + $0x8a8] sm:$0xff]
          %v1840 = vld [vmem:[%s3 + $0x8b0] sm:$0xff]
          %v1841 = vld [vmem:[%s3 + $0x8b8] sm:$0xff]
          %v1842 = vld [vmem:[%s3 + $0x8c0] sm:$0xff]
          %v1843 = vld [vmem:[%s3 + $0x8c8] sm:$0xff]
          %v1844 = vld [vmem:[%s3 + $0x8d0] sm:$0xff]
          %v1845 = vld [vmem:[%s3 + $0x8d8] sm:$0xff]
          %v1846 = vld [vmem:[%s3 + $0x8e0] sm:$0xff]
          %v1847 = vld [vmem:[%s3 + $0x8e8] sm:$0xff]
          %v1848 = vld [vmem:[%s3 + $0x8f0] sm:$0xff]
          %v1849 = vld [vmem:[%s3 + $0x8f8] sm:$0xff]
          %v1850 = vld [vmem:[%s3 + $0x900] sm:$0xff]
          %v1851 = vld [vmem:[%s3 + $0x908] sm:$0xff]
          %v1852 = vld [vmem:[%s3 + $0x910] sm:$0xff]
          %v1853 = vld [vmem:[%s3 + $0x918] sm:$0xff]
          %v1854 = vld [vmem:[%s3 + $0x920] sm:$0xff]
          %v1855 = vld [vmem:[%s3 + $0x928] sm:$0xff]
          %v1856 = vld [vmem:[%s3 + $0x930] sm:$0xff]
          %v1857 = vld [vmem:[%s3 + $0x938] sm:$0xff]
          %v1858 = vld [vmem:[%s3 + $0x940] sm:$0xff]
          %v1859 = vld [vmem:[%s3 + $0x948] sm:$0xff]
          %v1860 = vld [vmem:[%s3 + $0x950] sm:$0xff]
          %v1861 = vld [vmem:[%s3 + $0x958] sm:$0xff]
          %v1862 = vld [vmem:[%s3 + $0x960] sm:$0xff]
          %v1863 = vld [vmem:[%s3 + $0x968] sm:$0xff]
          %v1864 = vld [vmem:[%s3 + $0x970] sm:$0xff]
          %v1865 = vld [vmem:[%s3 + $0x978] sm:$0xff]
          %v1866 = vld [vmem:[%s3 + $0x980] sm:$0xff]
          %v1867 = vld [vmem:[%s3 + $0x988] sm:$0xff]
          %v1868 = vld [vmem:[%s3 + $0x990] sm:$0xff]
          %v1869 = vld [vmem:[%s3 + $0x998] sm:$0xff]
          %v1870 = vld [vmem:[%s3 + $0x9a0] sm:$0xff]
          %v1871 = vld [vmem:[%s3 + $0x9a8] sm:$0xff]
          %v1872 = vld [vmem:[%s3 + $0x9b0] sm:$0xff]
          %v1873 = vld [vmem:[%s3 + $0x9b8] sm:$0xff]
          %v1874 = vld [vmem:[%s3 + $0x9c0] sm:$0xff]
          %v1875 = vld [vmem:[%s3 + $0x9c8] sm:$0xff]
          %v1876 = vld [vmem:[%s3 + $0x9d0] sm:$0xff]
          %v1877 = vld [vmem:[%s3 + $0x9d8] sm:$0xff]
          %v1878 = vld [vmem:[%s3 + $0x9e0] sm:$0xff]
          %v1879 = vld [vmem:[%s3 + $0x9e8] sm:$0xff]
          %v1880 = vld [vmem:[%s3 + $0x9f0] sm:$0xff]
          %v1881 = vld [vmem:[%s3 + $0x9f8] sm:$0xff]
          %v1882 = vld [vmem:[%s3 + $0xa00] sm:$0xff]
          %v1883 = vld [vmem:[%s3 + $0xa08] sm:$0xff]
          %v1884 = vld [vmem:[%s3 + $0xa10] sm:$0xff]
          %v1885 = vld [vmem:[%s3 + $0xa18] sm:$0xff]
          %v1886 = vld [vmem:[%s3 + $0xa20] sm:$0xff]
          %v1887 = vld [vmem:[%s3 + $0xa28] sm:$0xff]
          %v1888 = vld [vmem:[%s3 + $0xa30] sm:$0xff]
          %v1889 = vld [vmem:[%s3 + $0xa38] sm:$0xff]
          %v1890 = vld [vmem:[%s3 + $0xa40] sm:$0xff]
          %v1891 = vld [vmem:[%s3 + $0xa48] sm:$0xff]
          %v1892 = vld [vmem:[%s3 + $0xa50] sm:$0xff]
          %v1893 = vld [vmem:[%s3 + $0xa58] sm:$0xff]
          %v1894 = vld [vmem:[%s3 + $0xa60] sm:$0xff]
          %v1895 = vld [vmem:[%s3 + $0xa68] sm:$0xff]
          %v1896 = vld [vmem:[%s3 + $0xa70] sm:$0xff]
          %v1897 = vld [vmem:[%s3 + $0xa78] sm:$0xff]
          %v1898 = vld [vmem:[%s3 + $0xa80] sm:$0xff]
          %v1899 = vld [vmem:[%s3 + $0xa88] sm:$0xff]
          %v1900 = vld [vmem:[%s3 + $0xa90] sm:$0xff]
          %v1901 = vld [vmem:[%s3 + $0xa98] sm:$0xff]
          %v1902 = vld [vmem:[%s3 + $0xaa0] sm:$0xff]
          %v1903 = vld [vmem:[%s3 + $0xaa8] sm:$0xff]
          %v1904 = vld [vmem:[%s3 + $0xab0] sm:$0xff]
          %v1905 = vld [vmem:[%s3 + $0xab8] sm:$0xff]
          %v1906 = vld [vmem:[%s3 + $0xac0] sm:$0xff]
          %v1907 = vld [vmem:[%s3 + $0xac8] sm:$0xff]
          %v1908 = vld [vmem:[%s3 + $0xad0] sm:$0xff]
          %v1909 = vld [vmem:[%s3 + $0xad8] sm:$0xff]
          %v1910 = vld [vmem:[%s3 + $0xae0] sm:$0xff]
          %v1911 = vld [vmem:[%s3 + $0xae8] sm:$0xff]
          %v1912 = vld [vmem:[%s3 + $0xaf0] sm:$0xff]
          %v1913 = vld [vmem:[%s3 + $0xaf8] sm:$0xff]
          %v1914 = vld [vmem:[%s3 + $0xb00] sm:$0xff]
          %v1915 = vld [vmem:[%s3 + $0xb08] sm:$0xff]
          %v1916 = vld [vmem:[%s3 + $0xb10] sm:$0xff]
          %v1917 = vld [vmem:[%s3 + $0xb18] sm:$0xff]
          %v1918 = vld [vmem:[%s3 + $0xb20] sm:$0xff]
          %v1919 = vld [vmem:[%s3 + $0xb28] sm:$0xff]
          %v1920 = vld [vmem:[%s3 + $0xb30] sm:$0xff]
          %v1921 = vld [vmem:[%s3 + $0xb38] sm:$0xff]
          %v1922 = vld [vmem:[%s3 + $0xb40] sm:$0xff]
          %v1923 = vld [vmem:[%s3 + $0xb48] sm:$0xff]
          %v1924 = vld [vmem:[%s3 + $0xb50] sm:$0xff]
          %v1925 = vld [vmem:[%s3 + $0xb58] sm:$0xff]
          %v1926 = vld [vmem:[%s3 + $0xb60] sm:$0xff]
          %v1927 = vld [vmem:[%s3 + $0xb68] sm:$0xff]
          %v1928 = vld [vmem:[%s3 + $0xb70] sm:$0xff]
          %v1929 = vld [vmem:[%s3 + $0xb78] sm:$0xff]
          %v1930 = vld [vmem:[%s3 + $0xb80] sm:$0xff]
          %v1931 = vld [vmem:[%s3 + $0xb88] sm:$0xff]
          %v1932 = vld [vmem:[%s3 + $0xb90] sm:$0xff]
          %v1933 = vld [vmem:[%s3 + $0xb98] sm:$0xff]
          %v1934 = vld [vmem:[%s3 + $0xba0] sm:$0xff]
          %v1935 = vld [vmem:[%s3 + $0xba8] sm:$0xff]
          %v1936 = vld [vmem:[%s3 + $0xbb0] sm:$0xff]
          %v1937 = vld [vmem:[%s3 + $0xbb8] sm:$0xff]
          %v1938 = vld [vmem:[%s3 + $0xbc0] sm:$0xff]
          %v1939 = vld [vmem:[%s3 + $0xbc8] sm:$0xff]
          %v1940 = vld [vmem:[%s3 + $0xbd0] sm:$0xff]
          %v1941 = vld [vmem:[%s3 + $0xbd8] sm:$0xff]
          %v1942 = vld [vmem:[%s3 + $0xbe0] sm:$0xff]
          %v1943 = vld [vmem:[%s3 + $0xbe8] sm:$0xff]
          %v1944 = vld [vmem:[%s3 + $0xbf0] sm:$0xff]
          %v1945 = vld [vmem:[%s3 + $0xbf8] sm:$0xff]
          %v1946 = vld [vmem:[%s3 + $0xc00] sm:$0xff]
          %v1947 = vld [vmem:[%s3 + $0xc08] sm:$0xff]
          %v1948 = vld [vmem:[%s3 + $0xc10] sm:$0xff]
          %v1949 = vld [vmem:[%s3 + $0xc18] sm:$0xff]
          %v1950 = vld [vmem:[%s3 + $0xc20] sm:$0xff]
          %v1951 = vld [vmem:[%s3 + $0xc28] sm:$0xff]
          %v1952 = vld [vmem:[%s3 + $0xc30] sm:$0xff]
          %v1953 = vld [vmem:[%s3 + $0xc38] sm:$0xff]
          %v1954 = vld [vmem:[%s3 + $0xc40] sm:$0xff]
          %v1955 = vld [vmem:[%s3 + $0xc48] sm:$0xff]
          %v1956 = vld [vmem:[%s3 + $0xc50] sm:$0xff]
          %v1957 = vld [vmem:[%s3 + $0xc58] sm:$0xff]
          %v1958 = vld [vmem:[%s3 + $0xc60] sm:$0xff]
          %v1959 = vld [vmem:[%s3 + $0xc68] sm:$0xff]
          %v1960 = vld [vmem:[%s3 + $0xc70] sm:$0xff]
          %v1961 = vld [vmem:[%s3 + $0xc78] sm:$0xff]
          %v1962 = vld [vmem:[%s3 + $0xc80] sm:$0xff]
          %v1963 = vld [vmem:[%s3 + $0xc88] sm:$0xff]
          %v1964 = vld [vmem:[%s3 + $0xc90] sm:$0xff]
          %v1965 = vld [vmem:[%s3 + $0xc98] sm:$0xff]
          %v1966 = vld [vmem:[%s3 + $0xca0] sm:$0xff]
          %v1967 = vld [vmem:[%s3 + $0xca8] sm:$0xff]
          %v1968 = vld [vmem:[%s3 + $0xcb0] sm:$0xff]
          %v1969 = vld [vmem:[%s3 + $0xcb8] sm:$0xff]
          %v1970 = vld [vmem:[%s3 + $0xcc0] sm:$0xff]
          %v1971 = vld [vmem:[%s3 + $0xcc8] sm:$0xff]
          %v1972 = vld [vmem:[%s3 + $0xcd0] sm:$0xff]
          %v1973 = vld [vmem:[%s3 + $0xcd8] sm:$0xff]
          %v1974 = vld [vmem:[%s3 + $0xce0] sm:$0xff]
          %v1975 = vld [vmem:[%s3 + $0xce8] sm:$0xff]
          %v1976 = vld [vmem:[%s3 + $0xcf0] sm:$0xff]
          %v1977 = vld [vmem:[%s3 + $0xcf8] sm:$0xff]
          %v1978 = vld [vmem:[%s3 + $0xd00] sm:$0xff]
          %v1979 = vld [vmem:[%s3 + $0xd08] sm:$0xff]
          %v1980 = vld [vmem:[%s3 + $0xd10] sm:$0xff]
          %v1981 = vld [vmem:[%s3 + $0xd18] sm:$0xff]
          %v1982 = vld [vmem:[%s3 + $0xd20] sm:$0xff]
          %v1983 = vld [vmem:[%s3 + $0xd28] sm:$0xff]
          %v1984 = vld [vmem:[%s3 + $0xd30] sm:$0xff]
          %v1985 = vld [vmem:[%s3 + $0xd38] sm:$0xff]
          %v1986 = vld [vmem:[%s3 + $0xd40] sm:$0xff]
          %v1987 = vld [vmem:[%s3 + $0xd48] sm:$0xff]
          %v1988 = vld [vmem:[%s3 + $0xd50] sm:$0xff]
          %v1989 = vld [vmem:[%s3 + $0xd58] sm:$0xff]
          %v1990 = vld [vmem:[%s3 + $0xd60] sm:$0xff]
          %v1991 = vld [vmem:[%s3 + $0xd68] sm:$0xff]
          %v1992 = vld [vmem:[%s3 + $0xd70] sm:$0xff]
          %v1993 = vld [vmem:[%s3 + $0xd78] sm:$0xff]
          %v1994 = vld [vmem:[%s3 + $0xd80] sm:$0xff]
          %v1995 = vld [vmem:[%s3 + $0xd88] sm:$0xff]
          %v1996 = vld [vmem:[%s3 + $0xd90] sm:$0xff]
          %v1997 = vld [vmem:[%s3 + $0xd98] sm:$0xff]
          %v1998 = vld [vmem:[%s3 + $0xda0] sm:$0xff]
          %v1999 = vld [vmem:[%s3 + $0xda8] sm:$0xff]
          %v2000 = vld [vmem:[%s3 + $0xdb0] sm:$0xff]
          %v2001 = vld [vmem:[%s3 + $0xdb8] sm:$0xff]
          %v2002 = vld [vmem:[%s3 + $0xdc0] sm:$0xff]
          %v2003 = vld [vmem:[%s3 + $0xdc8] sm:$0xff]
          %v2004 = vld [vmem:[%s3 + $0xdd0] sm:$0xff]
          %v2005 = vld [vmem:[%s3 + $0xdd8] sm:$0xff]
          %v2006 = vld [vmem:[%s3 + $0xde0] sm:$0xff]
          %v2007 = vld [vmem:[%s3 + $0xde8] sm:$0xff]
          %v2008 = vld [vmem:[%s3 + $0xdf0] sm:$0xff]
          %v2009 = vld [vmem:[%s3 + $0xdf8] sm:$0xff]
          %v2010 = vld [vmem:[%s3 + $0xe00] sm:$0xff]
          %v2011 = vld [vmem:[%s3 + $0xe08] sm:$0xff]
          %v2012 = vld [vmem:[%s3 + $0xe10] sm:$0xff]
          %v2013 = vld [vmem:[%s3 + $0xe18] sm:$0xff]
          %v2014 = vld [vmem:[%s3 + $0xe20] sm:$0xff]
          %v2015 = vld [vmem:[%s3 + $0xe28] sm:$0xff]
          %v2016 = vld [vmem:[%s3 + $0xe30] sm:$0xff]
          %v2017 = vld [vmem:[%s3 + $0xe38] sm:$0xff]
          %v2018 = vld [vmem:[%s3 + $0xe40] sm:$0xff]
          %v2019 = vld [vmem:[%s3 + $0xe48] sm:$0xff]
          %v2020 = vld [vmem:[%s3 + $0xe50] sm:$0xff]
          %v2021 = vld [vmem:[%s3 + $0xe58] sm:$0xff]
          %v2022 = vld [vmem:[%s3 + $0xe60] sm:$0xff]
          %v2023 = vld [vmem:[%s3 + $0xe68] sm:$0xff]
          %v2024 = vld [vmem:[%s3 + $0xe70] sm:$0xff]
          %v2025 = vld [vmem:[%s3 + $0xe78] sm:$0xff]
          %v2026 = vld [vmem:[%s3 + $0xe80] sm:$0xff]
          %v2027 = vld [vmem:[%s3 + $0xe88] sm:$0xff]
          %v2028 = vld [vmem:[%s3 + $0xe90] sm:$0xff]
          %v2029 = vld [vmem:[%s3 + $0xe98] sm:$0xff]
          %v2030 = vld [vmem:[%s3 + $0xea0] sm:$0xff]
          %v2031 = vld [vmem:[%s3 + $0xea8] sm:$0xff]
          %v2032 = vld [vmem:[%s3 + $0xeb0] sm:$0xff]
          %v2033 = vld [vmem:[%s3 + $0xeb8] sm:$0xff]
          %v2034 = vld [vmem:[%s3 + $0xec0] sm:$0xff]
          %v2035 = vld [vmem:[%s3 + $0xec8] sm:$0xff]
          %v2036 = vld [vmem:[%s3 + $0xed0] sm:$0xff]
          %v2037 = vld [vmem:[%s3 + $0xed8] sm:$0xff]
          %v2038 = vld [vmem:[%s3 + $0xee0] sm:$0xff]
          %v2039 = vld [vmem:[%s3 + $0xee8] sm:$0xff]
          %v2040 = vld [vmem:[%s3 + $0xef0] sm:$0xff]
          %v2041 = vld [vmem:[%s3 + $0xef8] sm:$0xff]
          %v2042 = vld [vmem:[%s3 + $0xf00] sm:$0xff]
          %v2043 = vld [vmem:[%s3 + $0xf08] sm:$0xff]
          %v2044 = vld [vmem:[%s3 + $0xf10] sm:$0xff]
          %v2045 = vld [vmem:[%s3 + $0xf18] sm:$0xff]
          %v2046 = vld [vmem:[%s3 + $0xf20] sm:$0xff]
          %v2047 = vld [vmem:[%s3 + $0xf28] sm:$0xff]
          %v2048 = vld [vmem:[%s3 + $0xf30] sm:$0xff]
          %v2049 = vld [vmem:[%s3 + $0xf38] sm:$0xff]
          %v2050 = vld [vmem:[%s3 + $0xf40] sm:$0xff]
          %v2051 = vld [vmem:[%s3 + $0xf48] sm:$0xff]
          %v2052 = vld [vmem:[%s3 + $0xf50] sm:$0xff]
          %v2053 = vld [vmem:[%s3 + $0xf58] sm:$0xff]
          %v2054 = vld [vmem:[%s3 + $0xf60] sm:$0xff]
          %v2055 = vld [vmem:[%s3 + $0xf68] sm:$0xff]
          %v2056 = vld [vmem:[%s3 + $0xf70] sm:$0xff]
          %v2057 = vld [vmem:[%s3 + $0xf78] sm:$0xff]
          %v2058 = vld [vmem:[%s3 + $0xf80] sm:$0xff]
          %v2059 = vld [vmem:[%s3 + $0xf88] sm:$0xff]
          %v2060 = vld [vmem:[%s3 + $0xf90] sm:$0xff]
          %v2061 = vld [vmem:[%s3 + $0xf98] sm:$0xff]
          %v2062 = vld [vmem:[%s3 + $0xfa0] sm:$0xff]
          %v2063 = vld [vmem:[%s3 + $0xfa8] sm:$0xff]
          %v2064 = vld [vmem:[%s3 + $0xfb0] sm:$0xff]
          %v2065 = vld [vmem:[%s3 + $0xfb8] sm:$0xff]
          %v2066 = vld [vmem:[%s3 + $0xfc0] sm:$0xff]
          %v2067 = vld [vmem:[%s3 + $0xfc8] sm:$0xff]
          %v2068 = vld [vmem:[%s3 + $0xfd0] sm:$0xff]
          %v2069 = vld [vmem:[%s3 + $0xfd8] sm:$0xff]
          %v2070 = vld [vmem:[%s3 + $0xfe0] sm:$0xff]
          %v2071 = vld [vmem:[%s3 + $0xfe8] sm:$0xff]
          %v2072 = vld [vmem:[%s3 + $0xff0] sm:$0xff]
          %v2073 = vld [vmem:[%s3 + $0xff8] sm:$0xff]
          %v2074 = vld [vmem:[%s3 + $0x1000] sm:$0xff]
          %v2075 = vld [vmem:[%s3 + $0x1008] sm:$0xff]
          %v2076 = vld [vmem:[%s3 + $0x1010] sm:$0xff]
          %v2077 = vld [vmem:[%s3 + $0x1018] sm:$0xff]
          %v2078 = vld [vmem:[%s3 + $0x1020] sm:$0xff]
          %v2079 = vld [vmem:[%s3 + $0x1028] sm:$0xff]
          %v2080 = vld [vmem:[%s3 + $0x1030] sm:$0xff]
          %v2081 = vld [vmem:[%s3 + $0x1038] sm:$0xff]
          %v2082 = vld [vmem:[%s3 + $0x1040] sm:$0xff]
          %v2083 = vld [vmem:[%s3 + $0x1048] sm:$0xff]
          %v2084 = vld [vmem:[%s3 + $0x1050] sm:$0xff]
          %v2085 = vld [vmem:[%s3 + $0x1058] sm:$0xff]
          %v2086 = vld [vmem:[%s3 + $0x1060] sm:$0xff]
          %v2087 = vld [vmem:[%s3 + $0x1068] sm:$0xff]
          %v2088 = vld [vmem:[%s3 + $0x1070] sm:$0xff]
          %v2089 = vld [vmem:[%s3 + $0x1078] sm:$0xff]
          %v2090 = vld [vmem:[%s3 + $0x1080] sm:$0xff]
          %v2091 = vld [vmem:[%s3 + $0x1088] sm:$0xff]
          %v2092 = vld [vmem:[%s3 + $0x1090] sm:$0xff]
          %v2093 = vld [vmem:[%s3 + $0x1098] sm:$0xff]
          %v2094 = vld [vmem:[%s3 + $0x10a0] sm:$0xff]
          %v2095 = vld [vmem:[%s3 + $0x10a8] sm:$0xff]
          %v2096 = vld [vmem:[%s3 + $0x10b0] sm:$0xff]
          %v2097 = vld [vmem:[%s3 + $0x10b8] sm:$0xff]
          %v2098 = vld [vmem:[%s3 + $0x10c0] sm:$0xff]
          %v2099 = vld [vmem:[%s3 + $0x10c8] sm:$0xff]
          %v2100 = vld [vmem:[%s3 + $0x10d0] sm:$0xff]
          %v2101 = vld [vmem:[%s3 + $0x10d8] sm:$0xff]
          %v2102 = vld [vmem:[%s3 + $0x10e0] sm:$0xff]
          %v2103 = vld [vmem:[%s3 + $0x10e8] sm:$0xff]
          %v2104 = vld [vmem:[%s3 + $0x10f0] sm:$0xff]
          %v2105 = vld [vmem:[%s3 + $0x10f8] sm:$0xff]
          %v2106 = vld [vmem:[%s3 + $0x1100] sm:$0xff]
          %v2107 = vld [vmem:[%s3 + $0x1108] sm:$0xff]
          %v2108 = vld [vmem:[%s3 + $0x1110] sm:$0xff]
          %v2109 = vld [vmem:[%s3 + $0x1118] sm:$0xff]
          %v2110 = vld [vmem:[%s3 + $0x1120] sm:$0xff]
          %v2111 = vld [vmem:[%s3 + $0x1128] sm:$0xff]
          %v2112 = vld [vmem:[%s3 + $0x1130] sm:$0xff]
          %v2113 = vld [vmem:[%s3 + $0x1138] sm:$0xff]
          %v2114 = vld [vmem:[%s3 + $0x1140] sm:$0xff]
          %v2115 = vld [vmem:[%s3 + $0x1148] sm:$0xff]
          %v2116 = vld [vmem:[%s3 + $0x1150] sm:$0xff]
          %v2117 = vld [vmem:[%s3 + $0x1158] sm:$0xff]
          %v2118 = vld [vmem:[%s3 + $0x1160] sm:$0xff]
          %v2119 = vld [vmem:[%s3 + $0x1168] sm:$0xff]
          %v2120 = vld [vmem:[%s3 + $0x1170] sm:$0xff]
          %v2121 = vld [vmem:[%s3 + $0x1178] sm:$0xff]
          %v2122 = vld [vmem:[%s3 + $0x1180] sm:$0xff]
          %v2123 = vld [vmem:[%s3 + $0x1188] sm:$0xff]
          %v2124 = vld [vmem:[%s3 + $0x1190] sm:$0xff]
          %v2125 = vld [vmem:[%s3 + $0x1198] sm:$0xff]
          %v2126 = vld [vmem:[%s3 + $0x11a0] sm:$0xff]
          %v2127 = vld [vmem:[%s3 + $0x11a8] sm:$0xff]
          %v2128 = vld [vmem:[%s3 + $0x11b0] sm:$0xff]
          %v2129 = vld [vmem:[%s3 + $0x11b8] sm:$0xff]
          %v2130 = vld [vmem:[%s3 + $0x11c0] sm:$0xff]
          %v2131 = vld [vmem:[%s3 + $0x11c8] sm:$0xff]
          %v2132 = vld [vmem:[%s3 + $0x11d0] sm:$0xff]
          %v2133 = vld [vmem:[%s3 + $0x11d8] sm:$0xff]
          %v2134 = vld [vmem:[%s3 + $0x11e0] sm:$0xff]
          %v2135 = vld [vmem:[%s3 + $0x11e8] sm:$0xff]
          %v2136 = vld [vmem:[%s3 + $0x11f0] sm:$0xff]
          %v2137 = vld [vmem:[%s3 + $0x11f8] sm:$0xff]
          %v2138 = vld [vmem:[%s3 + $0x1200] sm:$0xff]
          %v2139 = vld [vmem:[%s3 + $0x1208] sm:$0xff]
          %v2140 = vld [vmem:[%s3 + $0x1210] sm:$0xff]
          %v2141 = vld [vmem:[%s3 + $0x1218] sm:$0xff]
          %v2142 = vld [vmem:[%s3 + $0x1220] sm:$0xff]
          %v2143 = vld [vmem:[%s3 + $0x1228] sm:$0xff]
          %v2144 = vld [vmem:[%s3 + $0x1230] sm:$0xff]
          %v2145 = vld [vmem:[%s3 + $0x1238] sm:$0xff]
          %v2146 = vld [vmem:[%s3 + $0x1240] sm:$0xff]
          %v2147 = vld [vmem:[%s3 + $0x1248] sm:$0xff]
          %v2148 = vld [vmem:[%s3 + $0x1250] sm:$0xff]
          %v2149 = vld [vmem:[%s3 + $0x1258] sm:$0xff]
          %v2150 = vld [vmem:[%s3 + $0x1260] sm:$0xff]
          %v2151 = vld [vmem:[%s3 + $0x1268] sm:$0xff]
          %v2152 = vld [vmem:[%s3 + $0x1270] sm:$0xff]
          %v2153 = vld [vmem:[%s3 + $0x1278] sm:$0xff]
          %v2154 = vld [vmem:[%s3 + $0x1280] sm:$0xff]
          %v2155 = vld [vmem:[%s3 + $0x1288] sm:$0xff]
          %v2156 = vld [vmem:[%s3 + $0x1290] sm:$0xff]
          %v2157 = vld [vmem:[%s3 + $0x1298] sm:$0xff]
          %v2158 = vld [vmem:[%s3 + $0x12a0] sm:$0xff]
          %v2159 = vld [vmem:[%s3 + $0x12a8] sm:$0xff]
          %v2160 = vld [vmem:[%s3 + $0x12b0] sm:$0xff]
          %v2161 = vld [vmem:[%s3 + $0x12b8] sm:$0xff]
          %v2162 = vld [vmem:[%s3 + $0x12c0] sm:$0xff]
          %v2163 = vld [vmem:[%s3 + $0x12c8] sm:$0xff]
          %v2164 = vld [vmem:[%s3 + $0x12d0] sm:$0xff]
          %v2165 = vld [vmem:[%s3 + $0x12d8] sm:$0xff]
          %v2166 = vld [vmem:[%s3 + $0x12e0] sm:$0xff]
          %v2167 = vld [vmem:[%s3 + $0x12e8] sm:$0xff]
          %v2168 = vld [vmem:[%s3 + $0x12f0] sm:$0xff]
          %v2169 = vld [vmem:[%s3 + $0x12f8] sm:$0xff]
          %v2170 = vld [vmem:[%s3 + $0x1300] sm:$0xff]
          %v2171 = vld [vmem:[%s3 + $0x1308] sm:$0xff]
          %v2172 = vld [vmem:[%s3 + $0x1310] sm:$0xff]
          %v2173 = vld [vmem:[%s3 + $0x1318] sm:$0xff]
          %v2174 = vld [vmem:[%s3 + $0x1320] sm:$0xff]
          %v2175 = vld [vmem:[%s3 + $0x1328] sm:$0xff]
          %v2176 = vld [vmem:[%s3 + $0x1330] sm:$0xff]
          %v2177 = vld [vmem:[%s3 + $0x1338] sm:$0xff]
          %v2178 = vld [vmem:[%s3 + $0x1340] sm:$0xff]
          %v2179 = vld [vmem:[%s3 + $0x1348] sm:$0xff]
          %v2180 = vld [vmem:[%s3 + $0x1350] sm:$0xff]
          %v2181 = vld [vmem:[%s3 + $0x1358] sm:$0xff]
          %v2182 = vld [vmem:[%s3 + $0x1360] sm:$0xff]
          %v2183 = vld [vmem:[%s3 + $0x1368] sm:$0xff]
          %v2184 = vld [vmem:[%s3 + $0x1370] sm:$0xff]
          %v2185 = vld [vmem:[%s3 + $0x1378] sm:$0xff]
          %v2186 = vld [vmem:[%s3 + $0x1380] sm:$0xff]
          %v2187 = vld [vmem:[%s3 + $0x1388] sm:$0xff]
          %v2188 = vld [vmem:[%s3 + $0x1390] sm:$0xff]
          %v2189 = vld [vmem:[%s3 + $0x1398] sm:$0xff]
          %v2190 = vld [vmem:[%s3 + $0x13a0] sm:$0xff]
          %v2191 = vld [vmem:[%s3 + $0x13a8] sm:$0xff]
          %v2192 = vld [vmem:[%s3 + $0x13b0] sm:$0xff]
          %v2193 = vld [vmem:[%s3 + $0x13b8] sm:$0xff]
          %v2194 = vld [vmem:[%s3 + $0x13c0] sm:$0xff]
          %v2195 = vld [vmem:[%s3 + $0x13c8] sm:$0xff]
          %v2196 = vld [vmem:[%s3 + $0x13d0] sm:$0xff]
          %v2197 = vld [vmem:[%s3 + $0x13d8] sm:$0xff]
          %v2198 = vld [vmem:[%s3 + $0x13e0] sm:$0xff]
          %v2199 = vld [vmem:[%s3 + $0x13e8] sm:$0xff]
          %v2200 = vld [vmem:[%s3 + $0x13f0] sm:$0xff]
          %v2201 = vld [vmem:[%s3 + $0x13f8] sm:$0xff]
          %v2202 = vld [vmem:[%s3 + $0x1400] sm:$0xff]
          %v2203 = vld [vmem:[%s3 + $0x1408] sm:$0xff]
          %v2204 = vld [vmem:[%s3 + $0x1410] sm:$0xff]
          %v2205 = vld [vmem:[%s3 + $0x1418] sm:$0xff]
          %v2206 = vld [vmem:[%s3 + $0x1420] sm:$0xff]
          %v2207 = vld [vmem:[%s3 + $0x1428] sm:$0xff]
          %v2208 = vld [vmem:[%s3 + $0x1430] sm:$0xff]
          %v2209 = vld [vmem:[%s3 + $0x1438] sm:$0xff]
          %v2210 = vld [vmem:[%s3 + $0x1440] sm:$0xff]
          %v2211 = vld [vmem:[%s3 + $0x1448] sm:$0xff]
          %v2212 = vld [vmem:[%s3 + $0x1450] sm:$0xff]
          %v2213 = vld [vmem:[%s3 + $0x1458] sm:$0xff]
          %v2214 = vld [vmem:[%s3 + $0x1460] sm:$0xff]
          %v2215 = vld [vmem:[%s3 + $0x1468] sm:$0xff]
          %v2216 = vld [vmem:[%s3 + $0x1470] sm:$0xff]
          %v2217 = vld [vmem:[%s3 + $0x1478] sm:$0xff]
          %v2218 = vld [vmem:[%s3 + $0x1480] sm:$0xff]
          %v2219 = vld [vmem:[%s3 + $0x1488] sm:$0xff]
          %v2220 = vld [vmem:[%s3 + $0x1490] sm:$0xff]
          %v2221 = vld [vmem:[%s3 + $0x1498] sm:$0xff]
          %v2222 = vld [vmem:[%s3 + $0x14a0] sm:$0xff]
          %v2223 = vld [vmem:[%s3 + $0x14a8] sm:$0xff]
          %v2224 = vld [vmem:[%s3 + $0x14b0] sm:$0xff]
          %v2225 = vld [vmem:[%s3 + $0x14b8] sm:$0xff]
          %v2226 = vld [vmem:[%s3 + $0x14c0] sm:$0xff]
          %v2227 = vld [vmem:[%s3 + $0x14c8] sm:$0xff]
          %v2228 = vld [vmem:[%s3 + $0x14d0] sm:$0xff]
          %v2229 = vld [vmem:[%s3 + $0x14d8] sm:$0xff]
          %v2230 = vld [vmem:[%s3 + $0x14e0] sm:$0xff]
          %v2231 = vld [vmem:[%s3 + $0x14e8] sm:$0xff]
          %v2232 = vld [vmem:[%s3 + $0x14f0] sm:$0xff]
          %v2233 = vld [vmem:[%s3 + $0x14f8] sm:$0xff]
          %v2234 = vld [vmem:[%s3 + $0x1500] sm:$0xff]
          %v2235 = vld [vmem:[%s3 + $0x1508] sm:$0xff]
          %v2236 = vld [vmem:[%s3 + $0x1510] sm:$0xff]
          %v2237 = vld [vmem:[%s3 + $0x1518] sm:$0xff]
          %v2238 = vld [vmem:[%s3 + $0x1520] sm:$0xff]
          %v2239 = vld [vmem:[%s3 + $0x1528] sm:$0xff]
          %v2240 = vld [vmem:[%s3 + $0x1530] sm:$0xff]
          %v2241 = vld [vmem:[%s3 + $0x1538] sm:$0xff]
          %v2242 = vld [vmem:[%s3 + $0x1540] sm:$0xff]
          %v2243 = vld [vmem:[%s3 + $0x1548] sm:$0xff]
          %v2244 = vld [vmem:[%s3 + $0x1550] sm:$0xff]
          %v2245 = vld [vmem:[%s3 + $0x1558] sm:$0xff]
          %v2246 = vld [vmem:[%s3 + $0x1560] sm:$0xff]
          %v2247 = vld [vmem:[%s3 + $0x1568] sm:$0xff]
          %v2248 = vld [vmem:[%s3 + $0x1570] sm:$0xff]
          %v2249 = vld [vmem:[%s3 + $0x1578] sm:$0xff]
          %v2250 = vld [vmem:[%s3 + $0x1580] sm:$0xff]
          %v2251 = vld [vmem:[%s3 + $0x1588] sm:$0xff]
          %v2252 = vld [vmem:[%s3 + $0x1590] sm:$0xff]
          %v2253 = vld [vmem:[%s3 + $0x1598] sm:$0xff]
          %v2254 = vld [vmem:[%s3 + $0x15a0] sm:$0xff]
          %v2255 = vld [vmem:[%s3 + $0x15a8] sm:$0xff]
          %v2256 = vld [vmem:[%s3 + $0x15b0] sm:$0xff]
          %v2257 = vld [vmem:[%s3 + $0x15b8] sm:$0xff]
          %v2258 = vld [vmem:[%s3 + $0x15c0] sm:$0xff]
          %v2259 = vld [vmem:[%s3 + $0x15c8] sm:$0xff]
          %v2260 = vld [vmem:[%s3 + $0x15d0] sm:$0xff]
          %v2261 = vld [vmem:[%s3 + $0x15d8] sm:$0xff]
          %v2262 = vld [vmem:[%s3 + $0x15e0] sm:$0xff]
          %v2263 = vld [vmem:[%s3 + $0x15e8] sm:$0xff]
          %v2264 = vld [vmem:[%s3 + $0x15f0] sm:$0xff]
          %v2265 = vld [vmem:[%s3 + $0x15f8] sm:$0xff]
          %v2266 = vld [vmem:[%s3 + $0x1600] sm:$0xff]
          %v2267 = vld [vmem:[%s3 + $0x1608] sm:$0xff]
          %v2268 = vld [vmem:[%s3 + $0x1610] sm:$0xff]
          %v2269 = vld [vmem:[%s3 + $0x1618] sm:$0xff]
          %v2270 = vld [vmem:[%s3 + $0x1620] sm:$0xff]
          %v2271 = vld [vmem:[%s3 + $0x1628] sm:$0xff]
          %v2272 = vld [vmem:[%s3 + $0x1630] sm:$0xff]
          %v2273 = vld [vmem:[%s3 + $0x1638] sm:$0xff]
          %v2274 = vld [vmem:[%s3 + $0x1640] sm:$0xff]
          %v2275 = vld [vmem:[%s3 + $0x1648] sm:$0xff]
          %v2276 = vld [vmem:[%s3 + $0x1650] sm:$0xff]
          %v2277 = vld [vmem:[%s3 + $0x1658] sm:$0xff]
          %v2278 = vld [vmem:[%s3 + $0x1660] sm:$0xff]
          %v2279 = vld [vmem:[%s3 + $0x1668] sm:$0xff]
          %v2280 = vld [vmem:[%s3 + $0x1670] sm:$0xff]
          %v2281 = vld [vmem:[%s3 + $0x1678] sm:$0xff]
          %v2282 = vld [vmem:[%s3 + $0x1680] sm:$0xff]
          %v2283 = vld [vmem:[%s3 + $0x1688] sm:$0xff]
          %v2284 = vld [vmem:[%s3 + $0x1690] sm:$0xff]
          %v2285 = vld [vmem:[%s3 + $0x1698] sm:$0xff]
          %v2286 = vld [vmem:[%s3 + $0x16a0] sm:$0xff]
          %v2287 = vld [vmem:[%s3 + $0x16a8] sm:$0xff]
          %v2288 = vld [vmem:[%s3 + $0x16b0] sm:$0xff]
          %v2289 = vld [vmem:[%s3 + $0x16b8] sm:$0xff]
          %v2290 = vld [vmem:[%s3 + $0x16c0] sm:$0xff]
          %v2291 = vld [vmem:[%s3 + $0x16c8] sm:$0xff]
          %v2292 = vld [vmem:[%s3 + $0x16d0] sm:$0xff]
          %v2293 = vld [vmem:[%s3 + $0x16d8] sm:$0xff]
          %v2294 = vld [vmem:[%s3 + $0x16e0] sm:$0xff]
          %v2295 = vld [vmem:[%s3 + $0x16e8] sm:$0xff]
          %v2296 = vld [vmem:[%s3 + $0x16f0] sm:$0xff]
          %v2297 = vld [vmem:[%s3 + $0x16f8] sm:$0xff]
          %v2298 = vld [vmem:[%s3 + $0x1700] sm:$0xff]
          %v2299 = vld [vmem:[%s3 + $0x1708] sm:$0xff]
          %v2300 = vld [vmem:[%s3 + $0x1710] sm:$0xff]
          %v2301 = vld [vmem:[%s3 + $0x1718] sm:$0xff]
          %v2302 = vld [vmem:[%s3 + $0x1720] sm:$0xff]
          %v2303 = vld [vmem:[%s3 + $0x1728] sm:$0xff]
          %v2304 = vld [vmem:[%s3 + $0x1730] sm:$0xff]
          %v2305 = vld [vmem:[%s3 + $0x1738] sm:$0xff]
          %v2306 = vld [vmem:[%s3 + $0x1740] sm:$0xff]
          %v2307 = vld [vmem:[%s3 + $0x1748] sm:$0xff]
          %v2308 = vld [vmem:[%s3 + $0x1750] sm:$0xff]
          %v2309 = vld [vmem:[%s3 + $0x1758] sm:$0xff]
          %v2310 = vld [vmem:[%s3 + $0x1760] sm:$0xff]
          %v2311 = vld [vmem:[%s3 + $0x1768] sm:$0xff]
          %v2312 = vld [vmem:[%s3 + $0x1770] sm:$0xff]
          %v2313 = vld [vmem:[%s3 + $0x1778] sm:$0xff]
          %v2314 = vld [vmem:[%s3 + $0x1780] sm:$0xff]
          %v2315 = vld [vmem:[%s3 + $0x1788] sm:$0xff]
          %v2316 = vld [vmem:[%s3 + $0x1790] sm:$0xff]
          %v2317 = vld [vmem:[%s3 + $0x1798] sm:$0xff]
          %v2318 = vld [vmem:[%s3 + $0x17a0] sm:$0xff]
          %v2319 = vld [vmem:[%s3 + $0x17a8] sm:$0xff]
          %v2320 = vld [vmem:[%s3 + $0x17b0] sm:$0xff]
          %v2321 = vld [vmem:[%s3 + $0x17b8] sm:$0xff]
          %v2322 = vld [vmem:[%s3 + $0x17c0] sm:$0xff]
          %v2323 = vld [vmem:[%s3 + $0x17c8] sm:$0xff]
          %v2324 = vld [vmem:[%s3 + $0x17d0] sm:$0xff]
          %v2325 = vld [vmem:[%s3 + $0x17d8] sm:$0xff]
          %v2326 = vld [vmem:[%s3 + $0x17e0] sm:$0xff]
          %v2327 = vld [vmem:[%s3 + $0x17e8] sm:$0xff]
          %v2328 = vld [vmem:[%s3 + $0x17f0] sm:$0xff]
          %v2329 = vld [vmem:[%s3 + $0x17f8] sm:$0xff]
          %v2330 = vld [vmem:[%s3 + $0x1800] sm:$0xff]
          %v2331 = vld [vmem:[%s3 + $0x1808] sm:$0xff]
          %v2332 = vld [vmem:[%s3 + $0x1810] sm:$0xff]
          %v2333 = vld [vmem:[%s3 + $0x1818] sm:$0xff]
          %v2334 = vld [vmem:[%s3 + $0x1820] sm:$0xff]
          %v2335 = vld [vmem:[%s3 + $0x1828] sm:$0xff]
          %v2336 = vld [vmem:[%s3 + $0x1830] sm:$0xff]
          %v2337 = vld [vmem:[%s3 + $0x1838] sm:$0xff]
          %v2338 = vld [vmem:[%s3 + $0x1840] sm:$0xff]
          %v2339 = vld [vmem:[%s3 + $0x1848] sm:$0xff]
          %v2340 = vld [vmem:[%s3 + $0x1850] sm:$0xff]
          %v2341 = vld [vmem:[%s3 + $0x1858] sm:$0xff]
          %v2342 = vld [vmem:[%s3 + $0x1860] sm:$0xff]
          %v2343 = vld [vmem:[%s3 + $0x1868] sm:$0xff]
          %v2344 = vld [vmem:[%s3 + $0x1870] sm:$0xff]
          %v2345 = vld [vmem:[%s3 + $0x1878] sm:$0xff]
          %v2346 = vld [vmem:[%s3 + $0x1880] sm:$0xff]
          %v2347 = vld [vmem:[%s3 + $0x1888] sm:$0xff]
          %v2348 = vld [vmem:[%s3 + $0x1890] sm:$0xff]
          %v2349 = vld [vmem:[%s3 + $0x1898] sm:$0xff]
          %v2350 = vld [vmem:[%s3 + $0x18a0] sm:$0xff]
          %v2351 = vld [vmem:[%s3 + $0x18a8] sm:$0xff]
          %v2352 = vld [vmem:[%s3 + $0x18b0] sm:$0xff]
          %v2353 = vld [vmem:[%s3 + $0x18b8] sm:$0xff]
          %v2354 = vld [vmem:[%s3 + $0x18c0] sm:$0xff]
          %v2355 = vld [vmem:[%s3 + $0x18c8] sm:$0xff]
          %v2356 = vld [vmem:[%s3 + $0x18d0] sm:$0xff]
          %v2357 = vld [vmem:[%s3 + $0x18d8] sm:$0xff]
          %v2358 = vld [vmem:[%s3 + $0x18e0] sm:$0xff]
          %v2359 = vld [vmem:[%s3 + $0x18e8] sm:$0xff]
          %v2360 = vld [vmem:[%s3 + $0x18f0] sm:$0xff]
          %v2361 = vld [vmem:[%s3 + $0x18f8] sm:$0xff]
          %v2362 = vld [vmem:[%s3 + $0x1900] sm:$0xff]
          %v2363 = vld [vmem:[%s3 + $0x1908] sm:$0xff]
          %v2364 = vld [vmem:[%s3 + $0x1910] sm:$0xff]
          %v2365 = vld [vmem:[%s3 + $0x1918] sm:$0xff]
          %v2366 = vld [vmem:[%s3 + $0x1920] sm:$0xff]
          %v2367 = vld [vmem:[%s3 + $0x1928] sm:$0xff]
          %v2368 = vld [vmem:[%s3 + $0x1930] sm:$0xff]
          %v2369 = vld [vmem:[%s3 + $0x1938] sm:$0xff]
          %v2370 = vld [vmem:[%s3 + $0x1940] sm:$0xff]
          %v2371 = vld [vmem:[%s3 + $0x1948] sm:$0xff]
          %v2372 = vld [vmem:[%s3 + $0x1950] sm:$0xff]
          %v2373 = vld [vmem:[%s3 + $0x1958] sm:$0xff]
          %v2374 = vld [vmem:[%s3 + $0x1960] sm:$0xff]
          %v2375 = vld [vmem:[%s3 + $0x1968] sm:$0xff]
          %v2376 = vld [vmem:[%s3 + $0x1970] sm:$0xff]
          %v2377 = vld [vmem:[%s3 + $0x1978] sm:$0xff]
          %v2378 = vld [vmem:[%s3 + $0x1980] sm:$0xff]
          %v2379 = vld [vmem:[%s3 + $0x1988] sm:$0xff]
          %v2380 = vld [vmem:[%s3 + $0x1990] sm:$0xff]
          %v2381 = vld [vmem:[%s3 + $0x1998] sm:$0xff]
          %v2382 = vld [vmem:[%s3 + $0x19a0] sm:$0xff]
          %v2383 = vld [vmem:[%s3 + $0x19a8] sm:$0xff]
          %v2384 = vld [vmem:[%s3 + $0x19b0] sm:$0xff]
          %v2385 = vld [vmem:[%s3 + $0x19b8] sm:$0xff]
          %v2386 = vld [vmem:[%s3 + $0x19c0] sm:$0xff]
          %v2387 = vld [vmem:[%s3 + $0x19c8] sm:$0xff]
          %v2388 = vld [vmem:[%s3 + $0x19d0] sm:$0xff]
          %v2389 = vld [vmem:[%s3 + $0x19d8] sm:$0xff]
          %v2390 = vld [vmem:[%s3 + $0x19e0] sm:$0xff]
          %v2391 = vld [vmem:[%s3 + $0x19e8] sm:$0xff]
          %v2392 = vld [vmem:[%s3 + $0x19f0] sm:$0xff]
          %v2393 = vld [vmem:[%s3 + $0x19f8] sm:$0xff]
          %v2394 = vld [vmem:[%s3 + $0x1a00] sm:$0xff]
          %v2395 = vld [vmem:[%s3 + $0x1a08] sm:$0xff]
          %v2396 = vld [vmem:[%s3 + $0x1a10] sm:$0xff]
          %v2397 = vld [vmem:[%s3 + $0x1a18] sm:$0xff]
          %v2398 = vld [vmem:[%s3 + $0x1a20] sm:$0xff]
          %v2399 = vld [vmem:[%s3 + $0x1a28] sm:$0xff]
          %v2400 = vld [vmem:[%s3 + $0x1a30] sm:$0xff]
          %v2401 = vld [vmem:[%s3 + $0x1a38] sm:$0xff]
          %v2402 = vld [vmem:[%s3 + $0x1a40] sm:$0xff]
          %v2403 = vld [vmem:[%s3 + $0x1a48] sm:$0xff]
          %v2404 = vld [vmem:[%s3 + $0x1a50] sm:$0xff]
          %v2405 = vld [vmem:[%s3 + $0x1a58] sm:$0xff]
          %v2406 = vld [vmem:[%s3 + $0x1a60] sm:$0xff]
          %v2407 = vld [vmem:[%s3 + $0x1a68] sm:$0xff]
          %v2408 = vld [vmem:[%s3 + $0x1a70] sm:$0xff]
          %v2409 = vld [vmem:[%s3 + $0x1a78] sm:$0xff]
          %v2410 = vld [vmem:[%s3 + $0x1a80] sm:$0xff]
          %v2411 = vld [vmem:[%s3 + $0x1a88] sm:$0xff]
          %v2412 = vld [vmem:[%s3 + $0x1a90] sm:$0xff]
          %v2413 = vld [vmem:[%s3 + $0x1a98] sm:$0xff]
          %v2414 = vld [vmem:[%s3 + $0x1aa0] sm:$0xff]
          %v2415 = vld [vmem:[%s3 + $0x1aa8] sm:$0xff]
          %v2416 = vld [vmem:[%s3 + $0x1ab0] sm:$0xff]
          %v2417 = vld [vmem:[%s3 + $0x1ab8] sm:$0xff]
          %v2418 = vld [vmem:[%s3 + $0x1ac0] sm:$0xff]
          %v2419 = vld [vmem:[%s3 + $0x1ac8] sm:$0xff]
          %v2420 = vld [vmem:[%s3 + $0x1ad0] sm:$0xff]
          %v2421 = vld [vmem:[%s3 + $0x1ad8] sm:$0xff]
          %v2422 = vld [vmem:[%s3 + $0x1ae0] sm:$0xff]
          %v2423 = vld [vmem:[%s3 + $0x1ae8] sm:$0xff]
          %v2424 = vld [vmem:[%s3 + $0x1af0] sm:$0xff]
          %v2425 = vld [vmem:[%s3 + $0x1af8] sm:$0xff]
          %v2426 = vld [vmem:[%s3 + $0x1b00] sm:$0xff]
          %v2427 = vld [vmem:[%s3 + $0x1b08] sm:$0xff]
          %v2428 = vld [vmem:[%s3 + $0x1b10] sm:$0xff]
          %v2429 = vld [vmem:[%s3 + $0x1b18] sm:$0xff]
          %v2430 = vld [vmem:[%s3 + $0x1b20] sm:$0xff]
          %v2431 = vld [vmem:[%s3 + $0x1b28] sm:$0xff]
          %v2432 = vld [vmem:[%s3 + $0x1b30] sm:$0xff]
          %v2433 = vld [vmem:[%s3 + $0x1b38] sm:$0xff]
          %v2434 = vld [vmem:[%s3 + $0x1b40] sm:$0xff]
          %v2435 = vld [vmem:[%s3 + $0x1b48] sm:$0xff]
          %v2436 = vld [vmem:[%s3 + $0x1b50] sm:$0xff]
          %v2437 = vld [vmem:[%s3 + $0x1b58] sm:$0xff]
          %v2438 = vld [vmem:[%s3 + $0x1b60] sm:$0xff]
          %v2439 = vld [vmem:[%s3 + $0x1b68] sm:$0xff]
          %v2440 = vld [vmem:[%s3 + $0x1b70] sm:$0xff]
          %v2441 = vld [vmem:[%s3 + $0x1b78] sm:$0xff]
          %v2442 = vld [vmem:[%s3 + $0x1b80] sm:$0xff]
          %v2443 = vld [vmem:[%s3 + $0x1b88] sm:$0xff]
          %v2444 = vld [vmem:[%s3 + $0x1b90] sm:$0xff]
          %v2445 = vld [vmem:[%s3 + $0x1b98] sm:$0xff]
          %v2446 = vld [vmem:[%s3 + $0x1ba0] sm:$0xff]
          %v2447 = vld [vmem:[%s3 + $0x1ba8] sm:$0xff]
          %v2448 = vld [vmem:[%s3 + $0x1bb0] sm:$0xff]
          %v2449 = vld [vmem:[%s3 + $0x1bb8] sm:$0xff]
          %v2450 = vld [vmem:[%s3 + $0x1bc0] sm:$0xff]
          %v2451 = vld [vmem:[%s3 + $0x1bc8] sm:$0xff]
          %v2452 = vld [vmem:[%s3 + $0x1bd0] sm:$0xff]
          %v2453 = vld [vmem:[%s3 + $0x1bd8] sm:$0xff]
          %v2454 = vld [vmem:[%s3 + $0x1be0] sm:$0xff]
          %v2455 = vld [vmem:[%s3 + $0x1be8] sm:$0xff]
          %v2456 = vld [vmem:[%s3 + $0x1bf0] sm:$0xff]
          %v2457 = vld [vmem:[%s3 + $0x1bf8] sm:$0xff]
          %v2458 = vld [vmem:[%s3 + $0x1c00] sm:$0xff]
          %v2459 = vld [vmem:[%s3 + $0x1c08] sm:$0xff]
          %v2460 = vld [vmem:[%s3 + $0x1c10] sm:$0xff]
          %v2461 = vld [vmem:[%s3 + $0x1c18] sm:$0xff]
          %v2462 = vld [vmem:[%s3 + $0x1c20] sm:$0xff]
          %v2463 = vld [vmem:[%s3 + $0x1c28] sm:$0xff]
          %v2464 = vld [vmem:[%s3 + $0x1c30] sm:$0xff]
          %v2465 = vld [vmem:[%s3 + $0x1c38] sm:$0xff]
          %v2466 = vld [vmem:[%s3 + $0x1c40] sm:$0xff]
          %v2467 = vld [vmem:[%s3 + $0x1c48] sm:$0xff]
          %v2468 = vld [vmem:[%s3 + $0x1c50] sm:$0xff]
          %v2469 = vld [vmem:[%s3 + $0x1c58] sm:$0xff]
          %v2470 = vld [vmem:[%s3 + $0x1c60] sm:$0xff]
          %v2471 = vld [vmem:[%s3 + $0x1c68] sm:$0xff]
          %v2472 = vld [vmem:[%s3 + $0x1c70] sm:$0xff]
          %v2473 = vld [vmem:[%s3 + $0x1c78] sm:$0xff]
          %v2474 = vld [vmem:[%s3 + $0x1c80] sm:$0xff]
          %v2475 = vld [vmem:[%s3 + $0x1c88] sm:$0xff]
          %v2476 = vld [vmem:[%s3 + $0x1c90] sm:$0xff]
          %v2477 = vld [vmem:[%s3 + $0x1c98] sm:$0xff]
          %v2478 = vld [vmem:[%s3 + $0x1ca0] sm:$0xff]
          %v2479 = vld [vmem:[%s3 + $0x1ca8] sm:$0xff]
          %v2480 = vld [vmem:[%s3 + $0x1cb0] sm:$0xff]
          %v2481 = vld [vmem:[%s3 + $0x1cb8] sm:$0xff]
          %v2482 = vld [vmem:[%s3 + $0x1cc0] sm:$0xff]
          %v2483 = vld [vmem:[%s3 + $0x1cc8] sm:$0xff]
          %v2484 = vld [vmem:[%s3 + $0x1cd0] sm:$0xff]
          %v2485 = vld [vmem:[%s3 + $0x1cd8] sm:$0xff]
          %v2486 = vld [vmem:[%s3 + $0x1ce0] sm:$0xff]
          %v2487 = vld [vmem:[%s3 + $0x1ce8] sm:$0xff]
          %v2488 = vld [vmem:[%s3 + $0x1cf0] sm:$0xff]
          %v2489 = vld [vmem:[%s3 + $0x1cf8] sm:$0xff]
          %v2490 = vld [vmem:[%s3 + $0x1d00] sm:$0xff]
          %v2491 = vld [vmem:[%s3 + $0x1d08] sm:$0xff]
          %v2492 = vld [vmem:[%s3 + $0x1d10] sm:$0xff]
          %v2493 = vld [vmem:[%s3 + $0x1d18] sm:$0xff]
          %v2494 = vld [vmem:[%s3 + $0x1d20] sm:$0xff]
          %v2495 = vld [vmem:[%s3 + $0x1d28] sm:$0xff]
          %v2496 = vld [vmem:[%s3 + $0x1d30] sm:$0xff]
          %v2497 = vld [vmem:[%s3 + $0x1d38] sm:$0xff]
          %v2498 = vld [vmem:[%s3 + $0x1d40] sm:$0xff]
          %v2499 = vld [vmem:[%s3 + $0x1d48] sm:$0xff]
          %v2500 = vld [vmem:[%s3 + $0x1d50] sm:$0xff]
          %v2501 = vld [vmem:[%s3 + $0x1d58] sm:$0xff]
          %v2502 = vld [vmem:[%s3 + $0x1d60] sm:$0xff]
          %v2503 = vld [vmem:[%s3 + $0x1d68] sm:$0xff]
          %v2504 = vld [vmem:[%s3 + $0x1d70] sm:$0xff]
          %v2505 = vld [vmem:[%s3 + $0x1d78] sm:$0xff]
          %v2506 = vld [vmem:[%s3 + $0x1d80] sm:$0xff]
          %v2507 = vld [vmem:[%s3 + $0x1d88] sm:$0xff]
          %v2508 = vld [vmem:[%s3 + $0x1d90] sm:$0xff]
          %v2509 = vld [vmem:[%s3 + $0x1d98] sm:$0xff]
          %v2510 = vld [vmem:[%s3 + $0x1da0] sm:$0xff]
          %v2511 = vld [vmem:[%s3 + $0x1da8] sm:$0xff]
          %v2512 = vld [vmem:[%s3 + $0x1db0] sm:$0xff]
          %v2513 = vld [vmem:[%s3 + $0x1db8] sm:$0xff]
          %v2514 = vld [vmem:[%s3 + $0x1dc0] sm:$0xff]
          %v2515 = vld [vmem:[%s3 + $0x1dc8] sm:$0xff]
          %v2516 = vld [vmem:[%s3 + $0x1dd0] sm:$0xff]
          %v2517 = vld [vmem:[%s3 + $0x1dd8] sm:$0xff]
          %v2518 = vld [vmem:[%s3 + $0x1de0] sm:$0xff]
          %v2519 = vld [vmem:[%s3 + $0x1de8] sm:$0xff]
          %v2520 = vld [vmem:[%s3 + $0x1df0] sm:$0xff]
          %v2521 = vld [vmem:[%s3 + $0x1df8] sm:$0xff]
          %v2522 = vld [vmem:[%s3 + $0x1e00] sm:$0xff]
          %v2523 = vld [vmem:[%s3 + $0x1e08] sm:$0xff]
          %v2524 = vld [vmem:[%s3 + $0x1e10] sm:$0xff]
          %v2525 = vld [vmem:[%s3 + $0x1e18] sm:$0xff]
          %v2526 = vld [vmem:[%s3 + $0x1e20] sm:$0xff]
          %v2527 = vld [vmem:[%s3 + $0x1e28] sm:$0xff]
          %v2528 = vld [vmem:[%s3 + $0x1e30] sm:$0xff]
          %v2529 = vld [vmem:[%s3 + $0x1e38] sm:$0xff]
          %v2530 = vld [vmem:[%s3 + $0x1e40] sm:$0xff]
          %v2531 = vld [vmem:[%s3 + $0x1e48] sm:$0xff]
          %v2532 = vld [vmem:[%s3 + $0x1e50] sm:$0xff]
          %v2533 = vld [vmem:[%s3 + $0x1e58] sm:$0xff]
          %v2534 = vld [vmem:[%s3 + $0x1e60] sm:$0xff]
          %v2535 = vld [vmem:[%s3 + $0x1e68] sm:$0xff]
          %v2536 = vld [vmem:[%s3 + $0x1e70] sm:$0xff]
          %v2537 = vld [vmem:[%s3 + $0x1e78] sm:$0xff]
          %v2538 = vld [vmem:[%s3 + $0x1e80] sm:$0xff]
          %v2539 = vld [vmem:[%s3 + $0x1e88] sm:$0xff]
          %v2540 = vld [vmem:[%s3 + $0x1e90] sm:$0xff]
          %v2541 = vld [vmem:[%s3 + $0x1e98] sm:$0xff]
          %v2542 = vld [vmem:[%s3 + $0x1ea0] sm:$0xff]
          %v2543 = vld [vmem:[%s3 + $0x1ea8] sm:$0xff]
          %v2544 = vld [vmem:[%s3 + $0x1eb0] sm:$0xff]
          %v2545 = vld [vmem:[%s3 + $0x1eb8] sm:$0xff]
          %v2546 = vld [vmem:[%s3 + $0x1ec0] sm:$0xff]
          %v2547 = vld [vmem:[%s3 + $0x1ec8] sm:$0xff]
          %v2548 = vld [vmem:[%s3 + $0x1ed0] sm:$0xff]
          %v2549 = vld [vmem:[%s3 + $0x1ed8] sm:$0xff]
          %v2550 = vld [vmem:[%s3 + $0x1ee0] sm:$0xff]
          %v2551 = vld [vmem:[%s3 + $0x1ee8] sm:$0xff]
          %v2552 = vld [vmem:[%s3 + $0x1ef0] sm:$0xff]
          %v2553 = vld [vmem:[%s3 + $0x1ef8] sm:$0xff]
          %v2554 = vld [vmem:[%s3 + $0x1f00] sm:$0xff]
          %v2555 = vld [vmem:[%s3 + $0x1f08] sm:$0xff]
          %v2556 = vld [vmem:[%s3 + $0x1f10] sm:$0xff]
          %v2557 = vld [vmem:[%s3 + $0x1f18] sm:$0xff]
          %v2558 = vld [vmem:[%s3 + $0x1f20] sm:$0xff]
          %v2559 = vld [vmem:[%s3 + $0x1f28] sm:$0xff]
          %v2560 = vld [vmem:[%s3 + $0x1f30] sm:$0xff]
          %v2561 = vld [vmem:[%s3 + $0x1f38] sm:$0xff]
          %v2562 = vld [vmem:[%s3 + $0x1f40] sm:$0xff]
          %v2563 = vld [vmem:[%s3 + $0x1f48] sm:$0xff]
          %v2564 = vld [vmem:[%s3 + $0x1f50] sm:$0xff]
          %v2565 = vld [vmem:[%s3 + $0x1f58] sm:$0xff]
          %v2566 = vld [vmem:[%s3 + $0x1f60] sm:$0xff]
          %v2567 = vld [vmem:[%s3 + $0x1f68] sm:$0xff]
          %v2568 = vld [vmem:[%s3 + $0x1f70] sm:$0xff]
          %v2569 = vld [vmem:[%s3 + $0x1f78] sm:$0xff]
          %v2570 = vld [vmem:[%s3 + $0x1f80] sm:$0xff]
          %v2571 = vld [vmem:[%s3 + $0x1f88] sm:$0xff]
          %v2572 = vld [vmem:[%s3 + $0x1f90] sm:$0xff]
          %v2573 = vld [vmem:[%s3 + $0x1f98] sm:$0xff]
          %v2574 = vld [vmem:[%s3 + $0x1fa0] sm:$0xff]
          %v2575 = vld [vmem:[%s3 + $0x1fa8] sm:$0xff]
          %v2576 = vld [vmem:[%s3 + $0x1fb0] sm:$0xff]
          %v2577 = vld [vmem:[%s3 + $0x1fb8] sm:$0xff]
          %v2578 = vld [vmem:[%s3 + $0x1fc0] sm:$0xff]
          %v2579 = vld [vmem:[%s3 + $0x1fc8] sm:$0xff]
          %v2580 = vld [vmem:[%s3 + $0x1fd0] sm:$0xff]
          %v2581 = vld [vmem:[%s3 + $0x1fd8] sm:$0xff]
          %v2582 = vld [vmem:[%s3 + $0x1fe0] sm:$0xff]
          %v2583 = vld [vmem:[%s3 + $0x1fe8] sm:$0xff]
          %v2584 = vld [vmem:[%s3 + $0x1ff0] sm:$0xff]
          %v2585 = vld [vmem:[%s3 + $0x1ff8] sm:$0xff]
          %v2586 = vld [vmem:[%s4] sm:$0xff]
          %v2588 = vperm.slane %v2586, 0
          %v2589 = vperm.slane %v2586, 1
          %v2590 = vperm.slane %v2586, 2
          %v2591 = vperm.slane %v2586, 3
          %v2592 = vperm.slane %v2586, 4
          %v2593 = vperm.slane %v2586, 5
          %v2594 = vperm.slane %v2586, 6
          %v2595 = vperm.slane %v2586, 7
          %2604 = vmatpush.msra.mxu0 %v1682
          %2605 = vmatpush.msra.mxu0 %v1674
          %2606 = vmatpush.msra.mxu0 %v1666
          %2607 = vmatpush.msra.mxu0 %v1658
          %2608 = vmatpush.msra.mxu0 %v1650
          %2609 = vmatpush.msra.mxu0 %v1642
          %2610 = vmatpush.msra.mxu0 %v1634
          %2611 = vmatpush.msra.mxu0 %v1626
          %2612 = vmatpush.msra.mxu0 %v1618
          %2613 = vmatpush.msra.mxu0 %v1610
          %2614 = vmatpush.msra.mxu0 %v1602
          %2615 = vmatpush.msra.mxu0 %v1594
          %2616 = vmatpush.msra.mxu0 %v1586
          %2617 = vmatpush.msra.mxu0 %v1578
          %2618 = vmatpush.msra.mxu0 %v1570
          %2619 = vmatpush.msra.mxu0 %v1562
          %2620 = vmatmul.f32.gmra.mxu0 %v1554
          %v2621 = vpop.f32.mrf.mxu0
          %v2622 = vadd.f32 %v2588, %v2621
          %2623 = vdwg.mxu0
          %2624 = vmatpush.msra.mxu0 %v1810
          %2625 = vmatpush.msra.mxu0 %v1802
          %2626 = vmatpush.msra.mxu0 %v1794
          %2627 = vmatpush.msra.mxu0 %v1786
          %2628 = vmatpush.msra.mxu0 %v1778
          %2629 = vmatpush.msra.mxu0 %v1770
          %2630 = vmatpush.msra.mxu0 %v1762
          %2631 = vmatpush.msra.mxu0 %v1754
          %2632 = vmatpush.msra.mxu0 %v1746
          %2633 = vmatpush.msra.mxu0 %v1738
          %2634 = vmatpush.msra.mxu0 %v1730
          %2635 = vmatpush.msra.mxu0 %v1722
          %2636 = vmatpush.msra.mxu0 %v1714
          %2637 = vmatpush.msra.mxu0 %v1706
          %2638 = vmatpush.msra.mxu0 %v1698
          %2639 = vmatpush.msra.mxu0 %v1690
          %2640 = vmatmul.f32.gmra.mxu0 %v1555
          %v2641 = vpop.f32.mrf.mxu0
          %v2642 = vadd.f32 %v2622, %v2641
          %2643 = vdwg.mxu0
          %2644 = vmatpush.msra.mxu0 %v1938
          %2645 = vmatpush.msra.mxu0 %v1930
          %2646 = vmatpush.msra.mxu0 %v1922
          %2647 = vmatpush.msra.mxu0 %v1914
          %2648 = vmatpush.msra.mxu0 %v1906
          %2649 = vmatpush.msra.mxu0 %v1898
          %2650 = vmatpush.msra.mxu0 %v1890
          %2651 = vmatpush.msra.mxu0 %v1882
          %2652 = vmatpush.msra.mxu0 %v1874
          %2653 = vmatpush.msra.mxu0 %v1866
          %2654 = vmatpush.msra.mxu0 %v1858
          %2655 = vmatpush.msra.mxu0 %v1850
          %2656 = vmatpush.msra.mxu0 %v1842
          %2657 = vmatpush.msra.mxu0 %v1834
          %2658 = vmatpush.msra.mxu0 %v1826
          %2659 = vmatpush.msra.mxu0 %v1818
          %2660 = vmatmul.f32.gmra.mxu0 %v1556
          %v2661 = vpop.f32.mrf.mxu0
          %v2662 = vadd.f32 %v2642, %v2661
          %2663 = vdwg.mxu0
          %2664 = vmatpush.msra.mxu0 %v2066
          %2665 = vmatpush.msra.mxu0 %v2058
          %2666 = vmatpush.msra.mxu0 %v2050
          %2667 = vmatpush.msra.mxu0 %v2042
          %2668 = vmatpush.msra.mxu0 %v2034
          %2669 = vmatpush.msra.mxu0 %v2026
          %2670 = vmatpush.msra.mxu0 %v2018
          %2671 = vmatpush.msra.mxu0 %v2010
          %2672 = vmatpush.msra.mxu0 %v2002
          %2673 = vmatpush.msra.mxu0 %v1994
          %2674 = vmatpush.msra.mxu0 %v1986
          %2675 = vmatpush.msra.mxu0 %v1978
          %2676 = vmatpush.msra.mxu0 %v1970
          %2677 = vmatpush.msra.mxu0 %v1962
          %2678 = vmatpush.msra.mxu0 %v1954
          %2679 = vmatpush.msra.mxu0 %v1946
          %2680 = vmatmul.f32.gmra.mxu0 %v1557
          %v2681 = vpop.f32.mrf.mxu0
          %v2682 = vadd.f32 %v2662, %v2681
          %2683 = vdwg.mxu0
          %2684 = vmatpush.msra.mxu0 %v2194
          %2685 = vmatpush.msra.mxu0 %v2186
          %2686 = vmatpush.msra.mxu0 %v2178
          %2687 = vmatpush.msra.mxu0 %v2170
          %2688 = vmatpush.msra.mxu0 %v2162
          %2689 = vmatpush.msra.mxu0 %v2154
          %2690 = vmatpush.msra.mxu0 %v2146
          %2691 = vmatpush.msra.mxu0 %v2138
          %2692 = vmatpush.msra.mxu0 %v2130
          %2693 = vmatpush.msra.mxu0 %v2122
          %2694 = vmatpush.msra.mxu0 %v2114
          %2695 = vmatpush.msra.mxu0 %v2106
          %2696 = vmatpush.msra.mxu0 %v2098
          %2697 = vmatpush.msra.mxu0 %v2090
          %2698 = vmatpush.msra.mxu0 %v2082
          %2699 = vmatpush.msra.mxu0 %v2074
          %2700 = vmatmul.f32.gmra.mxu0 %v1558
          %v2701 = vpop.f32.mrf.mxu0
          %v2702 = vadd.f32 %v2682, %v2701
          %2703 = vdwg.mxu0
          %2704 = vmatpush.msra.mxu0 %v2322
          %2705 = vmatpush.msra.mxu0 %v2314
          %2706 = vmatpush.msra.mxu0 %v2306
          %2707 = vmatpush.msra.mxu0 %v2298
          %2708 = vmatpush.msra.mxu0 %v2290
          %2709 = vmatpush.msra.mxu0 %v2282
          %2710 = vmatpush.msra.mxu0 %v2274
          %2711 = vmatpush.msra.mxu0 %v2266
          %2712 = vmatpush.msra.mxu0 %v2258
          %2713 = vmatpush.msra.mxu0 %v2250
          %2714 = vmatpush.msra.mxu0 %v2242
          %2715 = vmatpush.msra.mxu0 %v2234
          %2716 = vmatpush.msra.mxu0 %v2226
          %2717 = vmatpush.msra.mxu0 %v2218
          %2718 = vmatpush.msra.mxu0 %v2210
          %2719 = vmatpush.msra.mxu0 %v2202
          %2720 = vmatmul.f32.gmra.mxu0 %v1559
          %v2721 = vpop.f32.mrf.mxu0
          %v2722 = vadd.f32 %v2702, %v2721
          %2723 = vdwg.mxu0
          %2724 = vmatpush.msra.mxu0 %v2450
          %2725 = vmatpush.msra.mxu0 %v2442
          %2726 = vmatpush.msra.mxu0 %v2434
          %2727 = vmatpush.msra.mxu0 %v2426
          %2728 = vmatpush.msra.mxu0 %v2418
          %2729 = vmatpush.msra.mxu0 %v2410
          %2730 = vmatpush.msra.mxu0 %v2402
          %2731 = vmatpush.msra.mxu0 %v2394
          %2732 = vmatpush.msra.mxu0 %v2386
          %2733 = vmatpush.msra.mxu0 %v2378
          %2734 = vmatpush.msra.mxu0 %v2370
          %2735 = vmatpush.msra.mxu0 %v2362
          %2736 = vmatpush.msra.mxu0 %v2354
          %2737 = vmatpush.msra.mxu0 %v2346
          %2738 = vmatpush.msra.mxu0 %v2338
          %2739 = vmatpush.msra.mxu0 %v2330
          %2740 = vmatmul.f32.gmra.mxu0 %v1560
          %v2741 = vpop.f32.mrf.mxu0
          %v2742 = vadd.f32 %v2722, %v2741
          %2743 = vdwg.mxu0
          %2744 = vmatpush.msra.mxu0 %v2578
          %2745 = vmatpush.msra.mxu0 %v2570
          %2746 = vmatpush.msra.mxu0 %v2562
          %2747 = vmatpush.msra.mxu0 %v2554
          %2748 = vmatpush.msra.mxu0 %v2546
          %2749 = vmatpush.msra.mxu0 %v2538
          %2750 = vmatpush.msra.mxu0 %v2530
          %2751 = vmatpush.msra.mxu0 %v2522
          %2752 = vmatpush.msra.mxu0 %v2514
          %2753 = vmatpush.msra.mxu0 %v2506
          %2754 = vmatpush.msra.mxu0 %v2498
          %2755 = vmatpush.msra.mxu0 %v2490
          %2756 = vmatpush.msra.mxu0 %v2482
          %2757 = vmatpush.msra.mxu0 %v2474
          %2758 = vmatpush.msra.mxu0 %v2466
          %2759 = vmatpush.msra.mxu0 %v2458
          %2760 = vmatmul.f32.gmra.mxu0 %v1561
          %v2761 = vpop.f32.mrf.mxu0
          %v2762 = vadd.f32 %v2742, %v2761
          %2763 = vdwg.mxu0
          %2764 = vmatpush.msra.mxu0 %v1683
          %2765 = vmatpush.msra.mxu0 %v1675
          %2766 = vmatpush.msra.mxu0 %v1667
          %2767 = vmatpush.msra.mxu0 %v1659
          %2768 = vmatpush.msra.mxu0 %v1651
          %2769 = vmatpush.msra.mxu0 %v1643
          %2770 = vmatpush.msra.mxu0 %v1635
          %2771 = vmatpush.msra.mxu0 %v1627
          %2772 = vmatpush.msra.mxu0 %v1619
          %2773 = vmatpush.msra.mxu0 %v1611
          %2774 = vmatpush.msra.mxu0 %v1603
          %2775 = vmatpush.msra.mxu0 %v1595
          %2776 = vmatpush.msra.mxu0 %v1587
          %2777 = vmatpush.msra.mxu0 %v1579
          %2778 = vmatpush.msra.mxu0 %v1571
          %2779 = vmatpush.msra.mxu0 %v1563
          %2780 = vmatmul.f32.gmra.mxu0 %v1554
          %v2781 = vpop.f32.mrf.mxu0
          %v2782 = vadd.f32 %v2589, %v2781
          %2783 = vdwg.mxu0
          %2784 = vmatpush.msra.mxu0 %v1811
          %2785 = vmatpush.msra.mxu0 %v1803
          %2786 = vmatpush.msra.mxu0 %v1795
          %2787 = vmatpush.msra.mxu0 %v1787
          %2788 = vmatpush.msra.mxu0 %v1779
          %2789 = vmatpush.msra.mxu0 %v1771
          %2790 = vmatpush.msra.mxu0 %v1763
          %2791 = vmatpush.msra.mxu0 %v1755
          %2792 = vmatpush.msra.mxu0 %v1747
          %2793 = vmatpush.msra.mxu0 %v1739
          %2794 = vmatpush.msra.mxu0 %v1731
          %2795 = vmatpush.msra.mxu0 %v1723
          %2796 = vmatpush.msra.mxu0 %v1715
          %2797 = vmatpush.msra.mxu0 %v1707
          %2798 = vmatpush.msra.mxu0 %v1699
          %2799 = vmatpush.msra.mxu0 %v1691
          %2800 = vmatmul.f32.gmra.mxu0 %v1555
          %v2801 = vpop.f32.mrf.mxu0
          %v2802 = vadd.f32 %v2782, %v2801
          %2803 = vdwg.mxu0
          %2804 = vmatpush.msra.mxu0 %v1939
          %2805 = vmatpush.msra.mxu0 %v1931
          %2806 = vmatpush.msra.mxu0 %v1923
          %2807 = vmatpush.msra.mxu0 %v1915
          %2808 = vmatpush.msra.mxu0 %v1907
          %2809 = vmatpush.msra.mxu0 %v1899
          %2810 = vmatpush.msra.mxu0 %v1891
          %2811 = vmatpush.msra.mxu0 %v1883
          %2812 = vmatpush.msra.mxu0 %v1875
          %2813 = vmatpush.msra.mxu0 %v1867
          %2814 = vmatpush.msra.mxu0 %v1859
          %2815 = vmatpush.msra.mxu0 %v1851
          %2816 = vmatpush.msra.mxu0 %v1843
          %2817 = vmatpush.msra.mxu0 %v1835
          %2818 = vmatpush.msra.mxu0 %v1827
          %2819 = vmatpush.msra.mxu0 %v1819
          %2820 = vmatmul.f32.gmra.mxu0 %v1556
          %v2821 = vpop.f32.mrf.mxu0
          %v2822 = vadd.f32 %v2802, %v2821
          %2823 = vdwg.mxu0
          %2824 = vmatpush.msra.mxu0 %v2067
          %2825 = vmatpush.msra.mxu0 %v2059
          %2826 = vmatpush.msra.mxu0 %v2051
          %2827 = vmatpush.msra.mxu0 %v2043
          %2828 = vmatpush.msra.mxu0 %v2035
          %2829 = vmatpush.msra.mxu0 %v2027
          %2830 = vmatpush.msra.mxu0 %v2019
          %2831 = vmatpush.msra.mxu0 %v2011
          %2832 = vmatpush.msra.mxu0 %v2003
          %2833 = vmatpush.msra.mxu0 %v1995
          %2834 = vmatpush.msra.mxu0 %v1987
          %2835 = vmatpush.msra.mxu0 %v1979
          %2836 = vmatpush.msra.mxu0 %v1971
          %2837 = vmatpush.msra.mxu0 %v1963
          %2838 = vmatpush.msra.mxu0 %v1955
          %2839 = vmatpush.msra.mxu0 %v1947
          %2840 = vmatmul.f32.gmra.mxu0 %v1557
          %v2841 = vpop.f32.mrf.mxu0
          %v2842 = vadd.f32 %v2822, %v2841
          %2843 = vdwg.mxu0
          %2844 = vmatpush.msra.mxu0 %v2195
          %2845 = vmatpush.msra.mxu0 %v2187
          %2846 = vmatpush.msra.mxu0 %v2179
          %2847 = vmatpush.msra.mxu0 %v2171
          %2848 = vmatpush.msra.mxu0 %v2163
          %2849 = vmatpush.msra.mxu0 %v2155
          %2850 = vmatpush.msra.mxu0 %v2147
          %2851 = vmatpush.msra.mxu0 %v2139
          %2852 = vmatpush.msra.mxu0 %v2131
          %2853 = vmatpush.msra.mxu0 %v2123
          %2854 = vmatpush.msra.mxu0 %v2115
          %2855 = vmatpush.msra.mxu0 %v2107
          %2856 = vmatpush.msra.mxu0 %v2099
          %2857 = vmatpush.msra.mxu0 %v2091
          %2858 = vmatpush.msra.mxu0 %v2083
          %2859 = vmatpush.msra.mxu0 %v2075
          %2860 = vmatmul.f32.gmra.mxu0 %v1558
          %v2861 = vpop.f32.mrf.mxu0
          %v2862 = vadd.f32 %v2842, %v2861
          %2863 = vdwg.mxu0
          %2864 = vmatpush.msra.mxu0 %v2323
          %2865 = vmatpush.msra.mxu0 %v2315
          %2866 = vmatpush.msra.mxu0 %v2307
          %2867 = vmatpush.msra.mxu0 %v2299
          %2868 = vmatpush.msra.mxu0 %v2291
          %2869 = vmatpush.msra.mxu0 %v2283
          %2870 = vmatpush.msra.mxu0 %v2275
          %2871 = vmatpush.msra.mxu0 %v2267
          %2872 = vmatpush.msra.mxu0 %v2259
          %2873 = vmatpush.msra.mxu0 %v2251
          %2874 = vmatpush.msra.mxu0 %v2243
          %2875 = vmatpush.msra.mxu0 %v2235
          %2876 = vmatpush.msra.mxu0 %v2227
          %2877 = vmatpush.msra.mxu0 %v2219
          %2878 = vmatpush.msra.mxu0 %v2211
          %2879 = vmatpush.msra.mxu0 %v2203
          %2880 = vmatmul.f32.gmra.mxu0 %v1559
          %v2881 = vpop.f32.mrf.mxu0
          %v2882 = vadd.f32 %v2862, %v2881
          %2883 = vdwg.mxu0
          %2884 = vmatpush.msra.mxu0 %v2451
          %2885 = vmatpush.msra.mxu0 %v2443
          %2886 = vmatpush.msra.mxu0 %v2435
          %2887 = vmatpush.msra.mxu0 %v2427
          %2888 = vmatpush.msra.mxu0 %v2419
          %2889 = vmatpush.msra.mxu0 %v2411
          %2890 = vmatpush.msra.mxu0 %v2403
          %2891 = vmatpush.msra.mxu0 %v2395
          %2892 = vmatpush.msra.mxu0 %v2387
          %2893 = vmatpush.msra.mxu0 %v2379
          %2894 = vmatpush.msra.mxu0 %v2371
          %2895 = vmatpush.msra.mxu0 %v2363
          %2896 = vmatpush.msra.mxu0 %v2355
          %2897 = vmatpush.msra.mxu0 %v2347
          %2898 = vmatpush.msra.mxu0 %v2339
          %2899 = vmatpush.msra.mxu0 %v2331
          %2900 = vmatmul.f32.gmra.mxu0 %v1560
          %v2901 = vpop.f32.mrf.mxu0
          %v2902 = vadd.f32 %v2882, %v2901
          %2903 = vdwg.mxu0
          %2904 = vmatpush.msra.mxu0 %v2579
          %2905 = vmatpush.msra.mxu0 %v2571
          %2906 = vmatpush.msra.mxu0 %v2563
          %2907 = vmatpush.msra.mxu0 %v2555
          %2908 = vmatpush.msra.mxu0 %v2547
          %2909 = vmatpush.msra.mxu0 %v2539
          %2910 = vmatpush.msra.mxu0 %v2531
          %2911 = vmatpush.msra.mxu0 %v2523
          %2912 = vmatpush.msra.mxu0 %v2515
          %2913 = vmatpush.msra.mxu0 %v2507
          %2914 = vmatpush.msra.mxu0 %v2499
          %2915 = vmatpush.msra.mxu0 %v2491
          %2916 = vmatpush.msra.mxu0 %v2483
          %2917 = vmatpush.msra.mxu0 %v2475
          %2918 = vmatpush.msra.mxu0 %v2467
          %2919 = vmatpush.msra.mxu0 %v2459
          %2920 = vmatmul.f32.gmra.mxu0 %v1561
          %v2921 = vpop.f32.mrf.mxu0
          %v2922 = vadd.f32 %v2902, %v2921
          %2923 = vdwg.mxu0
          %2924 = vmatpush.msra.mxu0 %v1684
          %2925 = vmatpush.msra.mxu0 %v1676
          %2926 = vmatpush.msra.mxu0 %v1668
          %2927 = vmatpush.msra.mxu0 %v1660
          %2928 = vmatpush.msra.mxu0 %v1652
          %2929 = vmatpush.msra.mxu0 %v1644
          %2930 = vmatpush.msra.mxu0 %v1636
          %2931 = vmatpush.msra.mxu0 %v1628
          %2932 = vmatpush.msra.mxu0 %v1620
          %2933 = vmatpush.msra.mxu0 %v1612
          %2934 = vmatpush.msra.mxu0 %v1604
          %2935 = vmatpush.msra.mxu0 %v1596
          %2936 = vmatpush.msra.mxu0 %v1588
          %2937 = vmatpush.msra.mxu0 %v1580
          %2938 = vmatpush.msra.mxu0 %v1572
          %2939 = vmatpush.msra.mxu0 %v1564
          %2940 = vmatmul.f32.gmra.mxu0 %v1554
          %v2941 = vpop.f32.mrf.mxu0
          %v2942 = vadd.f32 %v2590, %v2941
          %2943 = vdwg.mxu0
          %2944 = vmatpush.msra.mxu0 %v1812
          %2945 = vmatpush.msra.mxu0 %v1804
          %2946 = vmatpush.msra.mxu0 %v1796
          %2947 = vmatpush.msra.mxu0 %v1788
          %2948 = vmatpush.msra.mxu0 %v1780
          %2949 = vmatpush.msra.mxu0 %v1772
          %2950 = vmatpush.msra.mxu0 %v1764
          %2951 = vmatpush.msra.mxu0 %v1756
          %2952 = vmatpush.msra.mxu0 %v1748
          %2953 = vmatpush.msra.mxu0 %v1740
          %2954 = vmatpush.msra.mxu0 %v1732
          %2955 = vmatpush.msra.mxu0 %v1724
          %2956 = vmatpush.msra.mxu0 %v1716
          %2957 = vmatpush.msra.mxu0 %v1708
          %2958 = vmatpush.msra.mxu0 %v1700
          %2959 = vmatpush.msra.mxu0 %v1692
          %2960 = vmatmul.f32.gmra.mxu0 %v1555
          %v2961 = vpop.f32.mrf.mxu0
          %v2962 = vadd.f32 %v2942, %v2961
          %2963 = vdwg.mxu0
          %2964 = vmatpush.msra.mxu0 %v1940
          %2965 = vmatpush.msra.mxu0 %v1932
          %2966 = vmatpush.msra.mxu0 %v1924
          %2967 = vmatpush.msra.mxu0 %v1916
          %2968 = vmatpush.msra.mxu0 %v1908
          %2969 = vmatpush.msra.mxu0 %v1900
          %2970 = vmatpush.msra.mxu0 %v1892
          %2971 = vmatpush.msra.mxu0 %v1884
          %2972 = vmatpush.msra.mxu0 %v1876
          %2973 = vmatpush.msra.mxu0 %v1868
          %2974 = vmatpush.msra.mxu0 %v1860
          %2975 = vmatpush.msra.mxu0 %v1852
          %2976 = vmatpush.msra.mxu0 %v1844
          %2977 = vmatpush.msra.mxu0 %v1836
          %2978 = vmatpush.msra.mxu0 %v1828
          %2979 = vmatpush.msra.mxu0 %v1820
          %2980 = vmatmul.f32.gmra.mxu0 %v1556
          %v2981 = vpop.f32.mrf.mxu0
          %v2982 = vadd.f32 %v2962, %v2981
          %2983 = vdwg.mxu0
          %2984 = vmatpush.msra.mxu0 %v2068
          %2985 = vmatpush.msra.mxu0 %v2060
          %2986 = vmatpush.msra.mxu0 %v2052
          %2987 = vmatpush.msra.mxu0 %v2044
          %2988 = vmatpush.msra.mxu0 %v2036
          %2989 = vmatpush.msra.mxu0 %v2028
          %2990 = vmatpush.msra.mxu0 %v2020
          %2991 = vmatpush.msra.mxu0 %v2012
          %2992 = vmatpush.msra.mxu0 %v2004
          %2993 = vmatpush.msra.mxu0 %v1996
          %2994 = vmatpush.msra.mxu0 %v1988
          %2995 = vmatpush.msra.mxu0 %v1980
          %2996 = vmatpush.msra.mxu0 %v1972
          %2997 = vmatpush.msra.mxu0 %v1964
          %2998 = vmatpush.msra.mxu0 %v1956
          %2999 = vmatpush.msra.mxu0 %v1948
          %3000 = vmatmul.f32.gmra.mxu0 %v1557
          %v3001 = vpop.f32.mrf.mxu0
          %v3002 = vadd.f32 %v2982, %v3001
          %3003 = vdwg.mxu0
          %3004 = vmatpush.msra.mxu0 %v2196
          %3005 = vmatpush.msra.mxu0 %v2188
          %3006 = vmatpush.msra.mxu0 %v2180
          %3007 = vmatpush.msra.mxu0 %v2172
          %3008 = vmatpush.msra.mxu0 %v2164
          %3009 = vmatpush.msra.mxu0 %v2156
          %3010 = vmatpush.msra.mxu0 %v2148
          %3011 = vmatpush.msra.mxu0 %v2140
          %3012 = vmatpush.msra.mxu0 %v2132
          %3013 = vmatpush.msra.mxu0 %v2124
          %3014 = vmatpush.msra.mxu0 %v2116
          %3015 = vmatpush.msra.mxu0 %v2108
          %3016 = vmatpush.msra.mxu0 %v2100
          %3017 = vmatpush.msra.mxu0 %v2092
          %3018 = vmatpush.msra.mxu0 %v2084
          %3019 = vmatpush.msra.mxu0 %v2076
          %3020 = vmatmul.f32.gmra.mxu0 %v1558
          %v3021 = vpop.f32.mrf.mxu0
          %v3022 = vadd.f32 %v3002, %v3021
          %3023 = vdwg.mxu0
          %3024 = vmatpush.msra.mxu0 %v2324
          %3025 = vmatpush.msra.mxu0 %v2316
          %3026 = vmatpush.msra.mxu0 %v2308
          %3027 = vmatpush.msra.mxu0 %v2300
          %3028 = vmatpush.msra.mxu0 %v2292
          %3029 = vmatpush.msra.mxu0 %v2284
          %3030 = vmatpush.msra.mxu0 %v2276
          %3031 = vmatpush.msra.mxu0 %v2268
          %3032 = vmatpush.msra.mxu0 %v2260
          %3033 = vmatpush.msra.mxu0 %v2252
          %3034 = vmatpush.msra.mxu0 %v2244
          %3035 = vmatpush.msra.mxu0 %v2236
          %3036 = vmatpush.msra.mxu0 %v2228
          %3037 = vmatpush.msra.mxu0 %v2220
          %3038 = vmatpush.msra.mxu0 %v2212
          %3039 = vmatpush.msra.mxu0 %v2204
          %3040 = vmatmul.f32.gmra.mxu0 %v1559
          %v3041 = vpop.f32.mrf.mxu0
          %v3042 = vadd.f32 %v3022, %v3041
          %3043 = vdwg.mxu0
          %3044 = vmatpush.msra.mxu0 %v2452
          %3045 = vmatpush.msra.mxu0 %v2444
          %3046 = vmatpush.msra.mxu0 %v2436
          %3047 = vmatpush.msra.mxu0 %v2428
          %3048 = vmatpush.msra.mxu0 %v2420
          %3049 = vmatpush.msra.mxu0 %v2412
          %3050 = vmatpush.msra.mxu0 %v2404
          %3051 = vmatpush.msra.mxu0 %v2396
          %3052 = vmatpush.msra.mxu0 %v2388
          %3053 = vmatpush.msra.mxu0 %v2380
          %3054 = vmatpush.msra.mxu0 %v2372
          %3055 = vmatpush.msra.mxu0 %v2364
          %3056 = vmatpush.msra.mxu0 %v2356
          %3057 = vmatpush.msra.mxu0 %v2348
          %3058 = vmatpush.msra.mxu0 %v2340
          %3059 = vmatpush.msra.mxu0 %v2332
          %3060 = vmatmul.f32.gmra.mxu0 %v1560
          %v3061 = vpop.f32.mrf.mxu0
          %v3062 = vadd.f32 %v3042, %v3061
          %3063 = vdwg.mxu0
          %3064 = vmatpush.msra.mxu0 %v2580
          %3065 = vmatpush.msra.mxu0 %v2572
          %3066 = vmatpush.msra.mxu0 %v2564
          %3067 = vmatpush.msra.mxu0 %v2556
          %3068 = vmatpush.msra.mxu0 %v2548
          %3069 = vmatpush.msra.mxu0 %v2540
          %3070 = vmatpush.msra.mxu0 %v2532
          %3071 = vmatpush.msra.mxu0 %v2524
          %3072 = vmatpush.msra.mxu0 %v2516
          %3073 = vmatpush.msra.mxu0 %v2508
          %3074 = vmatpush.msra.mxu0 %v2500
          %3075 = vmatpush.msra.mxu0 %v2492
          %3076 = vmatpush.msra.mxu0 %v2484
          %3077 = vmatpush.msra.mxu0 %v2476
          %3078 = vmatpush.msra.mxu0 %v2468
          %3079 = vmatpush.msra.mxu0 %v2460
          %3080 = vmatmul.f32.gmra.mxu0 %v1561
          %v3081 = vpop.f32.mrf.mxu0
          %v3082 = vadd.f32 %v3062, %v3081
          %3083 = vdwg.mxu0
          %3084 = vmatpush.msra.mxu0 %v1685
          %3085 = vmatpush.msra.mxu0 %v1677
          %3086 = vmatpush.msra.mxu0 %v1669
          %3087 = vmatpush.msra.mxu0 %v1661
          %3088 = vmatpush.msra.mxu0 %v1653
          %3089 = vmatpush.msra.mxu0 %v1645
          %3090 = vmatpush.msra.mxu0 %v1637
          %3091 = vmatpush.msra.mxu0 %v1629
          %3092 = vmatpush.msra.mxu0 %v1621
          %3093 = vmatpush.msra.mxu0 %v1613
          %3094 = vmatpush.msra.mxu0 %v1605
          %3095 = vmatpush.msra.mxu0 %v1597
          %3096 = vmatpush.msra.mxu0 %v1589
          %3097 = vmatpush.msra.mxu0 %v1581
          %3098 = vmatpush.msra.mxu0 %v1573
          %3099 = vmatpush.msra.mxu0 %v1565
          %3100 = vmatmul.f32.gmra.mxu0 %v1554
          %v3101 = vpop.f32.mrf.mxu0
          %v3102 = vadd.f32 %v2591, %v3101
          %3103 = vdwg.mxu0
          %3104 = vmatpush.msra.mxu0 %v1813
          %3105 = vmatpush.msra.mxu0 %v1805
          %3106 = vmatpush.msra.mxu0 %v1797
          %3107 = vmatpush.msra.mxu0 %v1789
          %3108 = vmatpush.msra.mxu0 %v1781
          %3109 = vmatpush.msra.mxu0 %v1773
          %3110 = vmatpush.msra.mxu0 %v1765
          %3111 = vmatpush.msra.mxu0 %v1757
          %3112 = vmatpush.msra.mxu0 %v1749
          %3113 = vmatpush.msra.mxu0 %v1741
          %3114 = vmatpush.msra.mxu0 %v1733
          %3115 = vmatpush.msra.mxu0 %v1725
          %3116 = vmatpush.msra.mxu0 %v1717
          %3117 = vmatpush.msra.mxu0 %v1709
          %3118 = vmatpush.msra.mxu0 %v1701
          %3119 = vmatpush.msra.mxu0 %v1693
          %3120 = vmatmul.f32.gmra.mxu0 %v1555
          %v3121 = vpop.f32.mrf.mxu0
          %v3122 = vadd.f32 %v3102, %v3121
          %3123 = vdwg.mxu0
          %3124 = vmatpush.msra.mxu0 %v1941
          %3125 = vmatpush.msra.mxu0 %v1933
          %3126 = vmatpush.msra.mxu0 %v1925
          %3127 = vmatpush.msra.mxu0 %v1917
          %3128 = vmatpush.msra.mxu0 %v1909
          %3129 = vmatpush.msra.mxu0 %v1901
          %3130 = vmatpush.msra.mxu0 %v1893
          %3131 = vmatpush.msra.mxu0 %v1885
          %3132 = vmatpush.msra.mxu0 %v1877
          %3133 = vmatpush.msra.mxu0 %v1869
          %3134 = vmatpush.msra.mxu0 %v1861
          %3135 = vmatpush.msra.mxu0 %v1853
          %3136 = vmatpush.msra.mxu0 %v1845
          %3137 = vmatpush.msra.mxu0 %v1837
          %3138 = vmatpush.msra.mxu0 %v1829
          %3139 = vmatpush.msra.mxu0 %v1821
          %3140 = vmatmul.f32.gmra.mxu0 %v1556
          %v3141 = vpop.f32.mrf.mxu0
          %v3142 = vadd.f32 %v3122, %v3141
          %3143 = vdwg.mxu0
          %3144 = vmatpush.msra.mxu0 %v2069
          %3145 = vmatpush.msra.mxu0 %v2061
          %3146 = vmatpush.msra.mxu0 %v2053
          %3147 = vmatpush.msra.mxu0 %v2045
          %3148 = vmatpush.msra.mxu0 %v2037
          %3149 = vmatpush.msra.mxu0 %v2029
          %3150 = vmatpush.msra.mxu0 %v2021
          %3151 = vmatpush.msra.mxu0 %v2013
          %3152 = vmatpush.msra.mxu0 %v2005
          %3153 = vmatpush.msra.mxu0 %v1997
          %3154 = vmatpush.msra.mxu0 %v1989
          %3155 = vmatpush.msra.mxu0 %v1981
          %3156 = vmatpush.msra.mxu0 %v1973
          %3157 = vmatpush.msra.mxu0 %v1965
          %3158 = vmatpush.msra.mxu0 %v1957
          %3159 = vmatpush.msra.mxu0 %v1949
          %3160 = vmatmul.f32.gmra.mxu0 %v1557
          %v3161 = vpop.f32.mrf.mxu0
          %v3162 = vadd.f32 %v3142, %v3161
          %3163 = vdwg.mxu0
          %3164 = vmatpush.msra.mxu0 %v2197
          %3165 = vmatpush.msra.mxu0 %v2189
          %3166 = vmatpush.msra.mxu0 %v2181
          %3167 = vmatpush.msra.mxu0 %v2173
          %3168 = vmatpush.msra.mxu0 %v2165
          %3169 = vmatpush.msra.mxu0 %v2157
          %3170 = vmatpush.msra.mxu0 %v2149
          %3171 = vmatpush.msra.mxu0 %v2141
          %3172 = vmatpush.msra.mxu0 %v2133
          %3173 = vmatpush.msra.mxu0 %v2125
          %3174 = vmatpush.msra.mxu0 %v2117
          %3175 = vmatpush.msra.mxu0 %v2109
          %3176 = vmatpush.msra.mxu0 %v2101
          %3177 = vmatpush.msra.mxu0 %v2093
          %3178 = vmatpush.msra.mxu0 %v2085
          %3179 = vmatpush.msra.mxu0 %v2077
          %3180 = vmatmul.f32.gmra.mxu0 %v1558
          %v3181 = vpop.f32.mrf.mxu0
          %v3182 = vadd.f32 %v3162, %v3181
          %3183 = vdwg.mxu0
          %3184 = vmatpush.msra.mxu0 %v2325
          %3185 = vmatpush.msra.mxu0 %v2317
          %3186 = vmatpush.msra.mxu0 %v2309
          %3187 = vmatpush.msra.mxu0 %v2301
          %3188 = vmatpush.msra.mxu0 %v2293
          %3189 = vmatpush.msra.mxu0 %v2285
          %3190 = vmatpush.msra.mxu0 %v2277
          %3191 = vmatpush.msra.mxu0 %v2269
          %3192 = vmatpush.msra.mxu0 %v2261
          %3193 = vmatpush.msra.mxu0 %v2253
          %3194 = vmatpush.msra.mxu0 %v2245
          %3195 = vmatpush.msra.mxu0 %v2237
          %3196 = vmatpush.msra.mxu0 %v2229
          %3197 = vmatpush.msra.mxu0 %v2221
          %3198 = vmatpush.msra.mxu0 %v2213
          %3199 = vmatpush.msra.mxu0 %v2205
          %3200 = vmatmul.f32.gmra.mxu0 %v1559
          %v3201 = vpop.f32.mrf.mxu0
          %v3202 = vadd.f32 %v3182, %v3201
          %3203 = vdwg.mxu0
          %3204 = vmatpush.msra.mxu0 %v2453
          %3205 = vmatpush.msra.mxu0 %v2445
          %3206 = vmatpush.msra.mxu0 %v2437
          %3207 = vmatpush.msra.mxu0 %v2429
          %3208 = vmatpush.msra.mxu0 %v2421
          %3209 = vmatpush.msra.mxu0 %v2413
          %3210 = vmatpush.msra.mxu0 %v2405
          %3211 = vmatpush.msra.mxu0 %v2397
          %3212 = vmatpush.msra.mxu0 %v2389
          %3213 = vmatpush.msra.mxu0 %v2381
          %3214 = vmatpush.msra.mxu0 %v2373
          %3215 = vmatpush.msra.mxu0 %v2365
          %3216 = vmatpush.msra.mxu0 %v2357
          %3217 = vmatpush.msra.mxu0 %v2349
          %3218 = vmatpush.msra.mxu0 %v2341
          %3219 = vmatpush.msra.mxu0 %v2333
          %3220 = vmatmul.f32.gmra.mxu0 %v1560
          %v3221 = vpop.f32.mrf.mxu0
          %v3222 = vadd.f32 %v3202, %v3221
          %3223 = vdwg.mxu0
          %3224 = vmatpush.msra.mxu0 %v2581
          %3225 = vmatpush.msra.mxu0 %v2573
          %3226 = vmatpush.msra.mxu0 %v2565
          %3227 = vmatpush.msra.mxu0 %v2557
          %3228 = vmatpush.msra.mxu0 %v2549
          %3229 = vmatpush.msra.mxu0 %v2541
          %3230 = vmatpush.msra.mxu0 %v2533
          %3231 = vmatpush.msra.mxu0 %v2525
          %3232 = vmatpush.msra.mxu0 %v2517
          %3233 = vmatpush.msra.mxu0 %v2509
          %3234 = vmatpush.msra.mxu0 %v2501
          %3235 = vmatpush.msra.mxu0 %v2493
          %3236 = vmatpush.msra.mxu0 %v2485
          %3237 = vmatpush.msra.mxu0 %v2477
          %3238 = vmatpush.msra.mxu0 %v2469
          %3239 = vmatpush.msra.mxu0 %v2461
          %3240 = vmatmul.f32.gmra.mxu0 %v1561
          %v3241 = vpop.f32.mrf.mxu0
          %v3242 = vadd.f32 %v3222, %v3241
          %3243 = vdwg.mxu0
          %3244 = vmatpush.msra.mxu0 %v1686
          %3245 = vmatpush.msra.mxu0 %v1678
          %3246 = vmatpush.msra.mxu0 %v1670
          %3247 = vmatpush.msra.mxu0 %v1662
          %3248 = vmatpush.msra.mxu0 %v1654
          %3249 = vmatpush.msra.mxu0 %v1646
          %3250 = vmatpush.msra.mxu0 %v1638
          %3251 = vmatpush.msra.mxu0 %v1630
          %3252 = vmatpush.msra.mxu0 %v1622
          %3253 = vmatpush.msra.mxu0 %v1614
          %3254 = vmatpush.msra.mxu0 %v1606
          %3255 = vmatpush.msra.mxu0 %v1598
          %3256 = vmatpush.msra.mxu0 %v1590
          %3257 = vmatpush.msra.mxu0 %v1582
          %3258 = vmatpush.msra.mxu0 %v1574
          %3259 = vmatpush.msra.mxu0 %v1566
          %3260 = vmatmul.f32.gmra.mxu0 %v1554
          %v3261 = vpop.f32.mrf.mxu0
          %v3262 = vadd.f32 %v2592, %v3261
          %3263 = vdwg.mxu0
          %3264 = vmatpush.msra.mxu0 %v1814
          %3265 = vmatpush.msra.mxu0 %v1806
          %3266 = vmatpush.msra.mxu0 %v1798
          %3267 = vmatpush.msra.mxu0 %v1790
          %3268 = vmatpush.msra.mxu0 %v1782
          %3269 = vmatpush.msra.mxu0 %v1774
          %3270 = vmatpush.msra.mxu0 %v1766
          %3271 = vmatpush.msra.mxu0 %v1758
          %3272 = vmatpush.msra.mxu0 %v1750
          %3273 = vmatpush.msra.mxu0 %v1742
          %3274 = vmatpush.msra.mxu0 %v1734
          %3275 = vmatpush.msra.mxu0 %v1726
          %3276 = vmatpush.msra.mxu0 %v1718
          %3277 = vmatpush.msra.mxu0 %v1710
          %3278 = vmatpush.msra.mxu0 %v1702
          %3279 = vmatpush.msra.mxu0 %v1694
          %3280 = vmatmul.f32.gmra.mxu0 %v1555
          %v3281 = vpop.f32.mrf.mxu0
          %v3282 = vadd.f32 %v3262, %v3281
          %3283 = vdwg.mxu0
          %3284 = vmatpush.msra.mxu0 %v1942
          %3285 = vmatpush.msra.mxu0 %v1934
          %3286 = vmatpush.msra.mxu0 %v1926
          %3287 = vmatpush.msra.mxu0 %v1918
          %3288 = vmatpush.msra.mxu0 %v1910
          %3289 = vmatpush.msra.mxu0 %v1902
          %3290 = vmatpush.msra.mxu0 %v1894
          %3291 = vmatpush.msra.mxu0 %v1886
          %3292 = vmatpush.msra.mxu0 %v1878
          %3293 = vmatpush.msra.mxu0 %v1870
          %3294 = vmatpush.msra.mxu0 %v1862
          %3295 = vmatpush.msra.mxu0 %v1854
          %3296 = vmatpush.msra.mxu0 %v1846
          %3297 = vmatpush.msra.mxu0 %v1838
          %3298 = vmatpush.msra.mxu0 %v1830
          %3299 = vmatpush.msra.mxu0 %v1822
          %3300 = vmatmul.f32.gmra.mxu0 %v1556
          %v3301 = vpop.f32.mrf.mxu0
          %v3302 = vadd.f32 %v3282, %v3301
          %3303 = vdwg.mxu0
          %3304 = vmatpush.msra.mxu0 %v2070
          %3305 = vmatpush.msra.mxu0 %v2062
          %3306 = vmatpush.msra.mxu0 %v2054
          %3307 = vmatpush.msra.mxu0 %v2046
          %3308 = vmatpush.msra.mxu0 %v2038
          %3309 = vmatpush.msra.mxu0 %v2030
          %3310 = vmatpush.msra.mxu0 %v2022
          %3311 = vmatpush.msra.mxu0 %v2014
          %3312 = vmatpush.msra.mxu0 %v2006
          %3313 = vmatpush.msra.mxu0 %v1998
          %3314 = vmatpush.msra.mxu0 %v1990
          %3315 = vmatpush.msra.mxu0 %v1982
          %3316 = vmatpush.msra.mxu0 %v1974
          %3317 = vmatpush.msra.mxu0 %v1966
          %3318 = vmatpush.msra.mxu0 %v1958
          %3319 = vmatpush.msra.mxu0 %v1950
          %3320 = vmatmul.f32.gmra.mxu0 %v1557
          %v3321 = vpop.f32.mrf.mxu0
          %v3322 = vadd.f32 %v3302, %v3321
          %3323 = vdwg.mxu0
          %3324 = vmatpush.msra.mxu0 %v2198
          %3325 = vmatpush.msra.mxu0 %v2190
          %3326 = vmatpush.msra.mxu0 %v2182
          %3327 = vmatpush.msra.mxu0 %v2174
          %3328 = vmatpush.msra.mxu0 %v2166
          %3329 = vmatpush.msra.mxu0 %v2158
          %3330 = vmatpush.msra.mxu0 %v2150
          %3331 = vmatpush.msra.mxu0 %v2142
          %3332 = vmatpush.msra.mxu0 %v2134
          %3333 = vmatpush.msra.mxu0 %v2126
          %3334 = vmatpush.msra.mxu0 %v2118
          %3335 = vmatpush.msra.mxu0 %v2110
          %3336 = vmatpush.msra.mxu0 %v2102
          %3337 = vmatpush.msra.mxu0 %v2094
          %3338 = vmatpush.msra.mxu0 %v2086
          %3339 = vmatpush.msra.mxu0 %v2078
          %3340 = vmatmul.f32.gmra.mxu0 %v1558
          %v3341 = vpop.f32.mrf.mxu0
          %v3342 = vadd.f32 %v3322, %v3341
          %3343 = vdwg.mxu0
          %3344 = vmatpush.msra.mxu0 %v2326
          %3345 = vmatpush.msra.mxu0 %v2318
          %3346 = vmatpush.msra.mxu0 %v2310
          %3347 = vmatpush.msra.mxu0 %v2302
          %3348 = vmatpush.msra.mxu0 %v2294
          %3349 = vmatpush.msra.mxu0 %v2286
          %3350 = vmatpush.msra.mxu0 %v2278
          %3351 = vmatpush.msra.mxu0 %v2270
          %3352 = vmatpush.msra.mxu0 %v2262
          %3353 = vmatpush.msra.mxu0 %v2254
          %3354 = vmatpush.msra.mxu0 %v2246
          %3355 = vmatpush.msra.mxu0 %v2238
          %3356 = vmatpush.msra.mxu0 %v2230
          %3357 = vmatpush.msra.mxu0 %v2222
          %3358 = vmatpush.msra.mxu0 %v2214
          %3359 = vmatpush.msra.mxu0 %v2206
          %3360 = vmatmul.f32.gmra.mxu0 %v1559
          %v3361 = vpop.f32.mrf.mxu0
          %v3362 = vadd.f32 %v3342, %v3361
          %3363 = vdwg.mxu0
          %3364 = vmatpush.msra.mxu0 %v2454
          %3365 = vmatpush.msra.mxu0 %v2446
          %3366 = vmatpush.msra.mxu0 %v2438
          %3367 = vmatpush.msra.mxu0 %v2430
          %3368 = vmatpush.msra.mxu0 %v2422
          %3369 = vmatpush.msra.mxu0 %v2414
          %3370 = vmatpush.msra.mxu0 %v2406
          %3371 = vmatpush.msra.mxu0 %v2398
          %3372 = vmatpush.msra.mxu0 %v2390
          %3373 = vmatpush.msra.mxu0 %v2382
          %3374 = vmatpush.msra.mxu0 %v2374
          %3375 = vmatpush.msra.mxu0 %v2366
          %3376 = vmatpush.msra.mxu0 %v2358
          %3377 = vmatpush.msra.mxu0 %v2350
          %3378 = vmatpush.msra.mxu0 %v2342
          %3379 = vmatpush.msra.mxu0 %v2334
          %3380 = vmatmul.f32.gmra.mxu0 %v1560
          %v3381 = vpop.f32.mrf.mxu0
          %v3382 = vadd.f32 %v3362, %v3381
          %3383 = vdwg.mxu0
          %3384 = vmatpush.msra.mxu0 %v2582
          %3385 = vmatpush.msra.mxu0 %v2574
          %3386 = vmatpush.msra.mxu0 %v2566
          %3387 = vmatpush.msra.mxu0 %v2558
          %3388 = vmatpush.msra.mxu0 %v2550
          %3389 = vmatpush.msra.mxu0 %v2542
          %3390 = vmatpush.msra.mxu0 %v2534
          %3391 = vmatpush.msra.mxu0 %v2526
          %3392 = vmatpush.msra.mxu0 %v2518
          %3393 = vmatpush.msra.mxu0 %v2510
          %3394 = vmatpush.msra.mxu0 %v2502
          %3395 = vmatpush.msra.mxu0 %v2494
          %3396 = vmatpush.msra.mxu0 %v2486
          %3397 = vmatpush.msra.mxu0 %v2478
          %3398 = vmatpush.msra.mxu0 %v2470
          %3399 = vmatpush.msra.mxu0 %v2462
          %3400 = vmatmul.f32.gmra.mxu0 %v1561
          %v3401 = vpop.f32.mrf.mxu0
          %v3402 = vadd.f32 %v3382, %v3401
          %3403 = vdwg.mxu0
          %3404 = vmatpush.msra.mxu0 %v1687
          %3405 = vmatpush.msra.mxu0 %v1679
          %3406 = vmatpush.msra.mxu0 %v1671
          %3407 = vmatpush.msra.mxu0 %v1663
          %3408 = vmatpush.msra.mxu0 %v1655
          %3409 = vmatpush.msra.mxu0 %v1647
          %3410 = vmatpush.msra.mxu0 %v1639
          %3411 = vmatpush.msra.mxu0 %v1631
          %3412 = vmatpush.msra.mxu0 %v1623
          %3413 = vmatpush.msra.mxu0 %v1615
          %3414 = vmatpush.msra.mxu0 %v1607
          %3415 = vmatpush.msra.mxu0 %v1599
          %3416 = vmatpush.msra.mxu0 %v1591
          %3417 = vmatpush.msra.mxu0 %v1583
          %3418 = vmatpush.msra.mxu0 %v1575
          %3419 = vmatpush.msra.mxu0 %v1567
          %3420 = vmatmul.f32.gmra.mxu0 %v1554
          %v3421 = vpop.f32.mrf.mxu0
          %v3422 = vadd.f32 %v2593, %v3421
          %3423 = vdwg.mxu0
          %3424 = vmatpush.msra.mxu0 %v1815
          %3425 = vmatpush.msra.mxu0 %v1807
          %3426 = vmatpush.msra.mxu0 %v1799
          %3427 = vmatpush.msra.mxu0 %v1791
          %3428 = vmatpush.msra.mxu0 %v1783
          %3429 = vmatpush.msra.mxu0 %v1775
          %3430 = vmatpush.msra.mxu0 %v1767
          %3431 = vmatpush.msra.mxu0 %v1759
          %3432 = vmatpush.msra.mxu0 %v1751
          %3433 = vmatpush.msra.mxu0 %v1743
          %3434 = vmatpush.msra.mxu0 %v1735
          %3435 = vmatpush.msra.mxu0 %v1727
          %3436 = vmatpush.msra.mxu0 %v1719
          %3437 = vmatpush.msra.mxu0 %v1711
          %3438 = vmatpush.msra.mxu0 %v1703
          %3439 = vmatpush.msra.mxu0 %v1695
          %3440 = vmatmul.f32.gmra.mxu0 %v1555
          %v3441 = vpop.f32.mrf.mxu0
          %v3442 = vadd.f32 %v3422, %v3441
          %3443 = vdwg.mxu0
          %3444 = vmatpush.msra.mxu0 %v1943
          %3445 = vmatpush.msra.mxu0 %v1935
          %3446 = vmatpush.msra.mxu0 %v1927
          %3447 = vmatpush.msra.mxu0 %v1919
          %3448 = vmatpush.msra.mxu0 %v1911
          %3449 = vmatpush.msra.mxu0 %v1903
          %3450 = vmatpush.msra.mxu0 %v1895
          %3451 = vmatpush.msra.mxu0 %v1887
          %3452 = vmatpush.msra.mxu0 %v1879
          %3453 = vmatpush.msra.mxu0 %v1871
          %3454 = vmatpush.msra.mxu0 %v1863
          %3455 = vmatpush.msra.mxu0 %v1855
          %3456 = vmatpush.msra.mxu0 %v1847
          %3457 = vmatpush.msra.mxu0 %v1839
          %3458 = vmatpush.msra.mxu0 %v1831
          %3459 = vmatpush.msra.mxu0 %v1823
          %3460 = vmatmul.f32.gmra.mxu0 %v1556
          %v3461 = vpop.f32.mrf.mxu0
          %v3462 = vadd.f32 %v3442, %v3461
          %3463 = vdwg.mxu0
          %3464 = vmatpush.msra.mxu0 %v2071
          %3465 = vmatpush.msra.mxu0 %v2063
          %3466 = vmatpush.msra.mxu0 %v2055
          %3467 = vmatpush.msra.mxu0 %v2047
          %3468 = vmatpush.msra.mxu0 %v2039
          %3469 = vmatpush.msra.mxu0 %v2031
          %3470 = vmatpush.msra.mxu0 %v2023
          %3471 = vmatpush.msra.mxu0 %v2015
          %3472 = vmatpush.msra.mxu0 %v2007
          %3473 = vmatpush.msra.mxu0 %v1999
          %3474 = vmatpush.msra.mxu0 %v1991
          %3475 = vmatpush.msra.mxu0 %v1983
          %3476 = vmatpush.msra.mxu0 %v1975
          %3477 = vmatpush.msra.mxu0 %v1967
          %3478 = vmatpush.msra.mxu0 %v1959
          %3479 = vmatpush.msra.mxu0 %v1951
          %3480 = vmatmul.f32.gmra.mxu0 %v1557
          %v3481 = vpop.f32.mrf.mxu0
          %v3482 = vadd.f32 %v3462, %v3481
          %3483 = vdwg.mxu0
          %3484 = vmatpush.msra.mxu0 %v2199
          %3485 = vmatpush.msra.mxu0 %v2191
          %3486 = vmatpush.msra.mxu0 %v2183
          %3487 = vmatpush.msra.mxu0 %v2175
          %3488 = vmatpush.msra.mxu0 %v2167
          %3489 = vmatpush.msra.mxu0 %v2159
          %3490 = vmatpush.msra.mxu0 %v2151
          %3491 = vmatpush.msra.mxu0 %v2143
          %3492 = vmatpush.msra.mxu0 %v2135
          %3493 = vmatpush.msra.mxu0 %v2127
          %3494 = vmatpush.msra.mxu0 %v2119
          %3495 = vmatpush.msra.mxu0 %v2111
          %3496 = vmatpush.msra.mxu0 %v2103
          %3497 = vmatpush.msra.mxu0 %v2095
          %3498 = vmatpush.msra.mxu0 %v2087
          %3499 = vmatpush.msra.mxu0 %v2079
          %3500 = vmatmul.f32.gmra.mxu0 %v1558
          %v3501 = vpop.f32.mrf.mxu0
          %v3502 = vadd.f32 %v3482, %v3501
          %3503 = vdwg.mxu0
          %3504 = vmatpush.msra.mxu0 %v2327
          %3505 = vmatpush.msra.mxu0 %v2319
          %3506 = vmatpush.msra.mxu0 %v2311
          %3507 = vmatpush.msra.mxu0 %v2303
          %3508 = vmatpush.msra.mxu0 %v2295
          %3509 = vmatpush.msra.mxu0 %v2287
          %3510 = vmatpush.msra.mxu0 %v2279
          %3511 = vmatpush.msra.mxu0 %v2271
          %3512 = vmatpush.msra.mxu0 %v2263
          %3513 = vmatpush.msra.mxu0 %v2255
          %3514 = vmatpush.msra.mxu0 %v2247
          %3515 = vmatpush.msra.mxu0 %v2239
          %3516 = vmatpush.msra.mxu0 %v2231
          %3517 = vmatpush.msra.mxu0 %v2223
          %3518 = vmatpush.msra.mxu0 %v2215
          %3519 = vmatpush.msra.mxu0 %v2207
          %3520 = vmatmul.f32.gmra.mxu0 %v1559
          %v3521 = vpop.f32.mrf.mxu0
          %v3522 = vadd.f32 %v3502, %v3521
          %3523 = vdwg.mxu0
          %3524 = vmatpush.msra.mxu0 %v2455
          %3525 = vmatpush.msra.mxu0 %v2447
          %3526 = vmatpush.msra.mxu0 %v2439
          %3527 = vmatpush.msra.mxu0 %v2431
          %3528 = vmatpush.msra.mxu0 %v2423
          %3529 = vmatpush.msra.mxu0 %v2415
          %3530 = vmatpush.msra.mxu0 %v2407
          %3531 = vmatpush.msra.mxu0 %v2399
          %3532 = vmatpush.msra.mxu0 %v2391
          %3533 = vmatpush.msra.mxu0 %v2383
          %3534 = vmatpush.msra.mxu0 %v2375
          %3535 = vmatpush.msra.mxu0 %v2367
          %3536 = vmatpush.msra.mxu0 %v2359
          %3537 = vmatpush.msra.mxu0 %v2351
          %3538 = vmatpush.msra.mxu0 %v2343
          %3539 = vmatpush.msra.mxu0 %v2335
          %3540 = vmatmul.f32.gmra.mxu0 %v1560
          %v3541 = vpop.f32.mrf.mxu0
          %v3542 = vadd.f32 %v3522, %v3541
          %3543 = vdwg.mxu0
          %3544 = vmatpush.msra.mxu0 %v2583
          %3545 = vmatpush.msra.mxu0 %v2575
          %3546 = vmatpush.msra.mxu0 %v2567
          %3547 = vmatpush.msra.mxu0 %v2559
          %3548 = vmatpush.msra.mxu0 %v2551
          %3549 = vmatpush.msra.mxu0 %v2543
          %3550 = vmatpush.msra.mxu0 %v2535
          %3551 = vmatpush.msra.mxu0 %v2527
          %3552 = vmatpush.msra.mxu0 %v2519
          %3553 = vmatpush.msra.mxu0 %v2511
          %3554 = vmatpush.msra.mxu0 %v2503
          %3555 = vmatpush.msra.mxu0 %v2495
          %3556 = vmatpush.msra.mxu0 %v2487
          %3557 = vmatpush.msra.mxu0 %v2479
          %3558 = vmatpush.msra.mxu0 %v2471
          %3559 = vmatpush.msra.mxu0 %v2463
          %3560 = vmatmul.f32.gmra.mxu0 %v1561
          %v3561 = vpop.f32.mrf.mxu0
          %v3562 = vadd.f32 %v3542, %v3561
          %3563 = vdwg.mxu0
          %3564 = vmatpush.msra.mxu0 %v1688
          %3565 = vmatpush.msra.mxu0 %v1680
          %3566 = vmatpush.msra.mxu0 %v1672
          %3567 = vmatpush.msra.mxu0 %v1664
          %3568 = vmatpush.msra.mxu0 %v1656
          %3569 = vmatpush.msra.mxu0 %v1648
          %3570 = vmatpush.msra.mxu0 %v1640
          %3571 = vmatpush.msra.mxu0 %v1632
          %3572 = vmatpush.msra.mxu0 %v1624
          %3573 = vmatpush.msra.mxu0 %v1616
          %3574 = vmatpush.msra.mxu0 %v1608
          %3575 = vmatpush.msra.mxu0 %v1600
          %3576 = vmatpush.msra.mxu0 %v1592
          %3577 = vmatpush.msra.mxu0 %v1584
          %3578 = vmatpush.msra.mxu0 %v1576
          %3579 = vmatpush.msra.mxu0 %v1568
          %3580 = vmatmul.f32.gmra.mxu0 %v1554
          %v3581 = vpop.f32.mrf.mxu0
          %v3582 = vadd.f32 %v2594, %v3581
          %3583 = vdwg.mxu0
          %3584 = vmatpush.msra.mxu0 %v1816
          %3585 = vmatpush.msra.mxu0 %v1808
          %3586 = vmatpush.msra.mxu0 %v1800
          %3587 = vmatpush.msra.mxu0 %v1792
          %3588 = vmatpush.msra.mxu0 %v1784
          %3589 = vmatpush.msra.mxu0 %v1776
          %3590 = vmatpush.msra.mxu0 %v1768
          %3591 = vmatpush.msra.mxu0 %v1760
          %3592 = vmatpush.msra.mxu0 %v1752
          %3593 = vmatpush.msra.mxu0 %v1744
          %3594 = vmatpush.msra.mxu0 %v1736
          %3595 = vmatpush.msra.mxu0 %v1728
          %3596 = vmatpush.msra.mxu0 %v1720
          %3597 = vmatpush.msra.mxu0 %v1712
          %3598 = vmatpush.msra.mxu0 %v1704
          %3599 = vmatpush.msra.mxu0 %v1696
          %3600 = vmatmul.f32.gmra.mxu0 %v1555
          %v3601 = vpop.f32.mrf.mxu0
          %v3602 = vadd.f32 %v3582, %v3601
          %3603 = vdwg.mxu0
          %3604 = vmatpush.msra.mxu0 %v1944
          %3605 = vmatpush.msra.mxu0 %v1936
          %3606 = vmatpush.msra.mxu0 %v1928
          %3607 = vmatpush.msra.mxu0 %v1920
          %3608 = vmatpush.msra.mxu0 %v1912
          %3609 = vmatpush.msra.mxu0 %v1904
          %3610 = vmatpush.msra.mxu0 %v1896
          %3611 = vmatpush.msra.mxu0 %v1888
          %3612 = vmatpush.msra.mxu0 %v1880
          %3613 = vmatpush.msra.mxu0 %v1872
          %3614 = vmatpush.msra.mxu0 %v1864
          %3615 = vmatpush.msra.mxu0 %v1856
          %3616 = vmatpush.msra.mxu0 %v1848
          %3617 = vmatpush.msra.mxu0 %v1840
          %3618 = vmatpush.msra.mxu0 %v1832
          %3619 = vmatpush.msra.mxu0 %v1824
          %3620 = vmatmul.f32.gmra.mxu0 %v1556
          %v3621 = vpop.f32.mrf.mxu0
          %v3622 = vadd.f32 %v3602, %v3621
          %3623 = vdwg.mxu0
          %3624 = vmatpush.msra.mxu0 %v2072
          %3625 = vmatpush.msra.mxu0 %v2064
          %3626 = vmatpush.msra.mxu0 %v2056
          %3627 = vmatpush.msra.mxu0 %v2048
          %3628 = vmatpush.msra.mxu0 %v2040
          %3629 = vmatpush.msra.mxu0 %v2032
          %3630 = vmatpush.msra.mxu0 %v2024
          %3631 = vmatpush.msra.mxu0 %v2016
          %3632 = vmatpush.msra.mxu0 %v2008
          %3633 = vmatpush.msra.mxu0 %v2000
          %3634 = vmatpush.msra.mxu0 %v1992
          %3635 = vmatpush.msra.mxu0 %v1984
          %3636 = vmatpush.msra.mxu0 %v1976
          %3637 = vmatpush.msra.mxu0 %v1968
          %3638 = vmatpush.msra.mxu0 %v1960
          %3639 = vmatpush.msra.mxu0 %v1952
          %3640 = vmatmul.f32.gmra.mxu0 %v1557
          %v3641 = vpop.f32.mrf.mxu0
          %v3642 = vadd.f32 %v3622, %v3641
          %3643 = vdwg.mxu0
          %3644 = vmatpush.msra.mxu0 %v2200
          %3645 = vmatpush.msra.mxu0 %v2192
          %3646 = vmatpush.msra.mxu0 %v2184
          %3647 = vmatpush.msra.mxu0 %v2176
          %3648 = vmatpush.msra.mxu0 %v2168
          %3649 = vmatpush.msra.mxu0 %v2160
          %3650 = vmatpush.msra.mxu0 %v2152
          %3651 = vmatpush.msra.mxu0 %v2144
          %3652 = vmatpush.msra.mxu0 %v2136
          %3653 = vmatpush.msra.mxu0 %v2128
          %3654 = vmatpush.msra.mxu0 %v2120
          %3655 = vmatpush.msra.mxu0 %v2112
          %3656 = vmatpush.msra.mxu0 %v2104
          %3657 = vmatpush.msra.mxu0 %v2096
          %3658 = vmatpush.msra.mxu0 %v2088
          %3659 = vmatpush.msra.mxu0 %v2080
          %3660 = vmatmul.f32.gmra.mxu0 %v1558
          %v3661 = vpop.f32.mrf.mxu0
          %v3662 = vadd.f32 %v3642, %v3661
          %3663 = vdwg.mxu0
          %3664 = vmatpush.msra.mxu0 %v2328
          %3665 = vmatpush.msra.mxu0 %v2320
          %3666 = vmatpush.msra.mxu0 %v2312
          %3667 = vmatpush.msra.mxu0 %v2304
          %3668 = vmatpush.msra.mxu0 %v2296
          %3669 = vmatpush.msra.mxu0 %v2288
          %3670 = vmatpush.msra.mxu0 %v2280
          %3671 = vmatpush.msra.mxu0 %v2272
          %3672 = vmatpush.msra.mxu0 %v2264
          %3673 = vmatpush.msra.mxu0 %v2256
          %3674 = vmatpush.msra.mxu0 %v2248
          %3675 = vmatpush.msra.mxu0 %v2240
          %3676 = vmatpush.msra.mxu0 %v2232
          %3677 = vmatpush.msra.mxu0 %v2224
          %3678 = vmatpush.msra.mxu0 %v2216
          %3679 = vmatpush.msra.mxu0 %v2208
          %3680 = vmatmul.f32.gmra.mxu0 %v1559
          %v3681 = vpop.f32.mrf.mxu0
          %v3682 = vadd.f32 %v3662, %v3681
          %3683 = vdwg.mxu0
          %3684 = vmatpush.msra.mxu0 %v2456
          %3685 = vmatpush.msra.mxu0 %v2448
          %3686 = vmatpush.msra.mxu0 %v2440
          %3687 = vmatpush.msra.mxu0 %v2432
          %3688 = vmatpush.msra.mxu0 %v2424
          %3689 = vmatpush.msra.mxu0 %v2416
          %3690 = vmatpush.msra.mxu0 %v2408
          %3691 = vmatpush.msra.mxu0 %v2400
          %3692 = vmatpush.msra.mxu0 %v2392
          %3693 = vmatpush.msra.mxu0 %v2384
          %3694 = vmatpush.msra.mxu0 %v2376
          %3695 = vmatpush.msra.mxu0 %v2368
          %3696 = vmatpush.msra.mxu0 %v2360
          %3697 = vmatpush.msra.mxu0 %v2352
          %3698 = vmatpush.msra.mxu0 %v2344
          %3699 = vmatpush.msra.mxu0 %v2336
          %3700 = vmatmul.f32.gmra.mxu0 %v1560
          %v3701 = vpop.f32.mrf.mxu0
          %v3702 = vadd.f32 %v3682, %v3701
          %3703 = vdwg.mxu0
          %3704 = vmatpush.msra.mxu0 %v2584
          %3705 = vmatpush.msra.mxu0 %v2576
          %3706 = vmatpush.msra.mxu0 %v2568
          %3707 = vmatpush.msra.mxu0 %v2560
          %3708 = vmatpush.msra.mxu0 %v2552
          %3709 = vmatpush.msra.mxu0 %v2544
          %3710 = vmatpush.msra.mxu0 %v2536
          %3711 = vmatpush.msra.mxu0 %v2528
          %3712 = vmatpush.msra.mxu0 %v2520
          %3713 = vmatpush.msra.mxu0 %v2512
          %3714 = vmatpush.msra.mxu0 %v2504
          %3715 = vmatpush.msra.mxu0 %v2496
          %3716 = vmatpush.msra.mxu0 %v2488
          %3717 = vmatpush.msra.mxu0 %v2480
          %3718 = vmatpush.msra.mxu0 %v2472
          %3719 = vmatpush.msra.mxu0 %v2464
          %3720 = vmatmul.f32.gmra.mxu0 %v1561
          %v3721 = vpop.f32.mrf.mxu0
          %v3722 = vadd.f32 %v3702, %v3721
          %3723 = vdwg.mxu0
          %3724 = vmatpush.msra.mxu0 %v1689
          %3725 = vmatpush.msra.mxu0 %v1681
          %3726 = vmatpush.msra.mxu0 %v1673
          %3727 = vmatpush.msra.mxu0 %v1665
          %3728 = vmatpush.msra.mxu0 %v1657
          %3729 = vmatpush.msra.mxu0 %v1649
          %3730 = vmatpush.msra.mxu0 %v1641
          %3731 = vmatpush.msra.mxu0 %v1633
          %3732 = vmatpush.msra.mxu0 %v1625
          %3733 = vmatpush.msra.mxu0 %v1617
          %3734 = vmatpush.msra.mxu0 %v1609
          %3735 = vmatpush.msra.mxu0 %v1601
          %3736 = vmatpush.msra.mxu0 %v1593
          %3737 = vmatpush.msra.mxu0 %v1585
          %3738 = vmatpush.msra.mxu0 %v1577
          %3739 = vmatpush.msra.mxu0 %v1569
          %3740 = vmatmul.f32.gmra.mxu0 %v1554
          %v3741 = vpop.f32.mrf.mxu0
          %v3742 = vadd.f32 %v2595, %v3741
          %3743 = vdwg.mxu0
          %3744 = vmatpush.msra.mxu0 %v1817
          %3745 = vmatpush.msra.mxu0 %v1809
          %3746 = vmatpush.msra.mxu0 %v1801
          %3747 = vmatpush.msra.mxu0 %v1793
          %3748 = vmatpush.msra.mxu0 %v1785
          %3749 = vmatpush.msra.mxu0 %v1777
          %3750 = vmatpush.msra.mxu0 %v1769
          %3751 = vmatpush.msra.mxu0 %v1761
          %3752 = vmatpush.msra.mxu0 %v1753
          %3753 = vmatpush.msra.mxu0 %v1745
          %3754 = vmatpush.msra.mxu0 %v1737
          %3755 = vmatpush.msra.mxu0 %v1729
          %3756 = vmatpush.msra.mxu0 %v1721
          %3757 = vmatpush.msra.mxu0 %v1713
          %3758 = vmatpush.msra.mxu0 %v1705
          %3759 = vmatpush.msra.mxu0 %v1697
          %3760 = vmatmul.f32.gmra.mxu0 %v1555
          %v3761 = vpop.f32.mrf.mxu0
          %v3762 = vadd.f32 %v3742, %v3761
          %3763 = vdwg.mxu0
          %3764 = vmatpush.msra.mxu0 %v1945
          %3765 = vmatpush.msra.mxu0 %v1937
          %3766 = vmatpush.msra.mxu0 %v1929
          %3767 = vmatpush.msra.mxu0 %v1921
          %3768 = vmatpush.msra.mxu0 %v1913
          %3769 = vmatpush.msra.mxu0 %v1905
          %3770 = vmatpush.msra.mxu0 %v1897
          %3771 = vmatpush.msra.mxu0 %v1889
          %3772 = vmatpush.msra.mxu0 %v1881
          %3773 = vmatpush.msra.mxu0 %v1873
          %3774 = vmatpush.msra.mxu0 %v1865
          %3775 = vmatpush.msra.mxu0 %v1857
          %3776 = vmatpush.msra.mxu0 %v1849
          %3777 = vmatpush.msra.mxu0 %v1841
          %3778 = vmatpush.msra.mxu0 %v1833
          %3779 = vmatpush.msra.mxu0 %v1825
          %3780 = vmatmul.f32.gmra.mxu0 %v1556
          %v3781 = vpop.f32.mrf.mxu0
          %v3782 = vadd.f32 %v3762, %v3781
          %3783 = vdwg.mxu0
          %3784 = vmatpush.msra.mxu0 %v2073
          %3785 = vmatpush.msra.mxu0 %v2065
          %3786 = vmatpush.msra.mxu0 %v2057
          %3787 = vmatpush.msra.mxu0 %v2049
          %3788 = vmatpush.msra.mxu0 %v2041
          %3789 = vmatpush.msra.mxu0 %v2033
          %3790 = vmatpush.msra.mxu0 %v2025
          %3791 = vmatpush.msra.mxu0 %v2017
          %3792 = vmatpush.msra.mxu0 %v2009
          %3793 = vmatpush.msra.mxu0 %v2001
          %3794 = vmatpush.msra.mxu0 %v1993
          %3795 = vmatpush.msra.mxu0 %v1985
          %3796 = vmatpush.msra.mxu0 %v1977
          %3797 = vmatpush.msra.mxu0 %v1969
          %3798 = vmatpush.msra.mxu0 %v1961
          %3799 = vmatpush.msra.mxu0 %v1953
          %3800 = vmatmul.f32.gmra.mxu0 %v1557
          %v3801 = vpop.f32.mrf.mxu0
          %v3802 = vadd.f32 %v3782, %v3801
          %3803 = vdwg.mxu0
          %3804 = vmatpush.msra.mxu0 %v2201
          %3805 = vmatpush.msra.mxu0 %v2193
          %3806 = vmatpush.msra.mxu0 %v2185
          %3807 = vmatpush.msra.mxu0 %v2177
          %3808 = vmatpush.msra.mxu0 %v2169
          %3809 = vmatpush.msra.mxu0 %v2161
          %3810 = vmatpush.msra.mxu0 %v2153
          %3811 = vmatpush.msra.mxu0 %v2145
          %3812 = vmatpush.msra.mxu0 %v2137
          %3813 = vmatpush.msra.mxu0 %v2129
          %3814 = vmatpush.msra.mxu0 %v2121
          %3815 = vmatpush.msra.mxu0 %v2113
          %3816 = vmatpush.msra.mxu0 %v2105
          %3817 = vmatpush.msra.mxu0 %v2097
          %3818 = vmatpush.msra.mxu0 %v2089
          %3819 = vmatpush.msra.mxu0 %v2081
          %3820 = vmatmul.f32.gmra.mxu0 %v1558
          %v3821 = vpop.f32.mrf.mxu0
          %v3822 = vadd.f32 %v3802, %v3821
          %3823 = vdwg.mxu0
          %3824 = vmatpush.msra.mxu0 %v2329
          %3825 = vmatpush.msra.mxu0 %v2321
          %3826 = vmatpush.msra.mxu0 %v2313
          %3827 = vmatpush.msra.mxu0 %v2305
          %3828 = vmatpush.msra.mxu0 %v2297
          %3829 = vmatpush.msra.mxu0 %v2289
          %3830 = vmatpush.msra.mxu0 %v2281
          %3831 = vmatpush.msra.mxu0 %v2273
          %3832 = vmatpush.msra.mxu0 %v2265
          %3833 = vmatpush.msra.mxu0 %v2257
          %3834 = vmatpush.msra.mxu0 %v2249
          %3835 = vmatpush.msra.mxu0 %v2241
          %3836 = vmatpush.msra.mxu0 %v2233
          %3837 = vmatpush.msra.mxu0 %v2225
          %3838 = vmatpush.msra.mxu0 %v2217
          %3839 = vmatpush.msra.mxu0 %v2209
          %3840 = vmatmul.f32.gmra.mxu0 %v1559
          %v3841 = vpop.f32.mrf.mxu0
          %v3842 = vadd.f32 %v3822, %v3841
          %3843 = vdwg.mxu0
          %3844 = vmatpush.msra.mxu0 %v2457
          %3845 = vmatpush.msra.mxu0 %v2449
          %3846 = vmatpush.msra.mxu0 %v2441
          %3847 = vmatpush.msra.mxu0 %v2433
          %3848 = vmatpush.msra.mxu0 %v2425
          %3849 = vmatpush.msra.mxu0 %v2417
          %3850 = vmatpush.msra.mxu0 %v2409
          %3851 = vmatpush.msra.mxu0 %v2401
          %3852 = vmatpush.msra.mxu0 %v2393
          %3853 = vmatpush.msra.mxu0 %v2385
          %3854 = vmatpush.msra.mxu0 %v2377
          %3855 = vmatpush.msra.mxu0 %v2369
          %3856 = vmatpush.msra.mxu0 %v2361
          %3857 = vmatpush.msra.mxu0 %v2353
          %3858 = vmatpush.msra.mxu0 %v2345
          %3859 = vmatpush.msra.mxu0 %v2337
          %3860 = vmatmul.f32.gmra.mxu0 %v1560
          %v3861 = vpop.f32.mrf.mxu0
          %v3862 = vadd.f32 %v3842, %v3861
          %3863 = vdwg.mxu0
          %3864 = vmatpush.msra.mxu0 %v2585
          %3865 = vmatpush.msra.mxu0 %v2577
          %3866 = vmatpush.msra.mxu0 %v2569
          %3867 = vmatpush.msra.mxu0 %v2561
          %3868 = vmatpush.msra.mxu0 %v2553
          %3869 = vmatpush.msra.mxu0 %v2545
          %3870 = vmatpush.msra.mxu0 %v2537
          %3871 = vmatpush.msra.mxu0 %v2529
          %3872 = vmatpush.msra.mxu0 %v2521
          %3873 = vmatpush.msra.mxu0 %v2513
          %3874 = vmatpush.msra.mxu0 %v2505
          %3875 = vmatpush.msra.mxu0 %v2497
          %3876 = vmatpush.msra.mxu0 %v2489
          %3877 = vmatpush.msra.mxu0 %v2481
          %3878 = vmatpush.msra.mxu0 %v2473
          %3879 = vmatpush.msra.mxu0 %v2465
          %3880 = vmatmul.f32.gmra.mxu0 %v1561
          %v3881 = vpop.f32.mrf.mxu0
          %v3882 = vadd.f32 %v3862, %v3881
          %3883 = vdwg.mxu0
          %vm3884 = vcmp.gt.f32.partialorder %v2762, 0.0
          %vm3885 = vcmp.gt.f32.partialorder %v2922, 0.0
          %vm3886 = vcmp.gt.f32.partialorder %v3082, 0.0
          %vm3887 = vcmp.gt.f32.partialorder %v3242, 0.0
          %vm3888 = vcmp.gt.f32.partialorder %v3402, 0.0
          %vm3889 = vcmp.gt.f32.partialorder %v3562, 0.0
          %vm3890 = vcmp.gt.f32.partialorder %v3722, 0.0
          %vm3891 = vcmp.gt.f32.partialorder %v3882, 0.0
          %v3892 = vmul.f32 %v2762, 1.442695
          %v3893 = vpow.pop %v3892
          %v3894 = vmul.f32 %v2922, 1.442695
          %v3895 = vpow.pop %v3894
          %v3896 = vmul.f32 %v3082, 1.442695
          %v3897 = vpow.pop %v3896
          %v3898 = vmul.f32 %v3242, 1.442695
          %v3899 = vpow.pop %v3898
          %v3900 = vmul.f32 %v3402, 1.442695
          %v3901 = vpow.pop %v3900
          %v3902 = vmul.f32 %v3562, 1.442695
          %v3903 = vpow.pop %v3902
          %v3904 = vmul.f32 %v3722, 1.442695
          %v3905 = vpow.pop %v3904
          %v3906 = vmul.f32 %v3882, 1.442695
          %v3907 = vpow.pop %v3906
          %v3908 = vsub.f32 %v3893, 1.0
          %v3909 = vsub.f32 %v3895, 1.0
          %v3910 = vsub.f32 %v3897, 1.0
          %v3911 = vsub.f32 %v3899, 1.0
          %v3912 = vsub.f32 %v3901, 1.0
          %v3913 = vsub.f32 %v3903, 1.0
          %v3914 = vsub.f32 %v3905, 1.0
          %v3915 = vsub.f32 %v3907, 1.0
          %v3916 = vsel %vm3884, %v2762, %v3908
          %v3917 = vsel %vm3885, %v2922, %v3909
          %v3918 = vsel %vm3886, %v3082, %v3910
          %v3919 = vsel %vm3887, %v3242, %v3911
          %v3920 = vsel %vm3888, %v3402, %v3912
          %v3921 = vsel %vm3889, %v3562, %v3913
          %v3922 = vsel %vm3890, %v3722, %v3914
          %v3923 = vsel %vm3891, %v3882, %v3915
          %v3924 = vld [vmem:[%s5] sm:$0xff]
          %v3925 = vld [vmem:[%s5 + $0x8] sm:$0xff]
          %v3926 = vld [vmem:[%s5 + $0x10] sm:$0xff]
          %v3927 = vld [vmem:[%s5 + $0x18] sm:$0xff]
          %v3928 = vld [vmem:[%s5 + $0x20] sm:$0xff]
          %v3929 = vld [vmem:[%s5 + $0x28] sm:$0xff]
          %v3930 = vld [vmem:[%s5 + $0x30] sm:$0xff]
          %v3931 = vld [vmem:[%s5 + $0x38] sm:$0xff]
          %v3932 = vld [vmem:[%s5 + $0x40] sm:$0xff]
          %v3933 = vld [vmem:[%s5 + $0x48] sm:$0xff]
          %v3934 = vld [vmem:[%s5 + $0x50] sm:$0xff]
          %v3935 = vld [vmem:[%s5 + $0x58] sm:$0xff]
          %v3936 = vld [vmem:[%s5 + $0x60] sm:$0xff]
          %v3937 = vld [vmem:[%s5 + $0x68] sm:$0xff]
          %v3938 = vld [vmem:[%s5 + $0x70] sm:$0xff]
          %v3939 = vld [vmem:[%s5 + $0x78] sm:$0xff]
          %v3940 = vld [vmem:[%s5 + $0x80] sm:$0xff]
          %v3941 = vld [vmem:[%s5 + $0x88] sm:$0xff]
          %v3942 = vld [vmem:[%s5 + $0x90] sm:$0xff]
          %v3943 = vld [vmem:[%s5 + $0x98] sm:$0xff]
          %v3944 = vld [vmem:[%s5 + $0xa0] sm:$0xff]
          %v3945 = vld [vmem:[%s5 + $0xa8] sm:$0xff]
          %v3946 = vld [vmem:[%s5 + $0xb0] sm:$0xff]
          %v3947 = vld [vmem:[%s5 + $0xb8] sm:$0xff]
          %v3948 = vld [vmem:[%s5 + $0xc0] sm:$0xff]
          %v3949 = vld [vmem:[%s5 + $0xc8] sm:$0xff]
          %v3950 = vld [vmem:[%s5 + $0xd0] sm:$0xff]
          %v3951 = vld [vmem:[%s5 + $0xd8] sm:$0xff]
          %v3952 = vld [vmem:[%s5 + $0xe0] sm:$0xff]
          %v3953 = vld [vmem:[%s5 + $0xe8] sm:$0xff]
          %v3954 = vld [vmem:[%s5 + $0xf0] sm:$0xff]
          %v3955 = vld [vmem:[%s5 + $0xf8] sm:$0xff]
          %v3956 = vld [vmem:[%s5 + $0x100] sm:$0xff]
          %v3957 = vld [vmem:[%s5 + $0x108] sm:$0xff]
          %v3958 = vld [vmem:[%s5 + $0x110] sm:$0xff]
          %v3959 = vld [vmem:[%s5 + $0x118] sm:$0xff]
          %v3960 = vld [vmem:[%s5 + $0x120] sm:$0xff]
          %v3961 = vld [vmem:[%s5 + $0x128] sm:$0xff]
          %v3962 = vld [vmem:[%s5 + $0x130] sm:$0xff]
          %v3963 = vld [vmem:[%s5 + $0x138] sm:$0xff]
          %v3964 = vld [vmem:[%s5 + $0x140] sm:$0xff]
          %v3965 = vld [vmem:[%s5 + $0x148] sm:$0xff]
          %v3966 = vld [vmem:[%s5 + $0x150] sm:$0xff]
          %v3967 = vld [vmem:[%s5 + $0x158] sm:$0xff]
          %v3968 = vld [vmem:[%s5 + $0x160] sm:$0xff]
          %v3969 = vld [vmem:[%s5 + $0x168] sm:$0xff]
          %v3970 = vld [vmem:[%s5 + $0x170] sm:$0xff]
          %v3971 = vld [vmem:[%s5 + $0x178] sm:$0xff]
          %v3972 = vld [vmem:[%s5 + $0x180] sm:$0xff]
          %v3973 = vld [vmem:[%s5 + $0x188] sm:$0xff]
          %v3974 = vld [vmem:[%s5 + $0x190] sm:$0xff]
          %v3975 = vld [vmem:[%s5 + $0x198] sm:$0xff]
          %v3976 = vld [vmem:[%s5 + $0x1a0] sm:$0xff]
          %v3977 = vld [vmem:[%s5 + $0x1a8] sm:$0xff]
          %v3978 = vld [vmem:[%s5 + $0x1b0] sm:$0xff]
          %v3979 = vld [vmem:[%s5 + $0x1b8] sm:$0xff]
          %v3980 = vld [vmem:[%s5 + $0x1c0] sm:$0xff]
          %v3981 = vld [vmem:[%s5 + $0x1c8] sm:$0xff]
          %v3982 = vld [vmem:[%s5 + $0x1d0] sm:$0xff]
          %v3983 = vld [vmem:[%s5 + $0x1d8] sm:$0xff]
          %v3984 = vld [vmem:[%s5 + $0x1e0] sm:$0xff]
          %v3985 = vld [vmem:[%s5 + $0x1e8] sm:$0xff]
          %v3986 = vld [vmem:[%s5 + $0x1f0] sm:$0xff]
          %v3987 = vld [vmem:[%s5 + $0x1f8] sm:$0xff]
          %v3988 = vld [vmem:[%s5 + $0x200] sm:$0xff]
          %v3989 = vld [vmem:[%s5 + $0x208] sm:$0xff]
          %v3990 = vld [vmem:[%s5 + $0x210] sm:$0xff]
          %v3991 = vld [vmem:[%s5 + $0x218] sm:$0xff]
          %v3992 = vld [vmem:[%s5 + $0x220] sm:$0xff]
          %v3993 = vld [vmem:[%s5 + $0x228] sm:$0xff]
          %v3994 = vld [vmem:[%s5 + $0x230] sm:$0xff]
          %v3995 = vld [vmem:[%s5 + $0x238] sm:$0xff]
          %v3996 = vld [vmem:[%s5 + $0x240] sm:$0xff]
          %v3997 = vld [vmem:[%s5 + $0x248] sm:$0xff]
          %v3998 = vld [vmem:[%s5 + $0x250] sm:$0xff]
          %v3999 = vld [vmem:[%s5 + $0x258] sm:$0xff]
          %v4000 = vld [vmem:[%s5 + $0x260] sm:$0xff]
          %v4001 = vld [vmem:[%s5 + $0x268] sm:$0xff]
          %v4002 = vld [vmem:[%s5 + $0x270] sm:$0xff]
          %v4003 = vld [vmem:[%s5 + $0x278] sm:$0xff]
          %v4004 = vld [vmem:[%s5 + $0x280] sm:$0xff]
          %v4005 = vld [vmem:[%s5 + $0x288] sm:$0xff]
          %v4006 = vld [vmem:[%s5 + $0x290] sm:$0xff]
          %v4007 = vld [vmem:[%s5 + $0x298] sm:$0xff]
          %v4008 = vld [vmem:[%s5 + $0x2a0] sm:$0xff]
          %v4009 = vld [vmem:[%s5 + $0x2a8] sm:$0xff]
          %v4010 = vld [vmem:[%s5 + $0x2b0] sm:$0xff]
          %v4011 = vld [vmem:[%s5 + $0x2b8] sm:$0xff]
          %v4012 = vld [vmem:[%s5 + $0x2c0] sm:$0xff]
          %v4013 = vld [vmem:[%s5 + $0x2c8] sm:$0xff]
          %v4014 = vld [vmem:[%s5 + $0x2d0] sm:$0xff]
          %v4015 = vld [vmem:[%s5 + $0x2d8] sm:$0xff]
          %v4016 = vld [vmem:[%s5 + $0x2e0] sm:$0xff]
          %v4017 = vld [vmem:[%s5 + $0x2e8] sm:$0xff]
          %v4018 = vld [vmem:[%s5 + $0x2f0] sm:$0xff]
          %v4019 = vld [vmem:[%s5 + $0x2f8] sm:$0xff]
          %v4020 = vld [vmem:[%s5 + $0x300] sm:$0xff]
          %v4021 = vld [vmem:[%s5 + $0x308] sm:$0xff]
          %v4022 = vld [vmem:[%s5 + $0x310] sm:$0xff]
          %v4023 = vld [vmem:[%s5 + $0x318] sm:$0xff]
          %v4024 = vld [vmem:[%s5 + $0x320] sm:$0xff]
          %v4025 = vld [vmem:[%s5 + $0x328] sm:$0xff]
          %v4026 = vld [vmem:[%s5 + $0x330] sm:$0xff]
          %v4027 = vld [vmem:[%s5 + $0x338] sm:$0xff]
          %v4028 = vld [vmem:[%s5 + $0x340] sm:$0xff]
          %v4029 = vld [vmem:[%s5 + $0x348] sm:$0xff]
          %v4030 = vld [vmem:[%s5 + $0x350] sm:$0xff]
          %v4031 = vld [vmem:[%s5 + $0x358] sm:$0xff]
          %v4032 = vld [vmem:[%s5 + $0x360] sm:$0xff]
          %v4033 = vld [vmem:[%s5 + $0x368] sm:$0xff]
          %v4034 = vld [vmem:[%s5 + $0x370] sm:$0xff]
          %v4035 = vld [vmem:[%s5 + $0x378] sm:$0xff]
          %v4036 = vld [vmem:[%s5 + $0x380] sm:$0xff]
          %v4037 = vld [vmem:[%s5 + $0x388] sm:$0xff]
          %v4038 = vld [vmem:[%s5 + $0x390] sm:$0xff]
          %v4039 = vld [vmem:[%s5 + $0x398] sm:$0xff]
          %v4040 = vld [vmem:[%s5 + $0x3a0] sm:$0xff]
          %v4041 = vld [vmem:[%s5 + $0x3a8] sm:$0xff]
          %v4042 = vld [vmem:[%s5 + $0x3b0] sm:$0xff]
          %v4043 = vld [vmem:[%s5 + $0x3b8] sm:$0xff]
          %v4044 = vld [vmem:[%s5 + $0x3c0] sm:$0xff]
          %v4045 = vld [vmem:[%s5 + $0x3c8] sm:$0xff]
          %v4046 = vld [vmem:[%s5 + $0x3d0] sm:$0xff]
          %v4047 = vld [vmem:[%s5 + $0x3d8] sm:$0xff]
          %v4048 = vld [vmem:[%s5 + $0x3e0] sm:$0xff]
          %v4049 = vld [vmem:[%s5 + $0x3e8] sm:$0xff]
          %v4050 = vld [vmem:[%s5 + $0x3f0] sm:$0xff]
          %v4051 = vld [vmem:[%s5 + $0x3f8] sm:$0xff]
          %v4052 = vld [vmem:[%s5 + $0x400] sm:$0xff]
          %v4053 = vld [vmem:[%s5 + $0x408] sm:$0xff]
          %v4054 = vld [vmem:[%s5 + $0x410] sm:$0xff]
          %v4055 = vld [vmem:[%s5 + $0x418] sm:$0xff]
          %v4056 = vld [vmem:[%s5 + $0x420] sm:$0xff]
          %v4057 = vld [vmem:[%s5 + $0x428] sm:$0xff]
          %v4058 = vld [vmem:[%s5 + $0x430] sm:$0xff]
          %v4059 = vld [vmem:[%s5 + $0x438] sm:$0xff]
          %v4060 = vld [vmem:[%s5 + $0x440] sm:$0xff]
          %v4061 = vld [vmem:[%s5 + $0x448] sm:$0xff]
          %v4062 = vld [vmem:[%s5 + $0x450] sm:$0xff]
          %v4063 = vld [vmem:[%s5 + $0x458] sm:$0xff]
          %v4064 = vld [vmem:[%s5 + $0x460] sm:$0xff]
          %v4065 = vld [vmem:[%s5 + $0x468] sm:$0xff]
          %v4066 = vld [vmem:[%s5 + $0x470] sm:$0xff]
          %v4067 = vld [vmem:[%s5 + $0x478] sm:$0xff]
          %v4068 = vld [vmem:[%s5 + $0x480] sm:$0xff]
          %v4069 = vld [vmem:[%s5 + $0x488] sm:$0xff]
          %v4070 = vld [vmem:[%s5 + $0x490] sm:$0xff]
          %v4071 = vld [vmem:[%s5 + $0x498] sm:$0xff]
          %v4072 = vld [vmem:[%s5 + $0x4a0] sm:$0xff]
          %v4073 = vld [vmem:[%s5 + $0x4a8] sm:$0xff]
          %v4074 = vld [vmem:[%s5 + $0x4b0] sm:$0xff]
          %v4075 = vld [vmem:[%s5 + $0x4b8] sm:$0xff]
          %v4076 = vld [vmem:[%s5 + $0x4c0] sm:$0xff]
          %v4077 = vld [vmem:[%s5 + $0x4c8] sm:$0xff]
          %v4078 = vld [vmem:[%s5 + $0x4d0] sm:$0xff]
          %v4079 = vld [vmem:[%s5 + $0x4d8] sm:$0xff]
          %v4080 = vld [vmem:[%s5 + $0x4e0] sm:$0xff]
          %v4081 = vld [vmem:[%s5 + $0x4e8] sm:$0xff]
          %v4082 = vld [vmem:[%s5 + $0x4f0] sm:$0xff]
          %v4083 = vld [vmem:[%s5 + $0x4f8] sm:$0xff]
          %v4084 = vld [vmem:[%s5 + $0x500] sm:$0xff]
          %v4085 = vld [vmem:[%s5 + $0x508] sm:$0xff]
          %v4086 = vld [vmem:[%s5 + $0x510] sm:$0xff]
          %v4087 = vld [vmem:[%s5 + $0x518] sm:$0xff]
          %v4088 = vld [vmem:[%s5 + $0x520] sm:$0xff]
          %v4089 = vld [vmem:[%s5 + $0x528] sm:$0xff]
          %v4090 = vld [vmem:[%s5 + $0x530] sm:$0xff]
          %v4091 = vld [vmem:[%s5 + $0x538] sm:$0xff]
          %v4092 = vld [vmem:[%s5 + $0x540] sm:$0xff]
          %v4093 = vld [vmem:[%s5 + $0x548] sm:$0xff]
          %v4094 = vld [vmem:[%s5 + $0x550] sm:$0xff]
          %v4095 = vld [vmem:[%s5 + $0x558] sm:$0xff]
          %v4096 = vld [vmem:[%s5 + $0x560] sm:$0xff]
          %v4097 = vld [vmem:[%s5 + $0x568] sm:$0xff]
          %v4098 = vld [vmem:[%s5 + $0x570] sm:$0xff]
          %v4099 = vld [vmem:[%s5 + $0x578] sm:$0xff]
          %v4100 = vld [vmem:[%s5 + $0x580] sm:$0xff]
          %v4101 = vld [vmem:[%s5 + $0x588] sm:$0xff]
          %v4102 = vld [vmem:[%s5 + $0x590] sm:$0xff]
          %v4103 = vld [vmem:[%s5 + $0x598] sm:$0xff]
          %v4104 = vld [vmem:[%s5 + $0x5a0] sm:$0xff]
          %v4105 = vld [vmem:[%s5 + $0x5a8] sm:$0xff]
          %v4106 = vld [vmem:[%s5 + $0x5b0] sm:$0xff]
          %v4107 = vld [vmem:[%s5 + $0x5b8] sm:$0xff]
          %v4108 = vld [vmem:[%s5 + $0x5c0] sm:$0xff]
          %v4109 = vld [vmem:[%s5 + $0x5c8] sm:$0xff]
          %v4110 = vld [vmem:[%s5 + $0x5d0] sm:$0xff]
          %v4111 = vld [vmem:[%s5 + $0x5d8] sm:$0xff]
          %v4112 = vld [vmem:[%s5 + $0x5e0] sm:$0xff]
          %v4113 = vld [vmem:[%s5 + $0x5e8] sm:$0xff]
          %v4114 = vld [vmem:[%s5 + $0x5f0] sm:$0xff]
          %v4115 = vld [vmem:[%s5 + $0x5f8] sm:$0xff]
          %v4116 = vld [vmem:[%s5 + $0x600] sm:$0xff]
          %v4117 = vld [vmem:[%s5 + $0x608] sm:$0xff]
          %v4118 = vld [vmem:[%s5 + $0x610] sm:$0xff]
          %v4119 = vld [vmem:[%s5 + $0x618] sm:$0xff]
          %v4120 = vld [vmem:[%s5 + $0x620] sm:$0xff]
          %v4121 = vld [vmem:[%s5 + $0x628] sm:$0xff]
          %v4122 = vld [vmem:[%s5 + $0x630] sm:$0xff]
          %v4123 = vld [vmem:[%s5 + $0x638] sm:$0xff]
          %v4124 = vld [vmem:[%s5 + $0x640] sm:$0xff]
          %v4125 = vld [vmem:[%s5 + $0x648] sm:$0xff]
          %v4126 = vld [vmem:[%s5 + $0x650] sm:$0xff]
          %v4127 = vld [vmem:[%s5 + $0x658] sm:$0xff]
          %v4128 = vld [vmem:[%s5 + $0x660] sm:$0xff]
          %v4129 = vld [vmem:[%s5 + $0x668] sm:$0xff]
          %v4130 = vld [vmem:[%s5 + $0x670] sm:$0xff]
          %v4131 = vld [vmem:[%s5 + $0x678] sm:$0xff]
          %v4132 = vld [vmem:[%s5 + $0x680] sm:$0xff]
          %v4133 = vld [vmem:[%s5 + $0x688] sm:$0xff]
          %v4134 = vld [vmem:[%s5 + $0x690] sm:$0xff]
          %v4135 = vld [vmem:[%s5 + $0x698] sm:$0xff]
          %v4136 = vld [vmem:[%s5 + $0x6a0] sm:$0xff]
          %v4137 = vld [vmem:[%s5 + $0x6a8] sm:$0xff]
          %v4138 = vld [vmem:[%s5 + $0x6b0] sm:$0xff]
          %v4139 = vld [vmem:[%s5 + $0x6b8] sm:$0xff]
          %v4140 = vld [vmem:[%s5 + $0x6c0] sm:$0xff]
          %v4141 = vld [vmem:[%s5 + $0x6c8] sm:$0xff]
          %v4142 = vld [vmem:[%s5 + $0x6d0] sm:$0xff]
          %v4143 = vld [vmem:[%s5 + $0x6d8] sm:$0xff]
          %v4144 = vld [vmem:[%s5 + $0x6e0] sm:$0xff]
          %v4145 = vld [vmem:[%s5 + $0x6e8] sm:$0xff]
          %v4146 = vld [vmem:[%s5 + $0x6f0] sm:$0xff]
          %v4147 = vld [vmem:[%s5 + $0x6f8] sm:$0xff]
          %v4148 = vld [vmem:[%s5 + $0x700] sm:$0xff]
          %v4149 = vld [vmem:[%s5 + $0x708] sm:$0xff]
          %v4150 = vld [vmem:[%s5 + $0x710] sm:$0xff]
          %v4151 = vld [vmem:[%s5 + $0x718] sm:$0xff]
          %v4152 = vld [vmem:[%s5 + $0x720] sm:$0xff]
          %v4153 = vld [vmem:[%s5 + $0x728] sm:$0xff]
          %v4154 = vld [vmem:[%s5 + $0x730] sm:$0xff]
          %v4155 = vld [vmem:[%s5 + $0x738] sm:$0xff]
          %v4156 = vld [vmem:[%s5 + $0x740] sm:$0xff]
          %v4157 = vld [vmem:[%s5 + $0x748] sm:$0xff]
          %v4158 = vld [vmem:[%s5 + $0x750] sm:$0xff]
          %v4159 = vld [vmem:[%s5 + $0x758] sm:$0xff]
          %v4160 = vld [vmem:[%s5 + $0x760] sm:$0xff]
          %v4161 = vld [vmem:[%s5 + $0x768] sm:$0xff]
          %v4162 = vld [vmem:[%s5 + $0x770] sm:$0xff]
          %v4163 = vld [vmem:[%s5 + $0x778] sm:$0xff]
          %v4164 = vld [vmem:[%s5 + $0x780] sm:$0xff]
          %v4165 = vld [vmem:[%s5 + $0x788] sm:$0xff]
          %v4166 = vld [vmem:[%s5 + $0x790] sm:$0xff]
          %v4167 = vld [vmem:[%s5 + $0x798] sm:$0xff]
          %v4168 = vld [vmem:[%s5 + $0x7a0] sm:$0xff]
          %v4169 = vld [vmem:[%s5 + $0x7a8] sm:$0xff]
          %v4170 = vld [vmem:[%s5 + $0x7b0] sm:$0xff]
          %v4171 = vld [vmem:[%s5 + $0x7b8] sm:$0xff]
          %v4172 = vld [vmem:[%s5 + $0x7c0] sm:$0xff]
          %v4173 = vld [vmem:[%s5 + $0x7c8] sm:$0xff]
          %v4174 = vld [vmem:[%s5 + $0x7d0] sm:$0xff]
          %v4175 = vld [vmem:[%s5 + $0x7d8] sm:$0xff]
          %v4176 = vld [vmem:[%s5 + $0x7e0] sm:$0xff]
          %v4177 = vld [vmem:[%s5 + $0x7e8] sm:$0xff]
          %v4178 = vld [vmem:[%s5 + $0x7f0] sm:$0xff]
          %v4179 = vld [vmem:[%s5 + $0x7f8] sm:$0xff]
          %v4180 = vld [vmem:[%s5 + $0x800] sm:$0xff]
          %v4181 = vld [vmem:[%s5 + $0x808] sm:$0xff]
          %v4182 = vld [vmem:[%s5 + $0x810] sm:$0xff]
          %v4183 = vld [vmem:[%s5 + $0x818] sm:$0xff]
          %v4184 = vld [vmem:[%s5 + $0x820] sm:$0xff]
          %v4185 = vld [vmem:[%s5 + $0x828] sm:$0xff]
          %v4186 = vld [vmem:[%s5 + $0x830] sm:$0xff]
          %v4187 = vld [vmem:[%s5 + $0x838] sm:$0xff]
          %v4188 = vld [vmem:[%s5 + $0x840] sm:$0xff]
          %v4189 = vld [vmem:[%s5 + $0x848] sm:$0xff]
          %v4190 = vld [vmem:[%s5 + $0x850] sm:$0xff]
          %v4191 = vld [vmem:[%s5 + $0x858] sm:$0xff]
          %v4192 = vld [vmem:[%s5 + $0x860] sm:$0xff]
          %v4193 = vld [vmem:[%s5 + $0x868] sm:$0xff]
          %v4194 = vld [vmem:[%s5 + $0x870] sm:$0xff]
          %v4195 = vld [vmem:[%s5 + $0x878] sm:$0xff]
          %v4196 = vld [vmem:[%s5 + $0x880] sm:$0xff]
          %v4197 = vld [vmem:[%s5 + $0x888] sm:$0xff]
          %v4198 = vld [vmem:[%s5 + $0x890] sm:$0xff]
          %v4199 = vld [vmem:[%s5 + $0x898] sm:$0xff]
          %v4200 = vld [vmem:[%s5 + $0x8a0] sm:$0xff]
          %v4201 = vld [vmem:[%s5 + $0x8a8] sm:$0xff]
          %v4202 = vld [vmem:[%s5 + $0x8b0] sm:$0xff]
          %v4203 = vld [vmem:[%s5 + $0x8b8] sm:$0xff]
          %v4204 = vld [vmem:[%s5 + $0x8c0] sm:$0xff]
          %v4205 = vld [vmem:[%s5 + $0x8c8] sm:$0xff]
          %v4206 = vld [vmem:[%s5 + $0x8d0] sm:$0xff]
          %v4207 = vld [vmem:[%s5 + $0x8d8] sm:$0xff]
          %v4208 = vld [vmem:[%s5 + $0x8e0] sm:$0xff]
          %v4209 = vld [vmem:[%s5 + $0x8e8] sm:$0xff]
          %v4210 = vld [vmem:[%s5 + $0x8f0] sm:$0xff]
          %v4211 = vld [vmem:[%s5 + $0x8f8] sm:$0xff]
          %v4212 = vld [vmem:[%s5 + $0x900] sm:$0xff]
          %v4213 = vld [vmem:[%s5 + $0x908] sm:$0xff]
          %v4214 = vld [vmem:[%s5 + $0x910] sm:$0xff]
          %v4215 = vld [vmem:[%s5 + $0x918] sm:$0xff]
          %v4216 = vld [vmem:[%s5 + $0x920] sm:$0xff]
          %v4217 = vld [vmem:[%s5 + $0x928] sm:$0xff]
          %v4218 = vld [vmem:[%s5 + $0x930] sm:$0xff]
          %v4219 = vld [vmem:[%s5 + $0x938] sm:$0xff]
          %v4220 = vld [vmem:[%s5 + $0x940] sm:$0xff]
          %v4221 = vld [vmem:[%s5 + $0x948] sm:$0xff]
          %v4222 = vld [vmem:[%s5 + $0x950] sm:$0xff]
          %v4223 = vld [vmem:[%s5 + $0x958] sm:$0xff]
          %v4224 = vld [vmem:[%s5 + $0x960] sm:$0xff]
          %v4225 = vld [vmem:[%s5 + $0x968] sm:$0xff]
          %v4226 = vld [vmem:[%s5 + $0x970] sm:$0xff]
          %v4227 = vld [vmem:[%s5 + $0x978] sm:$0xff]
          %v4228 = vld [vmem:[%s5 + $0x980] sm:$0xff]
          %v4229 = vld [vmem:[%s5 + $0x988] sm:$0xff]
          %v4230 = vld [vmem:[%s5 + $0x990] sm:$0xff]
          %v4231 = vld [vmem:[%s5 + $0x998] sm:$0xff]
          %v4232 = vld [vmem:[%s5 + $0x9a0] sm:$0xff]
          %v4233 = vld [vmem:[%s5 + $0x9a8] sm:$0xff]
          %v4234 = vld [vmem:[%s5 + $0x9b0] sm:$0xff]
          %v4235 = vld [vmem:[%s5 + $0x9b8] sm:$0xff]
          %v4236 = vld [vmem:[%s5 + $0x9c0] sm:$0xff]
          %v4237 = vld [vmem:[%s5 + $0x9c8] sm:$0xff]
          %v4238 = vld [vmem:[%s5 + $0x9d0] sm:$0xff]
          %v4239 = vld [vmem:[%s5 + $0x9d8] sm:$0xff]
          %v4240 = vld [vmem:[%s5 + $0x9e0] sm:$0xff]
          %v4241 = vld [vmem:[%s5 + $0x9e8] sm:$0xff]
          %v4242 = vld [vmem:[%s5 + $0x9f0] sm:$0xff]
          %v4243 = vld [vmem:[%s5 + $0x9f8] sm:$0xff]
          %v4244 = vld [vmem:[%s5 + $0xa00] sm:$0xff]
          %v4245 = vld [vmem:[%s5 + $0xa08] sm:$0xff]
          %v4246 = vld [vmem:[%s5 + $0xa10] sm:$0xff]
          %v4247 = vld [vmem:[%s5 + $0xa18] sm:$0xff]
          %v4248 = vld [vmem:[%s5 + $0xa20] sm:$0xff]
          %v4249 = vld [vmem:[%s5 + $0xa28] sm:$0xff]
          %v4250 = vld [vmem:[%s5 + $0xa30] sm:$0xff]
          %v4251 = vld [vmem:[%s5 + $0xa38] sm:$0xff]
          %v4252 = vld [vmem:[%s5 + $0xa40] sm:$0xff]
          %v4253 = vld [vmem:[%s5 + $0xa48] sm:$0xff]
          %v4254 = vld [vmem:[%s5 + $0xa50] sm:$0xff]
          %v4255 = vld [vmem:[%s5 + $0xa58] sm:$0xff]
          %v4256 = vld [vmem:[%s5 + $0xa60] sm:$0xff]
          %v4257 = vld [vmem:[%s5 + $0xa68] sm:$0xff]
          %v4258 = vld [vmem:[%s5 + $0xa70] sm:$0xff]
          %v4259 = vld [vmem:[%s5 + $0xa78] sm:$0xff]
          %v4260 = vld [vmem:[%s5 + $0xa80] sm:$0xff]
          %v4261 = vld [vmem:[%s5 + $0xa88] sm:$0xff]
          %v4262 = vld [vmem:[%s5 + $0xa90] sm:$0xff]
          %v4263 = vld [vmem:[%s5 + $0xa98] sm:$0xff]
          %v4264 = vld [vmem:[%s5 + $0xaa0] sm:$0xff]
          %v4265 = vld [vmem:[%s5 + $0xaa8] sm:$0xff]
          %v4266 = vld [vmem:[%s5 + $0xab0] sm:$0xff]
          %v4267 = vld [vmem:[%s5 + $0xab8] sm:$0xff]
          %v4268 = vld [vmem:[%s5 + $0xac0] sm:$0xff]
          %v4269 = vld [vmem:[%s5 + $0xac8] sm:$0xff]
          %v4270 = vld [vmem:[%s5 + $0xad0] sm:$0xff]
          %v4271 = vld [vmem:[%s5 + $0xad8] sm:$0xff]
          %v4272 = vld [vmem:[%s5 + $0xae0] sm:$0xff]
          %v4273 = vld [vmem:[%s5 + $0xae8] sm:$0xff]
          %v4274 = vld [vmem:[%s5 + $0xaf0] sm:$0xff]
          %v4275 = vld [vmem:[%s5 + $0xaf8] sm:$0xff]
          %v4276 = vld [vmem:[%s5 + $0xb00] sm:$0xff]
          %v4277 = vld [vmem:[%s5 + $0xb08] sm:$0xff]
          %v4278 = vld [vmem:[%s5 + $0xb10] sm:$0xff]
          %v4279 = vld [vmem:[%s5 + $0xb18] sm:$0xff]
          %v4280 = vld [vmem:[%s5 + $0xb20] sm:$0xff]
          %v4281 = vld [vmem:[%s5 + $0xb28] sm:$0xff]
          %v4282 = vld [vmem:[%s5 + $0xb30] sm:$0xff]
          %v4283 = vld [vmem:[%s5 + $0xb38] sm:$0xff]
          %v4284 = vld [vmem:[%s5 + $0xb40] sm:$0xff]
          %v4285 = vld [vmem:[%s5 + $0xb48] sm:$0xff]
          %v4286 = vld [vmem:[%s5 + $0xb50] sm:$0xff]
          %v4287 = vld [vmem:[%s5 + $0xb58] sm:$0xff]
          %v4288 = vld [vmem:[%s5 + $0xb60] sm:$0xff]
          %v4289 = vld [vmem:[%s5 + $0xb68] sm:$0xff]
          %v4290 = vld [vmem:[%s5 + $0xb70] sm:$0xff]
          %v4291 = vld [vmem:[%s5 + $0xb78] sm:$0xff]
          %v4292 = vld [vmem:[%s5 + $0xb80] sm:$0xff]
          %v4293 = vld [vmem:[%s5 + $0xb88] sm:$0xff]
          %v4294 = vld [vmem:[%s5 + $0xb90] sm:$0xff]
          %v4295 = vld [vmem:[%s5 + $0xb98] sm:$0xff]
          %v4296 = vld [vmem:[%s5 + $0xba0] sm:$0xff]
          %v4297 = vld [vmem:[%s5 + $0xba8] sm:$0xff]
          %v4298 = vld [vmem:[%s5 + $0xbb0] sm:$0xff]
          %v4299 = vld [vmem:[%s5 + $0xbb8] sm:$0xff]
          %v4300 = vld [vmem:[%s5 + $0xbc0] sm:$0xff]
          %v4301 = vld [vmem:[%s5 + $0xbc8] sm:$0xff]
          %v4302 = vld [vmem:[%s5 + $0xbd0] sm:$0xff]
          %v4303 = vld [vmem:[%s5 + $0xbd8] sm:$0xff]
          %v4304 = vld [vmem:[%s5 + $0xbe0] sm:$0xff]
          %v4305 = vld [vmem:[%s5 + $0xbe8] sm:$0xff]
          %v4306 = vld [vmem:[%s5 + $0xbf0] sm:$0xff]
          %v4307 = vld [vmem:[%s5 + $0xbf8] sm:$0xff]
          %v4308 = vld [vmem:[%s6] sm:$0x7]
          %v4310 = vperm.slane %v4308, 0
          %v4311 = vperm.slane %v4308, 1
          %v4312 = vperm.slane %v4308, 2
          %4316 = vmatpush.msra.mxu0 %v3969
          %4317 = vmatpush.msra.mxu0 %v3966
          %4318 = vmatpush.msra.mxu0 %v3963
          %4319 = vmatpush.msra.mxu0 %v3960
          %4320 = vmatpush.msra.mxu0 %v3957
          %4321 = vmatpush.msra.mxu0 %v3954
          %4322 = vmatpush.msra.mxu0 %v3951
          %4323 = vmatpush.msra.mxu0 %v3948
          %4324 = vmatpush.msra.mxu0 %v3945
          %4325 = vmatpush.msra.mxu0 %v3942
          %4326 = vmatpush.msra.mxu0 %v3939
          %4327 = vmatpush.msra.mxu0 %v3936
          %4328 = vmatpush.msra.mxu0 %v3933
          %4329 = vmatpush.msra.mxu0 %v3930
          %4330 = vmatpush.msra.mxu0 %v3927
          %4331 = vmatpush.msra.mxu0 %v3924
          %4332 = vmatmul.f32.gmra.mxu0 %v3916
          %v4333 = vpop.f32.mrf.mxu0
          %v4334 = vadd.f32 %v4310, %v4333
          %4335 = vdwg.mxu0
          %4336 = vmatpush.msra.mxu0 %v4017
          %4337 = vmatpush.msra.mxu0 %v4014
          %4338 = vmatpush.msra.mxu0 %v4011
          %4339 = vmatpush.msra.mxu0 %v4008
          %4340 = vmatpush.msra.mxu0 %v4005
          %4341 = vmatpush.msra.mxu0 %v4002
          %4342 = vmatpush.msra.mxu0 %v3999
          %4343 = vmatpush.msra.mxu0 %v3996
          %4344 = vmatpush.msra.mxu0 %v3993
          %4345 = vmatpush.msra.mxu0 %v3990
          %4346 = vmatpush.msra.mxu0 %v3987
          %4347 = vmatpush.msra.mxu0 %v3984
          %4348 = vmatpush.msra.mxu0 %v3981
          %4349 = vmatpush.msra.mxu0 %v3978
          %4350 = vmatpush.msra.mxu0 %v3975
          %4351 = vmatpush.msra.mxu0 %v3972
          %4352 = vmatmul.f32.gmra.mxu0 %v3917
          %v4353 = vpop.f32.mrf.mxu0
          %v4354 = vadd.f32 %v4334, %v4353
          %4355 = vdwg.mxu0
          %4356 = vmatpush.msra.mxu0 %v4065
          %4357 = vmatpush.msra.mxu0 %v4062
          %4358 = vmatpush.msra.mxu0 %v4059
          %4359 = vmatpush.msra.mxu0 %v4056
          %4360 = vmatpush.msra.mxu0 %v4053
          %4361 = vmatpush.msra.mxu0 %v4050
          %4362 = vmatpush.msra.mxu0 %v4047
          %4363 = vmatpush.msra.mxu0 %v4044
          %4364 = vmatpush.msra.mxu0 %v4041
          %4365 = vmatpush.msra.mxu0 %v4038
          %4366 = vmatpush.msra.mxu0 %v4035
          %4367 = vmatpush.msra.mxu0 %v4032
          %4368 = vmatpush.msra.mxu0 %v4029
          %4369 = vmatpush.msra.mxu0 %v4026
          %4370 = vmatpush.msra.mxu0 %v4023
          %4371 = vmatpush.msra.mxu0 %v4020
          %4372 = vmatmul.f32.gmra.mxu0 %v3918
          %v4373 = vpop.f32.mrf.mxu0
          %v4374 = vadd.f32 %v4354, %v4373
          %4375 = vdwg.mxu0
          %4376 = vmatpush.msra.mxu0 %v4113
          %4377 = vmatpush.msra.mxu0 %v4110
          %4378 = vmatpush.msra.mxu0 %v4107
          %4379 = vmatpush.msra.mxu0 %v4104
          %4380 = vmatpush.msra.mxu0 %v4101
          %4381 = vmatpush.msra.mxu0 %v4098
          %4382 = vmatpush.msra.mxu0 %v4095
          %4383 = vmatpush.msra.mxu0 %v4092
          %4384 = vmatpush.msra.mxu0 %v4089
          %4385 = vmatpush.msra.mxu0 %v4086
          %4386 = vmatpush.msra.mxu0 %v4083
          %4387 = vmatpush.msra.mxu0 %v4080
          %4388 = vmatpush.msra.mxu0 %v4077
          %4389 = vmatpush.msra.mxu0 %v4074
          %4390 = vmatpush.msra.mxu0 %v4071
          %4391 = vmatpush.msra.mxu0 %v4068
          %4392 = vmatmul.f32.gmra.mxu0 %v3919
          %v4393 = vpop.f32.mrf.mxu0
          %v4394 = vadd.f32 %v4374, %v4393
          %4395 = vdwg.mxu0
          %4396 = vmatpush.msra.mxu0 %v4161
          %4397 = vmatpush.msra.mxu0 %v4158
          %4398 = vmatpush.msra.mxu0 %v4155
          %4399 = vmatpush.msra.mxu0 %v4152
          %4400 = vmatpush.msra.mxu0 %v4149
          %4401 = vmatpush.msra.mxu0 %v4146
          %4402 = vmatpush.msra.mxu0 %v4143
          %4403 = vmatpush.msra.mxu0 %v4140
          %4404 = vmatpush.msra.mxu0 %v4137
          %4405 = vmatpush.msra.mxu0 %v4134
          %4406 = vmatpush.msra.mxu0 %v4131
          %4407 = vmatpush.msra.mxu0 %v4128
          %4408 = vmatpush.msra.mxu0 %v4125
          %4409 = vmatpush.msra.mxu0 %v4122
          %4410 = vmatpush.msra.mxu0 %v4119
          %4411 = vmatpush.msra.mxu0 %v4116
          %4412 = vmatmul.f32.gmra.mxu0 %v3920
          %v4413 = vpop.f32.mrf.mxu0
          %v4414 = vadd.f32 %v4394, %v4413
          %4415 = vdwg.mxu0
          %4416 = vmatpush.msra.mxu0 %v4209
          %4417 = vmatpush.msra.mxu0 %v4206
          %4418 = vmatpush.msra.mxu0 %v4203
          %4419 = vmatpush.msra.mxu0 %v4200
          %4420 = vmatpush.msra.mxu0 %v4197
          %4421 = vmatpush.msra.mxu0 %v4194
          %4422 = vmatpush.msra.mxu0 %v4191
          %4423 = vmatpush.msra.mxu0 %v4188
          %4424 = vmatpush.msra.mxu0 %v4185
          %4425 = vmatpush.msra.mxu0 %v4182
          %4426 = vmatpush.msra.mxu0 %v4179
          %4427 = vmatpush.msra.mxu0 %v4176
          %4428 = vmatpush.msra.mxu0 %v4173
          %4429 = vmatpush.msra.mxu0 %v4170
          %4430 = vmatpush.msra.mxu0 %v4167
          %4431 = vmatpush.msra.mxu0 %v4164
          %4432 = vmatmul.f32.gmra.mxu0 %v3921
          %v4433 = vpop.f32.mrf.mxu0
          %v4434 = vadd.f32 %v4414, %v4433
          %4435 = vdwg.mxu0
          %4436 = vmatpush.msra.mxu0 %v4257
          %4437 = vmatpush.msra.mxu0 %v4254
          %4438 = vmatpush.msra.mxu0 %v4251
          %4439 = vmatpush.msra.mxu0 %v4248
          %4440 = vmatpush.msra.mxu0 %v4245
          %4441 = vmatpush.msra.mxu0 %v4242
          %4442 = vmatpush.msra.mxu0 %v4239
          %4443 = vmatpush.msra.mxu0 %v4236
          %4444 = vmatpush.msra.mxu0 %v4233
          %4445 = vmatpush.msra.mxu0 %v4230
          %4446 = vmatpush.msra.mxu0 %v4227
          %4447 = vmatpush.msra.mxu0 %v4224
          %4448 = vmatpush.msra.mxu0 %v4221
          %4449 = vmatpush.msra.mxu0 %v4218
          %4450 = vmatpush.msra.mxu0 %v4215
          %4451 = vmatpush.msra.mxu0 %v4212
          %4452 = vmatmul.f32.gmra.mxu0 %v3922
          %v4453 = vpop.f32.mrf.mxu0
          %v4454 = vadd.f32 %v4434, %v4453
          %4455 = vdwg.mxu0
          %4456 = vmatpush.msra.mxu0 %v4305
          %4457 = vmatpush.msra.mxu0 %v4302
          %4458 = vmatpush.msra.mxu0 %v4299
          %4459 = vmatpush.msra.mxu0 %v4296
          %4460 = vmatpush.msra.mxu0 %v4293
          %4461 = vmatpush.msra.mxu0 %v4290
          %4462 = vmatpush.msra.mxu0 %v4287
          %4463 = vmatpush.msra.mxu0 %v4284
          %4464 = vmatpush.msra.mxu0 %v4281
          %4465 = vmatpush.msra.mxu0 %v4278
          %4466 = vmatpush.msra.mxu0 %v4275
          %4467 = vmatpush.msra.mxu0 %v4272
          %4468 = vmatpush.msra.mxu0 %v4269
          %4469 = vmatpush.msra.mxu0 %v4266
          %4470 = vmatpush.msra.mxu0 %v4263
          %4471 = vmatpush.msra.mxu0 %v4260
          %4472 = vmatmul.f32.gmra.mxu0 %v3923
          %v4473 = vpop.f32.mrf.mxu0
          %v4474 = vadd.f32 %v4454, %v4473
          %4475 = vdwg.mxu0
          %4476 = vmatpush.msra.mxu0 %v3970
          %4477 = vmatpush.msra.mxu0 %v3967
          %4478 = vmatpush.msra.mxu0 %v3964
          %4479 = vmatpush.msra.mxu0 %v3961
          %4480 = vmatpush.msra.mxu0 %v3958
          %4481 = vmatpush.msra.mxu0 %v3955
          %4482 = vmatpush.msra.mxu0 %v3952
          %4483 = vmatpush.msra.mxu0 %v3949
          %4484 = vmatpush.msra.mxu0 %v3946
          %4485 = vmatpush.msra.mxu0 %v3943
          %4486 = vmatpush.msra.mxu0 %v3940
          %4487 = vmatpush.msra.mxu0 %v3937
          %4488 = vmatpush.msra.mxu0 %v3934
          %4489 = vmatpush.msra.mxu0 %v3931
          %4490 = vmatpush.msra.mxu0 %v3928
          %4491 = vmatpush.msra.mxu0 %v3925
          %4492 = vmatmul.f32.gmra.mxu0 %v3916
          %v4493 = vpop.f32.mrf.mxu0
          %v4494 = vadd.f32 %v4311, %v4493
          %4495 = vdwg.mxu0
          %4496 = vmatpush.msra.mxu0 %v4018
          %4497 = vmatpush.msra.mxu0 %v4015
          %4498 = vmatpush.msra.mxu0 %v4012
          %4499 = vmatpush.msra.mxu0 %v4009
          %4500 = vmatpush.msra.mxu0 %v4006
          %4501 = vmatpush.msra.mxu0 %v4003
          %4502 = vmatpush.msra.mxu0 %v4000
          %4503 = vmatpush.msra.mxu0 %v3997
          %4504 = vmatpush.msra.mxu0 %v3994
          %4505 = vmatpush.msra.mxu0 %v3991
          %4506 = vmatpush.msra.mxu0 %v3988
          %4507 = vmatpush.msra.mxu0 %v3985
          %4508 = vmatpush.msra.mxu0 %v3982
          %4509 = vmatpush.msra.mxu0 %v3979
          %4510 = vmatpush.msra.mxu0 %v3976
          %4511 = vmatpush.msra.mxu0 %v3973
          %4512 = vmatmul.f32.gmra.mxu0 %v3917
          %v4513 = vpop.f32.mrf.mxu0
          %v4514 = vadd.f32 %v4494, %v4513
          %4515 = vdwg.mxu0
          %4516 = vmatpush.msra.mxu0 %v4066
          %4517 = vmatpush.msra.mxu0 %v4063
          %4518 = vmatpush.msra.mxu0 %v4060
          %4519 = vmatpush.msra.mxu0 %v4057
          %4520 = vmatpush.msra.mxu0 %v4054
          %4521 = vmatpush.msra.mxu0 %v4051
          %4522 = vmatpush.msra.mxu0 %v4048
          %4523 = vmatpush.msra.mxu0 %v4045
          %4524 = vmatpush.msra.mxu0 %v4042
          %4525 = vmatpush.msra.mxu0 %v4039
          %4526 = vmatpush.msra.mxu0 %v4036
          %4527 = vmatpush.msra.mxu0 %v4033
          %4528 = vmatpush.msra.mxu0 %v4030
          %4529 = vmatpush.msra.mxu0 %v4027
          %4530 = vmatpush.msra.mxu0 %v4024
          %4531 = vmatpush.msra.mxu0 %v4021
          %4532 = vmatmul.f32.gmra.mxu0 %v3918
          %v4533 = vpop.f32.mrf.mxu0
          %v4534 = vadd.f32 %v4514, %v4533
          %4535 = vdwg.mxu0
          %4536 = vmatpush.msra.mxu0 %v4114
          %4537 = vmatpush.msra.mxu0 %v4111
          %4538 = vmatpush.msra.mxu0 %v4108
          %4539 = vmatpush.msra.mxu0 %v4105
          %4540 = vmatpush.msra.mxu0 %v4102
          %4541 = vmatpush.msra.mxu0 %v4099
          %4542 = vmatpush.msra.mxu0 %v4096
          %4543 = vmatpush.msra.mxu0 %v4093
          %4544 = vmatpush.msra.mxu0 %v4090
          %4545 = vmatpush.msra.mxu0 %v4087
          %4546 = vmatpush.msra.mxu0 %v4084
          %4547 = vmatpush.msra.mxu0 %v4081
          %4548 = vmatpush.msra.mxu0 %v4078
          %4549 = vmatpush.msra.mxu0 %v4075
          %4550 = vmatpush.msra.mxu0 %v4072
          %4551 = vmatpush.msra.mxu0 %v4069
          %4552 = vmatmul.f32.gmra.mxu0 %v3919
          %v4553 = vpop.f32.mrf.mxu0
          %v4554 = vadd.f32 %v4534, %v4553
          %4555 = vdwg.mxu0
          %4556 = vmatpush.msra.mxu0 %v4162
          %4557 = vmatpush.msra.mxu0 %v4159
          %4558 = vmatpush.msra.mxu0 %v4156
          %4559 = vmatpush.msra.mxu0 %v4153
          %4560 = vmatpush.msra.mxu0 %v4150
          %4561 = vmatpush.msra.mxu0 %v4147
          %4562 = vmatpush.msra.mxu0 %v4144
          %4563 = vmatpush.msra.mxu0 %v4141
          %4564 = vmatpush.msra.mxu0 %v4138
          %4565 = vmatpush.msra.mxu0 %v4135
          %4566 = vmatpush.msra.mxu0 %v4132
          %4567 = vmatpush.msra.mxu0 %v4129
          %4568 = vmatpush.msra.mxu0 %v4126
          %4569 = vmatpush.msra.mxu0 %v4123
          %4570 = vmatpush.msra.mxu0 %v4120
          %4571 = vmatpush.msra.mxu0 %v4117
          %4572 = vmatmul.f32.gmra.mxu0 %v3920
          %v4573 = vpop.f32.mrf.mxu0
          %v4574 = vadd.f32 %v4554, %v4573
          %4575 = vdwg.mxu0
          %4576 = vmatpush.msra.mxu0 %v4210
          %4577 = vmatpush.msra.mxu0 %v4207
          %4578 = vmatpush.msra.mxu0 %v4204
          %4579 = vmatpush.msra.mxu0 %v4201
          %4580 = vmatpush.msra.mxu0 %v4198
          %4581 = vmatpush.msra.mxu0 %v4195
          %4582 = vmatpush.msra.mxu0 %v4192
          %4583 = vmatpush.msra.mxu0 %v4189
          %4584 = vmatpush.msra.mxu0 %v4186
          %4585 = vmatpush.msra.mxu0 %v4183
          %4586 = vmatpush.msra.mxu0 %v4180
          %4587 = vmatpush.msra.mxu0 %v4177
          %4588 = vmatpush.msra.mxu0 %v4174
          %4589 = vmatpush.msra.mxu0 %v4171
          %4590 = vmatpush.msra.mxu0 %v4168
          %4591 = vmatpush.msra.mxu0 %v4165
          %4592 = vmatmul.f32.gmra.mxu0 %v3921
          %v4593 = vpop.f32.mrf.mxu0
          %v4594 = vadd.f32 %v4574, %v4593
          %4595 = vdwg.mxu0
          %4596 = vmatpush.msra.mxu0 %v4258
          %4597 = vmatpush.msra.mxu0 %v4255
          %4598 = vmatpush.msra.mxu0 %v4252
          %4599 = vmatpush.msra.mxu0 %v4249
          %4600 = vmatpush.msra.mxu0 %v4246
          %4601 = vmatpush.msra.mxu0 %v4243
          %4602 = vmatpush.msra.mxu0 %v4240
          %4603 = vmatpush.msra.mxu0 %v4237
          %4604 = vmatpush.msra.mxu0 %v4234
          %4605 = vmatpush.msra.mxu0 %v4231
          %4606 = vmatpush.msra.mxu0 %v4228
          %4607 = vmatpush.msra.mxu0 %v4225
          %4608 = vmatpush.msra.mxu0 %v4222
          %4609 = vmatpush.msra.mxu0 %v4219
          %4610 = vmatpush.msra.mxu0 %v4216
          %4611 = vmatpush.msra.mxu0 %v4213
          %4612 = vmatmul.f32.gmra.mxu0 %v3922
          %v4613 = vpop.f32.mrf.mxu0
          %v4614 = vadd.f32 %v4594, %v4613
          %4615 = vdwg.mxu0
          %4616 = vmatpush.msra.mxu0 %v4306
          %4617 = vmatpush.msra.mxu0 %v4303
          %4618 = vmatpush.msra.mxu0 %v4300
          %4619 = vmatpush.msra.mxu0 %v4297
          %4620 = vmatpush.msra.mxu0 %v4294
          %4621 = vmatpush.msra.mxu0 %v4291
          %4622 = vmatpush.msra.mxu0 %v4288
          %4623 = vmatpush.msra.mxu0 %v4285
          %4624 = vmatpush.msra.mxu0 %v4282
          %4625 = vmatpush.msra.mxu0 %v4279
          %4626 = vmatpush.msra.mxu0 %v4276
          %4627 = vmatpush.msra.mxu0 %v4273
          %4628 = vmatpush.msra.mxu0 %v4270
          %4629 = vmatpush.msra.mxu0 %v4267
          %4630 = vmatpush.msra.mxu0 %v4264
          %4631 = vmatpush.msra.mxu0 %v4261
          %4632 = vmatmul.f32.gmra.mxu0 %v3923
          %v4633 = vpop.f32.mrf.mxu0
          %v4634 = vadd.f32 %v4614, %v4633
          %4635 = vdwg.mxu0
          %4636 = vmatpush.msra.mxu0 %v3971
          %4637 = vmatpush.msra.mxu0 %v3968
          %4638 = vmatpush.msra.mxu0 %v3965
          %4639 = vmatpush.msra.mxu0 %v3962
          %4640 = vmatpush.msra.mxu0 %v3959
          %4641 = vmatpush.msra.mxu0 %v3956
          %4642 = vmatpush.msra.mxu0 %v3953
          %4643 = vmatpush.msra.mxu0 %v3950
          %4644 = vmatpush.msra.mxu0 %v3947
          %4645 = vmatpush.msra.mxu0 %v3944
          %4646 = vmatpush.msra.mxu0 %v3941
          %4647 = vmatpush.msra.mxu0 %v3938
          %4648 = vmatpush.msra.mxu0 %v3935
          %4649 = vmatpush.msra.mxu0 %v3932
          %4650 = vmatpush.msra.mxu0 %v3929
          %4651 = vmatpush.msra.mxu0 %v3926
          %4652 = vmatmul.f32.gmra.mxu0 %v3916
          %v4653 = vpop.f32.mrf.mxu0
          %v4654 = vadd.f32 %v4312, %v4653
          %4655 = vdwg.mxu0
          %4656 = vmatpush.msra.mxu0 %v4019
          %4657 = vmatpush.msra.mxu0 %v4016
          %4658 = vmatpush.msra.mxu0 %v4013
          %4659 = vmatpush.msra.mxu0 %v4010
          %4660 = vmatpush.msra.mxu0 %v4007
          %4661 = vmatpush.msra.mxu0 %v4004
          %4662 = vmatpush.msra.mxu0 %v4001
          %4663 = vmatpush.msra.mxu0 %v3998
          %4664 = vmatpush.msra.mxu0 %v3995
          %4665 = vmatpush.msra.mxu0 %v3992
          %4666 = vmatpush.msra.mxu0 %v3989
          %4667 = vmatpush.msra.mxu0 %v3986
          %4668 = vmatpush.msra.mxu0 %v3983
          %4669 = vmatpush.msra.mxu0 %v3980
          %4670 = vmatpush.msra.mxu0 %v3977
          %4671 = vmatpush.msra.mxu0 %v3974
          %4672 = vmatmul.f32.gmra.mxu0 %v3917
          %v4673 = vpop.f32.mrf.mxu0
          %v4674 = vadd.f32 %v4654, %v4673
          %4675 = vdwg.mxu0
          %4676 = vmatpush.msra.mxu0 %v4067
          %4677 = vmatpush.msra.mxu0 %v4064
          %4678 = vmatpush.msra.mxu0 %v4061
          %4679 = vmatpush.msra.mxu0 %v4058
          %4680 = vmatpush.msra.mxu0 %v4055
          %4681 = vmatpush.msra.mxu0 %v4052
          %4682 = vmatpush.msra.mxu0 %v4049
          %4683 = vmatpush.msra.mxu0 %v4046
          %4684 = vmatpush.msra.mxu0 %v4043
          %4685 = vmatpush.msra.mxu0 %v4040
          %4686 = vmatpush.msra.mxu0 %v4037
          %4687 = vmatpush.msra.mxu0 %v4034
          %4688 = vmatpush.msra.mxu0 %v4031
          %4689 = vmatpush.msra.mxu0 %v4028
          %4690 = vmatpush.msra.mxu0 %v4025
          %4691 = vmatpush.msra.mxu0 %v4022
          %4692 = vmatmul.f32.gmra.mxu0 %v3918
          %v4693 = vpop.f32.mrf.mxu0
          %v4694 = vadd.f32 %v4674, %v4693
          %4695 = vdwg.mxu0
          %4696 = vmatpush.msra.mxu0 %v4115
          %4697 = vmatpush.msra.mxu0 %v4112
          %4698 = vmatpush.msra.mxu0 %v4109
          %4699 = vmatpush.msra.mxu0 %v4106
          %4700 = vmatpush.msra.mxu0 %v4103
          %4701 = vmatpush.msra.mxu0 %v4100
          %4702 = vmatpush.msra.mxu0 %v4097
          %4703 = vmatpush.msra.mxu0 %v4094
          %4704 = vmatpush.msra.mxu0 %v4091
          %4705 = vmatpush.msra.mxu0 %v4088
          %4706 = vmatpush.msra.mxu0 %v4085
          %4707 = vmatpush.msra.mxu0 %v4082
          %4708 = vmatpush.msra.mxu0 %v4079
          %4709 = vmatpush.msra.mxu0 %v4076
          %4710 = vmatpush.msra.mxu0 %v4073
          %4711 = vmatpush.msra.mxu0 %v4070
          %4712 = vmatmul.f32.gmra.mxu0 %v3919
          %v4713 = vpop.f32.mrf.mxu0
          %v4714 = vadd.f32 %v4694, %v4713
          %4715 = vdwg.mxu0
          %4716 = vmatpush.msra.mxu0 %v4163
          %4717 = vmatpush.msra.mxu0 %v4160
          %4718 = vmatpush.msra.mxu0 %v4157
          %4719 = vmatpush.msra.mxu0 %v4154
          %4720 = vmatpush.msra.mxu0 %v4151
          %4721 = vmatpush.msra.mxu0 %v4148
          %4722 = vmatpush.msra.mxu0 %v4145
          %4723 = vmatpush.msra.mxu0 %v4142
          %4724 = vmatpush.msra.mxu0 %v4139
          %4725 = vmatpush.msra.mxu0 %v4136
          %4726 = vmatpush.msra.mxu0 %v4133
          %4727 = vmatpush.msra.mxu0 %v4130
          %4728 = vmatpush.msra.mxu0 %v4127
          %4729 = vmatpush.msra.mxu0 %v4124
          %4730 = vmatpush.msra.mxu0 %v4121
          %4731 = vmatpush.msra.mxu0 %v4118
          %4732 = vmatmul.f32.gmra.mxu0 %v3920
          %v4733 = vpop.f32.mrf.mxu0
          %v4734 = vadd.f32 %v4714, %v4733
          %4735 = vdwg.mxu0
          %4736 = vmatpush.msra.mxu0 %v4211
          %4737 = vmatpush.msra.mxu0 %v4208
          %4738 = vmatpush.msra.mxu0 %v4205
          %4739 = vmatpush.msra.mxu0 %v4202
          %4740 = vmatpush.msra.mxu0 %v4199
          %4741 = vmatpush.msra.mxu0 %v4196
          %4742 = vmatpush.msra.mxu0 %v4193
          %4743 = vmatpush.msra.mxu0 %v4190
          %4744 = vmatpush.msra.mxu0 %v4187
          %4745 = vmatpush.msra.mxu0 %v4184
          %4746 = vmatpush.msra.mxu0 %v4181
          %4747 = vmatpush.msra.mxu0 %v4178
          %4748 = vmatpush.msra.mxu0 %v4175
          %4749 = vmatpush.msra.mxu0 %v4172
          %4750 = vmatpush.msra.mxu0 %v4169
          %4751 = vmatpush.msra.mxu0 %v4166
          %4752 = vmatmul.f32.gmra.mxu0 %v3921
          %v4753 = vpop.f32.mrf.mxu0
          %v4754 = vadd.f32 %v4734, %v4753
          %4755 = vdwg.mxu0
          %4756 = vmatpush.msra.mxu0 %v4259
          %4757 = vmatpush.msra.mxu0 %v4256
          %4758 = vmatpush.msra.mxu0 %v4253
          %4759 = vmatpush.msra.mxu0 %v4250
          %4760 = vmatpush.msra.mxu0 %v4247
          %4761 = vmatpush.msra.mxu0 %v4244
          %4762 = vmatpush.msra.mxu0 %v4241
          %4763 = vmatpush.msra.mxu0 %v4238
          %4764 = vmatpush.msra.mxu0 %v4235
          %4765 = vmatpush.msra.mxu0 %v4232
          %4766 = vmatpush.msra.mxu0 %v4229
          %4767 = vmatpush.msra.mxu0 %v4226
          %4768 = vmatpush.msra.mxu0 %v4223
          %4769 = vmatpush.msra.mxu0 %v4220
          %4770 = vmatpush.msra.mxu0 %v4217
          %4771 = vmatpush.msra.mxu0 %v4214
          %4772 = vmatmul.f32.gmra.mxu0 %v3922
          %v4773 = vpop.f32.mrf.mxu0
          %v4774 = vadd.f32 %v4754, %v4773
          %4775 = vdwg.mxu0
          %4776 = vmatpush.msra.mxu0 %v4307
          %4777 = vmatpush.msra.mxu0 %v4304
          %4778 = vmatpush.msra.mxu0 %v4301
          %4779 = vmatpush.msra.mxu0 %v4298
          %4780 = vmatpush.msra.mxu0 %v4295
          %4781 = vmatpush.msra.mxu0 %v4292
          %4782 = vmatpush.msra.mxu0 %v4289
          %4783 = vmatpush.msra.mxu0 %v4286
          %4784 = vmatpush.msra.mxu0 %v4283
          %4785 = vmatpush.msra.mxu0 %v4280
          %4786 = vmatpush.msra.mxu0 %v4277
          %4787 = vmatpush.msra.mxu0 %v4274
          %4788 = vmatpush.msra.mxu0 %v4271
          %4789 = vmatpush.msra.mxu0 %v4268
          %4790 = vmatpush.msra.mxu0 %v4265
          %4791 = vmatpush.msra.mxu0 %v4262
          %4792 = vmatmul.f32.gmra.mxu0 %v3923
          %v4793 = vpop.f32.mrf.mxu0
          %v4794 = vadd.f32 %v4774, %v4793
          %4795 = vdwg.mxu0
          %4796 = vst [vmem:[#allocation3] sm:$0xff] %v4474
          %4797 = vst [vmem:[#allocation3 + $0x8] sm:$0xff] %v4634
          %4798 = vst [vmem:[#allocation3 + $0x10] sm:$0xff] %v4794
        $region56: #{dfr_forward.1} parent=47 // pred_fallthru
          _
        // Predicated region
        $region57: #{dfr_forward.1} parent=47 // pred_check
          %p4799 = pneg %p189
        $region58: #{dfr_forward.1} parent=47 // pred_check_branch
          %4801 = sbr.rel (%p4799) target = $region60
        $region59: #{dfr_forward.1} parent=47 // pred_region
          %4803 = vsyncadd [#allocation4], 0
          %s4805 = sshll.u32 [#allocation3], 4
          %s4806 = int_to_ptr.vmem [resolvable:$true] %s4805
          %s4807 = sshll.u32 %s7, 4
          %s4808 = int_to_ptr.hbm [resolvable:$true] %s4807
          %4810 = dma.vmem_to_hbm [thread:$0]  %s4806, 384, %s4808, [#allocation4]
        $region60: #{dfr_forward.1} parent=47 // pred_fallthru
          _
        // Predicated region
        $region61: #{dfr_forward.1} parent=47 // pred_check
          %p4811 = pneg %p189
        $region62: #{dfr_forward.1} parent=47 // pred_check_branch
          %4813 = sbr.rel (%p4811) target = $region64
        $region63: #{dfr_forward.1} parent=47 // pred_region
          %4815 = dma.done [#allocation4], 384
        $region64: #{dfr_forward.1} parent=47 // pred_fallthru
          _
      $region48: #{dfr_forward.1} parent=5 // pred_fallthru
        _
      %p4816 = scmp.le.s32.totalorder 2, %s14
      // Predicated region
      $region65: #{dfr_forward.1} parent=5 // pred_check
        %p4817 = pneg %p4816
      $region66: #{dfr_forward.1} parent=5 // pred_check_branch
        %4819 = sbr.rel (%p4817) target = $region68
      $region67: #{dfr_forward.1} parent=5 // pred_region
        %s4820 = ssub.s32 %s14, 2
      $region68: #{dfr_forward.1} parent=5 // pred_fallthru
        _
    $region6: #{dfr_forward.1} parent=1 // loop_footer
      %s18 = sadd.s32 1, %s14
    $region7: #{dfr_forward.1} parent=1 // loop_footer_branch
      %13 = sbr.rel target = $region3
    $region8: #{dfr_forward.1} parent=1 // loop_exit
      _
    %4821 = vsyncpa [#allocation4], 1
    %s4822 = scalar_lea.sflag [#allocation4], 1
    %4823 = vsyncpa %s4822, 1

</llo_original>
